<compile_context>
chip_gen: v6e
topology: v6e:2x2x1
jax: 0.10.0
libtpu: 0.0.40
codegen_flags: <defaults>
</compile_context>

<pallas_src>
import math

import jax
import jax.numpy as jnp
import numpy as np
from jax.experimental import pallas as pl
from jax.experimental.pallas import tpu as pltpu

NUM_PARTS = 6
GEM_P = 3.0
GEM_EPS = 1e-6
BN_EPS = 1e-5
# eval-mode BatchNorm with running_mean=0, running_var=1, weight=1, bias=0
BN_SCALE = 1.0 / math.sqrt(1.0 + BN_EPS)
LOG_BN_SCALE = math.log(BN_SCALE)


def _backbone_pcb_kernel(x_ref, wloc_ref, whead_ref, feat_ref, merge_ref):
    # x_ref:     (bB, S, C) f32, S = H*W (channels-last, H bands contiguous)
    # wloc_ref:  (6, C, F) bf16  -- per-part 1x1 conv, BN2d eval scale folded in
    # whead_ref: (C+1, 6) f32    -- collapsed dy_weight heads, last row = folded bias
    bB, S, C = x_ref.shape
    F = wloc_ref.shape[2]
    band = S // NUM_PARTS

    x = x_ref[...]

    # ---- global branch: GeM pooling + BatchNorm1d bottleneck (eval, scale folded) ----
    xc = jnp.maximum(x, GEM_EPS)
    m = jnp.mean(xc * xc * xc, axis=1)                                   # (bB, C)
    feat_ref[...] = jnp.exp(jnp.log(m) * (1.0 / GEM_P) + LOG_BN_SCALE)

    # ---- AdaptiveAvgPool2d((6,1)): per-band means, computed once and reused ----
    pooled = [jnp.mean(x[:, p * band:(p + 1) * band, :], axis=1)         # (bB, C) each
              for p in range(NUM_PARTS)]
    dp = pooled[0]
    for p in range(1, NUM_PARTS):
        dp = dp + pooled[p]
    dp = dp * (1.0 / NUM_PARTS)       # dy_weight's AdaptiveAvgPool2d((1,1)) of pooled map

    # ---- 6 dy_weight heads collapsed into one (bB,C)@(C,6) matmul + folded bias ----
    dw = (jnp.dot(dp, whead_ref[:C, :], preferred_element_type=jnp.float32)
          + whead_ref[C:C + 1, :])                                       # (bB, 6)

    # ---- per-part ClassBlock (bias-free 1x1 conv, BN2d scale folded) * dyn weight ----
    for p in range(NUM_PARTS):
        w_p = wloc_ref[p].astype(jnp.float32)                            # bf16 -> f32
        pf = jnp.dot(pooled[p], w_p, preferred_element_type=jnp.float32)  # (bB, F)
        merge_ref[:, p * F:(p + 1) * F] = pf * dw[:, p:p + 1]


def backbone_forward(x_nhwc, kp, *, batch_block=8):
    """x_nhwc: (B, H, W, C) post-backbone feature map (channels-last)."""
    B, H, W, C = x_nhwc.shape
    assert H % NUM_PARTS == 0, "adaptive (6,1) pooling with equal bins needs H % 6 == 0"
    F = kp["wloc_t"].shape[-1]
    S = H * W
    x = x_nhwc.astype(jnp.float32).reshape(B, S, C)      # free reshape of contiguous NHWC

    bB = min(batch_block, B)
    assert B % bB == 0, "demo wrapper assumes batch divisible by the batch block"
    grid = (B // bB,)

    feat, merge = pl.pallas_call(
        _backbone_pcb_kernel,
        out_shape=(jax.ShapeDtypeStruct((B, C), jnp.float32),
                   jax.ShapeDtypeStruct((B, NUM_PARTS * F), jnp.float32)),
        grid=grid,
        in_specs=[
            pl.BlockSpec((bB, S, C), lambda i: (i, 0, 0)),               # batch-tiled acts
            pl.BlockSpec((NUM_PARTS, C, F), lambda i: (0, 0, 0)),        # weights resident
            pl.BlockSpec((C + 1, NUM_PARTS), lambda i: (0, 0)),
        ],
        out_specs=(pl.BlockSpec((bB, C), lambda i: (i, 0)),
                   pl.BlockSpec((bB, NUM_PARTS * F), lambda i: (i, 0))),
        compiler_params=pltpu.CompilerParams(
            dimension_semantics=("parallel",),           # shard batch across TCs (v7x)
            vmem_limit_bytes=32 * 1024 * 1024),
    )(x, kp["wloc_t"], kp["whead"])
    return feat, merge


# ----------------------------- parameter handling -----------------------------

def init_torch_params(key, C, F, FM):
    """PyTorch-shaped per-part weights: Conv2d/Linear store (out_ch, in_ch)."""
    ks = jax.random.split(key, 9)
    f32 = lambda a: a.astype(jnp.float32)
    return {
        # ClassBlock: Conv2d(C, F, 1, bias=False) + BatchNorm2d(F)
        "wloc": f32(jax.random.normal(ks[0], (NUM_PARTS, F, C)) * (2.0 / C) ** 0.5),
        # dy_weight_i: Conv2d(C,F,1) -> Conv2d(F,FM,1) -> Conv2d(FM,F,1) -> Linear(F,1)
        "wa":   f32(jax.random.normal(ks[1], (NUM_PARTS, F, C)) * (1.0 / C) ** 0.5),
        "ba":   f32(jax.random.normal(ks[2], (NUM_PARTS, F)) * 0.01),
        "wb":   f32(jax.random.normal(ks[3], (NUM_PARTS, FM, F)) * (1.0 / F) ** 0.5),
        "bb":   f32(jax.random.normal(ks[4], (NUM_PARTS, FM)) * 0.01),
        "wc":   f32(jax.random.normal(ks[5], (NUM_PARTS, F, FM)) * (1.0 / FM) ** 0.5),
        "bc":   f32(jax.random.normal(ks[6], (NUM_PARTS, F)) * 0.01),
        "wl":   f32(jax.random.normal(ks[7], (NUM_PARTS, 1, F)) * (1.0 / F) ** 0.5),
        "bl":   f32(jax.random.normal(ks[8], (NUM_PARTS, 1)) * 0.01),
    }


def pack_params(tp):
    """One-time host-side packing (float64 math) into the layouts the kernel consumes."""
    n = NUM_PARTS
    f64 = lambda a: np.asarray(a, dtype=np.float64)

    # Per-part 1x1 conv transposed to (C, F) with the BN2d eval scale folded in; bf16.
    wloc_t = np.stack([f64(tp["wloc"][p]).T * BN_SCALE for p in range(n)], axis=0)

    # Collapse each activation-free dy_weight chain into one column of W_eff plus a
    # folded bias; stack the bias as the last row -> (C+1, 6).
    w_cols, b_vals = [], []
    for p in range(n):
        wa, ba = f64(tp["wa"][p]), f64(tp["ba"][p])
        wb, bb = f64(tp["wb"][p]), f64(tp["bb"][p])
        wc, bc = f64(tp["wc"][p]), f64(tp["bc"][p])
        wl, bl = f64(tp["wl"][p]), f64(tp["bl"][p])
        w_cols.append(wa.T @ wb.T @ wc.T @ wl.T)                          # (C, 1)
        b_vals.append((((ba @ wb.T + bb) @ wc.T + bc) @ wl.T + bl).reshape(1, 1))
    whead = np.concatenate([np.concatenate(w_cols, axis=1),
                            np.concatenate(b_vals, axis=1)], axis=0)      # (C+1, 6)

    return {
        "wloc_t": jnp.asarray(wloc_t, dtype=jnp.bfloat16),                # (6, C, F)
        "whead":  jnp.asarray(whead, dtype=jnp.float32),                  # (C+1, 6)
    }


# ------------------------------- numpy reference -------------------------------

def reference_forward(x_nhwc, tp):
    """Mirrors the PyTorch eval forward (float64), with the same bf16-quantized 1x1
    conv weights the kernel uses and the original (un-collapsed) dy_weight chain."""
    x = np.asarray(x_nhwc, dtype=np.float64)
    B, H, W, C = x.shape
    rows = H // NUM_PARTS
    f64 = lambda a: np.asarray(a, dtype=np.float64)

    # Backbone: GeM pooling -> BatchNorm1d bottleneck (eval identity statistics)
    xc = np.maximum(x, GEM_EPS)
    feat = np.mean(xc ** GEM_P, axis=(1, 2)) ** (1.0 / GEM_P) * BN_SCALE

    # PCB test path: adavgpool((6,1)) -> per-part ClassBlock; dy_weight on pooled map
    pooled = x.reshape(B, NUM_PARTS, rows, W, C).mean(axis=(2, 3))        # (B, 6, C)
    dp = pooled.mean(axis=1)                                              # (B, C)

    wloc_q = np.asarray(jnp.asarray(tp["wloc"], jnp.bfloat16).astype(jnp.float32),
                        dtype=np.float64)                                 # bf16-rounded
    merges = []
    for i in range(NUM_PARTS):
        pf = (pooled[:, i] @ wloc_q[i].T) * BN_SCALE
        h1 = dp @ f64(tp["wa"][i]).T + f64(tp["ba"][i])
        h2 = h1 @ f64(tp["wb"][i]).T + f64(tp["bb"][i])
        h3 = h2 @ f64(tp["wc"][i]).T + f64(tp["bc"][i])
        dw = h3 @ f64(tp["wl"][i]).T + f64(tp["bl"][i])                   # (B, 1)
        merges.append(pf * dw)
    return feat, np.concatenate(merges, axis=1)


if __name__ == "__main__":
    # Small synthetic post-backbone feature map (NHWC); C reduced from 2048 for the demo.
    B, C, H, W = 16, 256, 12, 4
    F, FM = 256, 16                     # PCB num_features=256, num_features // 16

    key = jax.random.PRNGKey(0)
    kx, kw = jax.random.split(key)
    x_nhwc = jax.random.normal(kx, (B, H, W, C), dtype=jnp.float32)
    torch_params = init_torch_params(kw, C, F, FM)
    kernel_params = pack_params(torch_params)

    feat, pcb_merge = backbone_forward(x_nhwc, kernel_params, batch_block=8)
    jax.block_until_ready((feat, pcb_merge))

    rfeat, rmerge = reference_forward(x_nhwc, torch_params)
    assert feat.shape == (B, C)
    assert pcb_merge.shape == (B, NUM_PARTS * F)
    assert np.allclose(np.asarray(feat), rfeat, rtol=5e-3, atol=5e-3)
    assert np.allclose(np.asarray(pcb_merge), rmerge, rtol=5e-3, atol=5e-3)
    print("KERNEL_OK")
</pallas_src>

<mosaic_0001>
module attributes {stable_mosaic.version = 11 : i64} {
  func.func @_backbone_pcb_kernel(%arg0: i32, %arg1: memref<8x48x256xf32, #tpu.memory_space<vmem>>, %arg2: memref<6x256x256xbf16, #tpu.memory_space<vmem>>, %arg3: memref<257x6xf32, #tpu.memory_space<vmem>>, %arg4: memref<8x256xf32, #tpu.memory_space<vmem>>, %arg5: memref<8x1536xf32, #tpu.memory_space<vmem>>) attributes {dimension_semantics = [#tpu.dimension_semantics<parallel>], iteration_bounds = array<i64: 2>, scalar_prefetch = 0 : i64, scratch_operands = 0 : i64, tpu.core_type = #tpu.core_type<tc>, window_params = [{transform_indices = @transform_0, window_bounds = array<i64: 8, 48, 256>}, {pipeline_mode = #tpu.pipeline_mode<synchronous>, transform_indices = @transform_1, window_bounds = array<i64: 6, 256, 256>}, {pipeline_mode = #tpu.pipeline_mode<synchronous>, transform_indices = @transform_2, window_bounds = array<i64: 257, 6>}, {transform_indices = @transform_3, window_bounds = array<i64: 8, 256>}, {transform_indices = @transform_4, window_bounds = array<i64: 8, 1536>}]} {
    %c0 = arith.constant 0 : index
    %c0_0 = arith.constant 0 : index
    %c0_1 = arith.constant 0 : index
    %0 = vector.load %arg1[%c0, %c0_0, %c0_1] : memref<8x48x256xf32, #tpu.memory_space<vmem>>, vector<8x48x256xf32>
    %cst = arith.constant 9.99999997E-7 : f32
    %1 = vector.broadcast %cst : f32 to vector<8x48x256xf32>
    %2 = arith.maximumf %0, %1 : vector<8x48x256xf32>
    %3 = arith.mulf %2, %2 : vector<8x48x256xf32>
    %4 = arith.mulf %3, %2 : vector<8x48x256xf32>
    %cst_2 = arith.constant dense<0.000000e+00> : vector<8x256xf32>
    %5 = vector.multi_reduction <add>, %4, %cst_2 [1] : vector<8x48x256xf32> to vector<8x256xf32>
    %cst_3 = arith.constant 4.800000e+01 : f32
    %6 = vector.broadcast %cst_3 : f32 to vector<8x256xf32>
    %7 = arith.divf %5, %6 : vector<8x256xf32>
    %8 = math.log %7 : vector<8x256xf32>
    %cst_4 = arith.constant 0.333333343 : f32
    %9 = vector.broadcast %cst_4 : f32 to vector<8x256xf32>
    %10 = arith.mulf %8, %9 : vector<8x256xf32>
    %cst_5 = arith.constant -4.99997486E-6 : f32
    %11 = vector.broadcast %cst_5 : f32 to vector<8x256xf32>
    %12 = arith.addf %10, %11 : vector<8x256xf32>
    %13 = math.exp %12 : vector<8x256xf32>
    %c0_6 = arith.constant 0 : index
    %c0_7 = arith.constant 0 : index
    %14 = vector.load %arg4[%c0_6, %c0_7] : memref<8x256xf32, #tpu.memory_space<vmem>>, vector<8x256xf32>
    tpu.vector_store %arg4[%c0_6, %c0_7], %13 {strides = array<i32>} : memref<8x256xf32, #tpu.memory_space<vmem>>, vector<8x256xf32>,
    %15 = vector.extract_strided_slice %0 {offsets = [0, 0, 0], sizes = [8, 8, 256], strides = [1, 1, 1]} : vector<8x48x256xf32> to vector<8x8x256xf32>
    %cst_8 = arith.constant dense<0.000000e+00> : vector<8x256xf32>
    %16 = vector.multi_reduction <add>, %15, %cst_8 [1] : vector<8x8x256xf32> to vector<8x256xf32>
    %cst_9 = arith.constant 8.000000e+00 : f32
    %17 = vector.broadcast %cst_9 : f32 to vector<8x256xf32>
    %18 = arith.divf %16, %17 : vector<8x256xf32>
    %19 = vector.extract_strided_slice %0 {offsets = [0, 8, 0], sizes = [8, 8, 256], strides = [1, 1, 1]} : vector<8x48x256xf32> to vector<8x8x256xf32>
    %cst_10 = arith.constant dense<0.000000e+00> : vector<8x256xf32>
    %20 = vector.multi_reduction <add>, %19, %cst_10 [1] : vector<8x8x256xf32> to vector<8x256xf32>
    %cst_11 = arith.constant 8.000000e+00 : f32
    %21 = vector.broadcast %cst_11 : f32 to vector<8x256xf32>
    %22 = arith.divf %20, %21 : vector<8x256xf32>
    %23 = vector.extract_strided_slice %0 {offsets = [0, 16, 0], sizes = [8, 8, 256], strides = [1, 1, 1]} : vector<8x48x256xf32> to vector<8x8x256xf32>
    %cst_12 = arith.constant dense<0.000000e+00> : vector<8x256xf32>
    %24 = vector.multi_reduction <add>, %23, %cst_12 [1] : vector<8x8x256xf32> to vector<8x256xf32>
    %cst_13 = arith.constant 8.000000e+00 : f32
    %25 = vector.broadcast %cst_13 : f32 to vector<8x256xf32>
    %26 = arith.divf %24, %25 : vector<8x256xf32>
    %27 = vector.extract_strided_slice %0 {offsets = [0, 24, 0], sizes = [8, 8, 256], strides = [1, 1, 1]} : vector<8x48x256xf32> to vector<8x8x256xf32>
    %cst_14 = arith.constant dense<0.000000e+00> : vector<8x256xf32>
    %28 = vector.multi_reduction <add>, %27, %cst_14 [1] : vector<8x8x256xf32> to vector<8x256xf32>
    %cst_15 = arith.constant 8.000000e+00 : f32
    %29 = vector.broadcast %cst_15 : f32 to vector<8x256xf32>
    %30 = arith.divf %28, %29 : vector<8x256xf32>
    %31 = vector.extract_strided_slice %0 {offsets = [0, 32, 0], sizes = [8, 8, 256], strides = [1, 1, 1]} : vector<8x48x256xf32> to vector<8x8x256xf32>
    %cst_16 = arith.constant dense<0.000000e+00> : vector<8x256xf32>
    %32 = vector.multi_reduction <add>, %31, %cst_16 [1] : vector<8x8x256xf32> to vector<8x256xf32>
    %cst_17 = arith.constant 8.000000e+00 : f32
    %33 = vector.broadcast %cst_17 : f32 to vector<8x256xf32>
    %34 = arith.divf %32, %33 : vector<8x256xf32>
    %35 = vector.extract_strided_slice %0 {offsets = [0, 40, 0], sizes = [8, 8, 256], strides = [1, 1, 1]} : vector<8x48x256xf32> to vector<8x8x256xf32>
    %cst_18 = arith.constant dense<0.000000e+00> : vector<8x256xf32>
    %36 = vector.multi_reduction <add>, %35, %cst_18 [1] : vector<8x8x256xf32> to vector<8x256xf32>
    %cst_19 = arith.constant 8.000000e+00 : f32
    %37 = vector.broadcast %cst_19 : f32 to vector<8x256xf32>
    %38 = arith.divf %36, %37 : vector<8x256xf32>
    %39 = arith.addf %18, %22 : vector<8x256xf32>
    %40 = arith.addf %39, %26 : vector<8x256xf32>
    %41 = arith.addf %40, %30 : vector<8x256xf32>
    %42 = arith.addf %41, %34 : vector<8x256xf32>
    %43 = arith.addf %42, %38 : vector<8x256xf32>
    %cst_20 = arith.constant 0.166666672 : f32
    %44 = vector.broadcast %cst_20 : f32 to vector<8x256xf32>
    %45 = arith.mulf %43, %44 : vector<8x256xf32>
    %c0_21 = arith.constant 0 : index
    %c0_22 = arith.constant 0 : index
    %46 = vector.load %arg3[%c0_21, %c0_22] : memref<257x6xf32, #tpu.memory_space<vmem>>, vector<256x6xf32>
    %cst_23 = arith.constant dense<0.000000e+00> : vector<8x6xf32>
    %47 = tpu.matmul %45, %46, %cst_23 {dimension_numbers = #tpu.dot_dimension_numbers<[1], [0], [0], [1], [0, 0, 1, 1], [], []>} : vector<8x256xf32>, vector<256x6xf32>, vector<8x6xf32> -> vector<8x6xf32>
    %c256 = arith.constant 256 : index
    %c0_24 = arith.constant 0 : index
    %48 = vector.load %arg3[%c256, %c0_24] : memref<257x6xf32, #tpu.memory_space<vmem>>, vector<1x6xf32>
    %49 = vector.broadcast %48 : vector<1x6xf32> to vector<8x6xf32>
    %50 = arith.addf %47, %49 : vector<8x6xf32>
    %c0_25 = arith.constant 0 : index
    %c0_26 = arith.constant 0 : index
    %c0_27 = arith.constant 0 : index
    %51 = vector.load %arg2[%c0_25, %c0_26, %c0_27] : memref<6x256x256xbf16, #tpu.memory_space<vmem>>, vector<1x256x256xbf16>
    %52 = vector.shape_cast %51 : vector<1x256x256xbf16> to vector<256x256xbf16>
    %53 = arith.extf %52 : vector<256x256xbf16> to vector<256x256xf32>
    %cst_28 = arith.constant dense<0.000000e+00> : vector<8x256xf32>
    %54 = tpu.matmul %18, %53, %cst_28 {dimension_numbers = #tpu.dot_dimension_numbers<[1], [0], [0], [1], [0, 0, 1, 1], [], []>} : vector<8x256xf32>, vector<256x256xf32>, vector<8x256xf32> -> vector<8x256xf32>
    %55 = vector.extract_strided_slice %50 {offsets = [0, 0], sizes = [8, 1], strides = [1, 1]} : vector<8x6xf32> to vector<8x1xf32>
    %56 = vector.broadcast %55 : vector<8x1xf32> to vector<8x256xf32>
    %57 = arith.mulf %54, %56 : vector<8x256xf32>
    %c0_29 = arith.constant 0 : index
    %c0_30 = arith.constant 0 : index
    %58 = vector.load %arg5[%c0_29, %c0_30] : memref<8x1536xf32, #tpu.memory_space<vmem>>, vector<8x256xf32>
    tpu.vector_store %arg5[%c0_29, %c0_30], %57 {strides = array<i32>} : memref<8x1536xf32, #tpu.memory_space<vmem>>, vector<8x256xf32>,
    %c1 = arith.constant 1 : index
    %c0_31 = arith.constant 0 : index
    %c0_32 = arith.constant 0 : index
    %59 = vector.load %arg2[%c1, %c0_31, %c0_32] : memref<6x256x256xbf16, #tpu.memory_space<vmem>>, vector<1x256x256xbf16>
    %60 = vector.shape_cast %59 : vector<1x256x256xbf16> to vector<256x256xbf16>
    %61 = arith.extf %60 : vector<256x256xbf16> to vector<256x256xf32>
    %cst_33 = arith.constant dense<0.000000e+00> : vector<8x256xf32>
    %62 = tpu.matmul %22, %61, %cst_33 {dimension_numbers = #tpu.dot_dimension_numbers<[1], [0], [0], [1], [0, 0, 1, 1], [], []>} : vector<8x256xf32>, vector<256x256xf32>, vector<8x256xf32> -> vector<8x256xf32>
    %63 = vector.extract_strided_slice %50 {offsets = [0, 1], sizes = [8, 1], strides = [1, 1]} : vector<8x6xf32> to vector<8x1xf32>
    %64 = vector.broadcast %63 : vector<8x1xf32> to vector<8x256xf32>
    %65 = arith.mulf %62, %64 : vector<8x256xf32>
    %c0_34 = arith.constant 0 : index
    %c256_35 = arith.constant 256 : index
    %66 = vector.load %arg5[%c0_34, %c256_35] : memref<8x1536xf32, #tpu.memory_space<vmem>>, vector<8x256xf32>
    tpu.vector_store %arg5[%c0_34, %c256_35], %65 {strides = array<i32>} : memref<8x1536xf32, #tpu.memory_space<vmem>>, vector<8x256xf32>,
    %c2 = arith.constant 2 : index
    %c0_36 = arith.constant 0 : index
    %c0_37 = arith.constant 0 : index
    %67 = vector.load %arg2[%c2, %c0_36, %c0_37] : memref<6x256x256xbf16, #tpu.memory_space<vmem>>, vector<1x256x256xbf16>
    %68 = vector.shape_cast %67 : vector<1x256x256xbf16> to vector<256x256xbf16>
    %69 = arith.extf %68 : vector<256x256xbf16> to vector<256x256xf32>
    %cst_38 = arith.constant dense<0.000000e+00> : vector<8x256xf32>
    %70 = tpu.matmul %26, %69, %cst_38 {dimension_numbers = #tpu.dot_dimension_numbers<[1], [0], [0], [1], [0, 0, 1, 1], [], []>} : vector<8x256xf32>, vector<256x256xf32>, vector<8x256xf32> -> vector<8x256xf32>
    %71 = vector.extract_strided_slice %50 {offsets = [0, 2], sizes = [8, 1], strides = [1, 1]} : vector<8x6xf32> to vector<8x1xf32>
    %72 = vector.broadcast %71 : vector<8x1xf32> to vector<8x256xf32>
    %73 = arith.mulf %70, %72 : vector<8x256xf32>
    %c0_39 = arith.constant 0 : index
    %c512 = arith.constant 512 : index
    %74 = vector.load %arg5[%c0_39, %c512] : memref<8x1536xf32, #tpu.memory_space<vmem>>, vector<8x256xf32>
    tpu.vector_store %arg5[%c0_39, %c512], %73 {strides = array<i32>} : memref<8x1536xf32, #tpu.memory_space<vmem>>, vector<8x256xf32>,
    %c3 = arith.constant 3 : index
    %c0_40 = arith.constant 0 : index
    %c0_41 = arith.constant 0 : index
    %75 = vector.load %arg2[%c3, %c0_40, %c0_41] : memref<6x256x256xbf16, #tpu.memory_space<vmem>>, vector<1x256x256xbf16>
    %76 = vector.shape_cast %75 : vector<1x256x256xbf16> to vector<256x256xbf16>
    %77 = arith.extf %76 : vector<256x256xbf16> to vector<256x256xf32>
    %cst_42 = arith.constant dense<0.000000e+00> : vector<8x256xf32>
    %78 = tpu.matmul %30, %77, %cst_42 {dimension_numbers = #tpu.dot_dimension_numbers<[1], [0], [0], [1], [0, 0, 1, 1], [], []>} : vector<8x256xf32>, vector<256x256xf32>, vector<8x256xf32> -> vector<8x256xf32>
    %79 = vector.extract_strided_slice %50 {offsets = [0, 3], sizes = [8, 1], strides = [1, 1]} : vector<8x6xf32> to vector<8x1xf32>
    %80 = vector.broadcast %79 : vector<8x1xf32> to vector<8x256xf32>
    %81 = arith.mulf %78, %80 : vector<8x256xf32>
    %c0_43 = arith.constant 0 : index
    %c768 = arith.constant 768 : index
    %82 = vector.load %arg5[%c0_43, %c768] : memref<8x1536xf32, #tpu.memory_space<vmem>>, vector<8x256xf32>
    tpu.vector_store %arg5[%c0_43, %c768], %81 {strides = array<i32>} : memref<8x1536xf32, #tpu.memory_space<vmem>>, vector<8x256xf32>,
    %c4 = arith.constant 4 : index
    %c0_44 = arith.constant 0 : index
    %c0_45 = arith.constant 0 : index
    %83 = vector.load %arg2[%c4, %c0_44, %c0_45] : memref<6x256x256xbf16, #tpu.memory_space<vmem>>, vector<1x256x256xbf16>
    %84 = vector.shape_cast %83 : vector<1x256x256xbf16> to vector<256x256xbf16>
    %85 = arith.extf %84 : vector<256x256xbf16> to vector<256x256xf32>
    %cst_46 = arith.constant dense<0.000000e+00> : vector<8x256xf32>
    %86 = tpu.matmul %34, %85, %cst_46 {dimension_numbers = #tpu.dot_dimension_numbers<[1], [0], [0], [1], [0, 0, 1, 1], [], []>} : vector<8x256xf32>, vector<256x256xf32>, vector<8x256xf32> -> vector<8x256xf32>
    %87 = vector.extract_strided_slice %50 {offsets = [0, 4], sizes = [8, 1], strides = [1, 1]} : vector<8x6xf32> to vector<8x1xf32>
    %88 = vector.broadcast %87 : vector<8x1xf32> to vector<8x256xf32>
    %89 = arith.mulf %86, %88 : vector<8x256xf32>
    %c0_47 = arith.constant 0 : index
    %c1024 = arith.constant 1024 : index
    %90 = vector.load %arg5[%c0_47, %c1024] : memref<8x1536xf32, #tpu.memory_space<vmem>>, vector<8x256xf32>
    tpu.vector_store %arg5[%c0_47, %c1024], %89 {strides = array<i32>} : memref<8x1536xf32, #tpu.memory_space<vmem>>, vector<8x256xf32>,
    %c5 = arith.constant 5 : index
    %c0_48 = arith.constant 0 : index
    %c0_49 = arith.constant 0 : index
    %91 = vector.load %arg2[%c5, %c0_48, %c0_49] : memref<6x256x256xbf16, #tpu.memory_space<vmem>>, vector<1x256x256xbf16>
    %92 = vector.shape_cast %91 : vector<1x256x256xbf16> to vector<256x256xbf16>
    %93 = arith.extf %92 : vector<256x256xbf16> to vector<256x256xf32>
    %cst_50 = arith.constant dense<0.000000e+00> : vector<8x256xf32>
    %94 = tpu.matmul %38, %93, %cst_50 {dimension_numbers = #tpu.dot_dimension_numbers<[1], [0], [0], [1], [0, 0, 1, 1], [], []>} : vector<8x256xf32>, vector<256x256xf32>, vector<8x256xf32> -> vector<8x256xf32>
    %95 = vector.extract_strided_slice %50 {offsets = [0, 5], sizes = [8, 1], strides = [1, 1]} : vector<8x6xf32> to vector<8x1xf32>
    %96 = vector.broadcast %95 : vector<8x1xf32> to vector<8x256xf32>
    %97 = arith.mulf %94, %96 : vector<8x256xf32>
    %c0_51 = arith.constant 0 : index
    %c1280 = arith.constant 1280 : index
    %98 = vector.load %arg5[%c0_51, %c1280] : memref<8x1536xf32, #tpu.memory_space<vmem>>, vector<8x256xf32>
    tpu.vector_store %arg5[%c0_51, %c1280], %97 {strides = array<i32>} : memref<8x1536xf32, #tpu.memory_space<vmem>>, vector<8x256xf32>,
    return
  }
  func.func @transform_0(%arg0: i32) -> (i32, i32, i32) {
    %c0_i32 = arith.constant 0 : i32
    %c0_i32_0 = arith.constant 0 : i32
    %c0_i32_1 = arith.constant 0 : i32
    return %arg0, %c0_i32, %c0_i32_0 : i32, i32, i32
  }
  func.func @transform_1(%arg0: i32) -> (i32, i32, i32) {
    %c0_i32 = arith.constant 0 : i32
    %c0_i32_0 = arith.constant 0 : i32
    %c0_i32_1 = arith.constant 0 : i32
    %c0_i32_2 = arith.constant 0 : i32
    return %c0_i32, %c0_i32_0, %c0_i32_1 : i32, i32, i32
  }
  func.func @transform_2(%arg0: i32) -> (i32, i32) {
    %c0_i32 = arith.constant 0 : i32
    %c0_i32_0 = arith.constant 0 : i32
    %c0_i32_1 = arith.constant 0 : i32
    return %c0_i32, %c0_i32_0 : i32, i32
  }
  func.func @transform_3(%arg0: i32) -> (i32, i32) {
    %c0_i32 = arith.constant 0 : i32
    %c0_i32_0 = arith.constant 0 : i32
    return %arg0, %c0_i32 : i32, i32
  }
  func.func @transform_4(%arg0: i32) -> (i32, i32) {
    %c0_i32 = arith.constant 0 : i32
    %c0_i32_0 = arith.constant 0 : i32
    return %arg0, %c0_i32 : i32, i32
  }
}

</mosaic_0001>

<llo_original>
// kernel: tpu_custom_call.1
$region0: #{tpu_custom_call.1}
  #allocation0 [shape = 'u32[]', space=smem, size = 0x4, offset = 0x4, fixed_abs, tag = 'smem constant byte address 0x4 - core index']
  #allocation1 [shape = 'u32[144,128]{1,0:T(1,128)}', space=vmem, size = 0x12000, scoped, tag = 'internal scratch']
  %s0 = inlined_call_operand.hbm [shape: f32[16,48,256], index: 0, kind: input, shape index: {}]
  %s1 = inlined_call_operand.hbm [shape: bf16[6,256,256], index: 1, kind: input, shape index: {}]
  %s2 = inlined_call_operand.vmem [shape: f32[257,6], index: 2, kind: input, shape index: {}]
  %s3 = inlined_call_operand.hbm [shape: f32[16,256], index: 3, kind: output, shape index: {0}]
  %s4 = inlined_call_operand.hbm [shape: f32[16,1536], index: 4, kind: output, shape index: {1}]
  %5 = xla_tuple %s3, %s4
  %s6 = sld [smem:[#allocation0]]
  $region61: #{tpu_custom_call.1} parent=0
    _
  %s8 = ssub.s32 1, %s6
  %s9 = scalar_select 0, %s8, %s6
  $region1: #{tpu_custom_call.1} parent=0
    #allocation2 [shape = 'u8[786432]{0}', space=vmem, size = 0xc0000, scoped, tag = 'input window, operand 0']
    #allocation3 [shape = 's32[2]{0}', space=sflag, size = 0x8, scoped, tag = 'scoped memory for tpu_custom_call.1']
    #allocation4 [shape = 's32[2]{0}', space=sflag, size = 0x8, scoped, tag = 'scoped memory for tpu_custom_call.1']
    #allocation5 [shape = 'u8[786432]{0}', space=vmem, size = 0xc0000, scoped, tag = 'input window, operand 1, single buffered']
    #allocation6 [shape = 's32[1]{0}', space=sflag, size = 0x4, scoped, tag = 'scoped memory for tpu_custom_call.1']
    #allocation7 [shape = 'u8[16384]{0}', space=vmem, size = 0x4000, scoped, tag = 'output window, operand 0']
    #allocation8 [shape = 'u8[98304]{0}', space=vmem, size = 0x18000, scoped, tag = 'output window, operand 1']
    #allocation9 [shape = 's32[2]{0}', space=sflag, size = 0x8, scoped, tag = 'scoped memory for tpu_custom_call.1']
    %10 = vsyncpa [#allocation3], 0
    %s11 = scalar_lea.sflag [#allocation3], 1
    %12 = vsyncpa %s11, 0
    %13 = vsyncpa [#allocation6], 0
    %14 = vsyncpa [#allocation4], 0
    %s15 = scalar_lea.sflag [#allocation4], 1
    %16 = vsyncpa %s15, 0
    %17 = vsyncpa [#allocation9], 0
    %s18 = scalar_lea.sflag [#allocation9], 1
    %19 = vsyncpa %s18, 0
    loop: start=0, step=1, limit=4
    $region2: #{tpu_custom_call.1} parent=1 // loop_pre_header
      _
    $region3: #{tpu_custom_call.1} parent=1 // loop_header
      %s21 = sphi 0, %s25
      %p22 = scmp.ge.s32.totalorder %s21, 4
      %s31 = sphi 0, %s33
      %s34 = sphi 0, %s31
      %s35 = sphi 0, %s34
      %s51 = sphi 0, %s35
      %s55 = sphi 0, %s55
      %s57 = sphi 0, %s55
      %s58 = sphi 0, %s57
      %s72 = sphi 0, %s58
      %s76 = sphi 0, %s76
      %s78 = sphi 0, %s76
      %s79 = sphi 0, %s78
      %s93 = sphi 0, %s79
      %s99 = sphi 0, %s101
      %s102 = sphi 0, %s99
      %s103 = sphi 0, %s102
      %s119 = sphi 0, %s103
      %s125 = sphi 0, %s127
      %s128 = sphi 0, %s125
      %s129 = sphi 0, %s128
      %s145 = sphi 0, %s129
    $region4: #{tpu_custom_call.1} parent=1 // loop_header_branch
      %24 = sbr.rel (%p22) target = $region8
    $region5: #{tpu_custom_call.1} parent=1 // loop_body
      %s26 = ssub.s32 %s21, 1
      %s27 = ssub.s32 %s21, 2
      %s28 = sadd.s32 %s21, 1
      %s29 = ssub.s32 %s21, %s28
      %p30 = scmp.eq.s32.totalorder %s29, 0
      %s32 = sadd.s32 %s31, 1
      %s33 = scalar_select %p30, %s31, %s32
      %p36 = pneg %p30
      %p37 = scmp.eq.s32.totalorder %s21, 1
      %p38 = por %p36, %p37
      %p39 = scmp.ne.s32.totalorder %s31, %s34
      %p40 = scmp.eq.s32.totalorder %s21, 0
      %p41 = por %p39, %p40
      %p42 = scmp.ne.s32.totalorder %s31, %s34
      %p43 = scmp.eq.s32.totalorder %s26, 1
      %p44 = por %p42, %p43
      %p45 = scmp.ne.s32.totalorder %s34, %s35
      %p46 = scmp.eq.s32.totalorder %s26, 0
      %p47 = por %p45, %p46
      %p48 = scmp.ne.s32.totalorder %s34, %s35
      %p49 = scmp.eq.s32.totalorder %s27, 1
      %p50 = por %p48, %p49
      %p52 = scmp.ne.s32.totalorder %s35, %s51
      %p53 = scmp.eq.s32.totalorder %s27, 0
      %p54 = por %p52, %p53
      %s56 = sadd.s32 %s55, 1
      %p59 = scmp.eq.s32.totalorder %s21, 1
      %p60 = scmp.ne.s32.totalorder %s55, %s57
      %p61 = scmp.eq.s32.totalorder %s21, 0
      %p62 = por %p60, %p61
      %p63 = scmp.ne.s32.totalorder %s55, %s57
      %p64 = scmp.eq.s32.totalorder %s26, 1
      %p65 = por %p63, %p64
      %p66 = scmp.ne.s32.totalorder %s57, %s58
      %p67 = scmp.eq.s32.totalorder %s26, 0
      %p68 = por %p66, %p67
      %p69 = scmp.ne.s32.totalorder %s57, %s58
      %p70 = scmp.eq.s32.totalorder %s27, 1
      %p71 = por %p69, %p70
      %p73 = scmp.ne.s32.totalorder %s58, %s72
      %p74 = scmp.eq.s32.totalorder %s27, 0
      %p75 = por %p73, %p74
      %s77 = sadd.s32 %s76, 1
      %p80 = scmp.eq.s32.totalorder %s21, 1
      %p81 = scmp.ne.s32.totalorder %s76, %s78
      %p82 = scmp.eq.s32.totalorder %s21, 0
      %p83 = por %p81, %p82
      %p84 = scmp.ne.s32.totalorder %s76, %s78
      %p85 = scmp.eq.s32.totalorder %s26, 1
      %p86 = por %p84, %p85
      %p87 = scmp.ne.s32.totalorder %s78, %s79
      %p88 = scmp.eq.s32.totalorder %s26, 0
      %p89 = por %p87, %p88
      %p90 = scmp.ne.s32.totalorder %s78, %s79
      %p91 = scmp.eq.s32.totalorder %s27, 1
      %p92 = por %p90, %p91
      %p94 = scmp.ne.s32.totalorder %s79, %s93
      %p95 = scmp.eq.s32.totalorder %s27, 0
      %p96 = por %p94, %p95
      %s97 = ssub.s32 %s21, %s28
      %p98 = scmp.eq.s32.totalorder %s97, 0
      %s100 = sadd.s32 %s99, 1
      %s101 = scalar_select %p98, %s99, %s100
      %p104 = pneg %p98
      %p105 = scmp.eq.s32.totalorder %s21, 1
      %p106 = por %p104, %p105
      %p107 = scmp.ne.s32.totalorder %s99, %s102
      %p108 = scmp.eq.s32.totalorder %s21, 0
      %p109 = por %p107, %p108
      %p110 = scmp.ne.s32.totalorder %s99, %s102
      %p111 = scmp.eq.s32.totalorder %s26, 1
      %p112 = por %p110, %p111
      %p113 = scmp.ne.s32.totalorder %s102, %s103
      %p114 = scmp.eq.s32.totalorder %s26, 0
      %p115 = por %p113, %p114
      %p116 = scmp.ne.s32.totalorder %s102, %s103
      %p117 = scmp.eq.s32.totalorder %s27, 1
      %p118 = por %p116, %p117
      %p120 = scmp.ne.s32.totalorder %s103, %s119
      %p121 = scmp.eq.s32.totalorder %s27, 0
      %p122 = por %p120, %p121
      %s123 = ssub.s32 %s21, %s28
      %p124 = scmp.eq.s32.totalorder %s123, 0
      %s126 = sadd.s32 %s125, 1
      %s127 = scalar_select %p124, %s125, %s126
      %p130 = pneg %p124
      %p131 = scmp.eq.s32.totalorder %s21, 1
      %p132 = por %p130, %p131
      %p133 = scmp.ne.s32.totalorder %s125, %s128
      %p134 = scmp.eq.s32.totalorder %s21, 0
      %p135 = por %p133, %p134
      %p136 = scmp.ne.s32.totalorder %s125, %s128
      %p137 = scmp.eq.s32.totalorder %s26, 1
      %p138 = por %p136, %p137
      %p139 = scmp.ne.s32.totalorder %s128, %s129
      %p140 = scmp.eq.s32.totalorder %s26, 0
      %p141 = por %p139, %p140
      %p142 = scmp.ne.s32.totalorder %s128, %s129
      %p143 = scmp.eq.s32.totalorder %s27, 1
      %p144 = por %p142, %p143
      %p146 = scmp.ne.s32.totalorder %s129, %s145
      %p147 = scmp.eq.s32.totalorder %s27, 0
      %p148 = por %p146, %p147
      %p149 = scmp.le.s32.totalorder 1, %s21
      %p150 = scmp.lt.s32.totalorder %s21, 3
      %p151 = pnand %p149, %p150
      %p152 = pneg %p151
      // Predicated region
      $region9: #{tpu_custom_call.1} parent=5 // pred_check
        _
      $region10: #{tpu_custom_call.1} parent=5 // pred_check_branch
        %154 = sbr.rel (%p151) target = $region12
      $region11: #{tpu_custom_call.1} parent=5 // pred_region
        %s155 = ssub.s32 %s21, 1
        // Predicated region
        $region13: #{tpu_custom_call.1} parent=11 // pred_check
          %p156 = pneg %p68
        $region14: #{tpu_custom_call.1} parent=11 // pred_check_branch
          %158 = sbr.rel (%p156) target = $region16
        $region15: #{tpu_custom_call.1} parent=11 // pred_region
          %s160 = ssub.s32 24576, 24576
          %161 = vsyncadd [#allocation6], %s160
          %s162 = sshll.u32 [#allocation5], 4
          %s163 = int_to_ptr.vmem [resolvable:$true] %s162
          %168 = dma.hbm_to_vmem [thread:$0]  %s1, 24576, %s163, [#allocation6], 128, 128, 8
        $region16: #{tpu_custom_call.1} parent=11 // pred_fallthru
          _
        // Predicated region
        $region17: #{tpu_custom_call.1} parent=11 // pred_check
          %p169 = pneg %p89
        $region18: #{tpu_custom_call.1} parent=11 // pred_check_branch
          %171 = sbr.rel (%p169) target = $region20
        $region19: #{tpu_custom_call.1} parent=11 // pred_region
          _
        $region20: #{tpu_custom_call.1} parent=11 // pred_fallthru
          _
      $region12: #{tpu_custom_call.1} parent=5 // pred_fallthru
        _
      %p172 = scmp.lt.s32.totalorder %s21, 2
      // Predicated region
      $region21: #{tpu_custom_call.1} parent=5 // pred_check
        %p173 = pneg %p172
      $region22: #{tpu_custom_call.1} parent=5 // pred_check_branch
        %175 = sbr.rel (%p173) target = $region24
      $region23: #{tpu_custom_call.1} parent=5 // pred_region
        // Predicated region
        $region25: #{tpu_custom_call.1} parent=23 // pred_check
          %p176 = pneg %p41
        $region26: #{tpu_custom_call.1} parent=23 // pred_check_branch
          %178 = sbr.rel (%p176) target = $region28
        $region27: #{tpu_custom_call.1} parent=23 // pred_region
          %s179 = sand.u32 %s31, 1
          %s180 = scalar_lea.sflag [#allocation3], %s179
          %s181 = sand.u32 %s31, 1
          %s182 = smul.addr %s181, 768
          %s183 = scalar_lea.vmem [#allocation2], %s182
          %s184 = smul.u32 8, %s21
          %s186 = ssub.s32 12288, 12288
          %187 = vsyncadd %s180, %s186
          %s188 = smul.addr %s184, 12
          %s189 = smul.addr %s188, 128
          %s190 = scalar_lea.hbm %s0, %s189
          %s191 = sshll.u32 %s183, 4
          %s192 = int_to_ptr.vmem [resolvable:$true] %s191
          %197 = dma.hbm_to_vmem [thread:$0]  %s190, 12288, %s192, %s180, 256, 256, 16
        $region28: #{tpu_custom_call.1} parent=23 // pred_fallthru
          _
      $region24: #{tpu_custom_call.1} parent=5 // pred_fallthru
        _
      %p198 = scmp.le.s32.totalorder 1, %s21
      %p199 = scmp.lt.s32.totalorder %s21, 3
      %p200 = pnand %p198, %p199
      %p201 = pneg %p200
      // Predicated region
      $region29: #{tpu_custom_call.1} parent=5 // pred_check
        _
      $region30: #{tpu_custom_call.1} parent=5 // pred_check_branch
        %203 = sbr.rel (%p200) target = $region32
      $region31: #{tpu_custom_call.1} parent=5 // pred_region
        %s204 = ssub.s32 %s21, 1
        %s205 = sand.u32 %s34, 1
        %s206 = scalar_lea.sflag [#allocation3], %s205
        %s207 = sand.u32 %s34, 1
        %s208 = smul.addr %s207, 768
        %s209 = scalar_lea.vmem [#allocation2], %s208
        // Predicated region
        $region33: #{tpu_custom_call.1} parent=31 // pred_check
          %p210 = pneg %p47
        $region34: #{tpu_custom_call.1} parent=31 // pred_check_branch
          %212 = sbr.rel (%p210) target = $region36
        $region35: #{tpu_custom_call.1} parent=31 // pred_region
          %213 = dma.done %s206, 12288
        $region36: #{tpu_custom_call.1} parent=31 // pred_fallthru
          _
        // Predicated region
        $region37: #{tpu_custom_call.1} parent=31 // pred_check
          %p214 = pneg %p68
        $region38: #{tpu_custom_call.1} parent=31 // pred_check_branch
          %216 = sbr.rel (%p214) target = $region40
        $region39: #{tpu_custom_call.1} parent=31 // pred_region
          %217 = dma.done [#allocation6], 24576
        $region40: #{tpu_custom_call.1} parent=31 // pred_fallthru
          _
        %s218 = sand.u32 %s34, 1
        %s219 = scalar_lea.sflag [#allocation3], %s218
        %s220 = sand.u32 %s34, 1
        %s221 = smul.addr %s220, 768
        %s222 = scalar_lea.vmem [#allocation2], %s221
        %p223 = pneg %p47
        %p224 = pneg %p44
        %p225 = pneg %p68
        %p226 = pneg %p65
        %p227 = pneg %p89
        %p228 = pneg %p86
        %p229 = pneg %p115
        %p230 = pneg %p112
        %s231 = sand.u32 %s102, 1
        %s232 = scalar_lea.sflag [#allocation4], %s231
        %s233 = sand.u32 %s102, 1
        %s234 = smul.addr %s233, 16
        %s235 = scalar_lea.vmem [#allocation7], %s234
        %p236 = pneg %p141
        %p237 = pneg %p138
        %s238 = sand.u32 %s128, 1
        %s239 = scalar_lea.sflag [#allocation9], %s238
        %s240 = sand.u32 %s128, 1
        %s241 = smul.addr %s240, 96
        %s242 = scalar_lea.vmem [#allocation8], %s241
        %s243 = smul.u32 8, %s26
        %v244 = vld [vmem:[%s209] sm:$0xff]
        %v245 = vld [vmem:[%s209 + $0x8] sm:$0xff]
        %v246 = vld [vmem:[%s209 + $0x10] sm:$0xff]
        %v247 = vld [vmem:[%s209 + $0x18] sm:$0xff]
        %v248 = vld [vmem:[%s209 + $0x20] sm:$0xff]
        %v249 = vld [vmem:[%s209 + $0x28] sm:$0xff]
        %v250 = vld [vmem:[%s209 + $0x30] sm:$0xff]
        %v251 = vld [vmem:[%s209 + $0x38] sm:$0xff]
        %v252 = vld [vmem:[%s209 + $0x40] sm:$0xff]
        %v253 = vld [vmem:[%s209 + $0x48] sm:$0xff]
        %v254 = vld [vmem:[%s209 + $0x50] sm:$0xff]
        %v255 = vld [vmem:[%s209 + $0x58] sm:$0xff]
        %v256 = vld [vmem:[%s209 + $0x60] sm:$0xff]
        %v257 = vld [vmem:[%s209 + $0x68] sm:$0xff]
        %v258 = vld [vmem:[%s209 + $0x70] sm:$0xff]
        %v259 = vld [vmem:[%s209 + $0x78] sm:$0xff]
        %v260 = vld [vmem:[%s209 + $0x80] sm:$0xff]
        %v261 = vld [vmem:[%s209 + $0x88] sm:$0xff]
        %v262 = vld [vmem:[%s209 + $0x90] sm:$0xff]
        %v263 = vld [vmem:[%s209 + $0x98] sm:$0xff]
        %v264 = vld [vmem:[%s209 + $0xa0] sm:$0xff]
        %v265 = vld [vmem:[%s209 + $0xa8] sm:$0xff]
        %v266 = vld [vmem:[%s209 + $0xb0] sm:$0xff]
        %v267 = vld [vmem:[%s209 + $0xb8] sm:$0xff]
        %v268 = vld [vmem:[%s209 + $0xc0] sm:$0xff]
        %v269 = vld [vmem:[%s209 + $0xc8] sm:$0xff]
        %v270 = vld [vmem:[%s209 + $0xd0] sm:$0xff]
        %v271 = vld [vmem:[%s209 + $0xd8] sm:$0xff]
        %v272 = vld [vmem:[%s209 + $0xe0] sm:$0xff]
        %v273 = vld [vmem:[%s209 + $0xe8] sm:$0xff]
        %v274 = vld [vmem:[%s209 + $0xf0] sm:$0xff]
        %v275 = vld [vmem:[%s209 + $0xf8] sm:$0xff]
        %v276 = vld [vmem:[%s209 + $0x100] sm:$0xff]
        %v277 = vld [vmem:[%s209 + $0x108] sm:$0xff]
        %v278 = vld [vmem:[%s209 + $0x110] sm:$0xff]
        %v279 = vld [vmem:[%s209 + $0x118] sm:$0xff]
        %v280 = vld [vmem:[%s209 + $0x120] sm:$0xff]
        %v281 = vld [vmem:[%s209 + $0x128] sm:$0xff]
        %v282 = vld [vmem:[%s209 + $0x130] sm:$0xff]
        %v283 = vld [vmem:[%s209 + $0x138] sm:$0xff]
        %v284 = vld [vmem:[%s209 + $0x140] sm:$0xff]
        %v285 = vld [vmem:[%s209 + $0x148] sm:$0xff]
        %v286 = vld [vmem:[%s209 + $0x150] sm:$0xff]
        %v287 = vld [vmem:[%s209 + $0x158] sm:$0xff]
        %v288 = vld [vmem:[%s209 + $0x160] sm:$0xff]
        %v289 = vld [vmem:[%s209 + $0x168] sm:$0xff]
        %v290 = vld [vmem:[%s209 + $0x170] sm:$0xff]
        %v291 = vld [vmem:[%s209 + $0x178] sm:$0xff]
        %v292 = vld [vmem:[%s209 + $0x180] sm:$0xff]
        %v293 = vld [vmem:[%s209 + $0x188] sm:$0xff]
        %v294 = vld [vmem:[%s209 + $0x190] sm:$0xff]
        %v295 = vld [vmem:[%s209 + $0x198] sm:$0xff]
        %v296 = vld [vmem:[%s209 + $0x1a0] sm:$0xff]
        %v297 = vld [vmem:[%s209 + $0x1a8] sm:$0xff]
        %v298 = vld [vmem:[%s209 + $0x1b0] sm:$0xff]
        %v299 = vld [vmem:[%s209 + $0x1b8] sm:$0xff]
        %v300 = vld [vmem:[%s209 + $0x1c0] sm:$0xff]
        %v301 = vld [vmem:[%s209 + $0x1c8] sm:$0xff]
        %v302 = vld [vmem:[%s209 + $0x1d0] sm:$0xff]
        %v303 = vld [vmem:[%s209 + $0x1d8] sm:$0xff]
        %v304 = vld [vmem:[%s209 + $0x1e0] sm:$0xff]
        %v305 = vld [vmem:[%s209 + $0x1e8] sm:$0xff]
        %v306 = vld [vmem:[%s209 + $0x1f0] sm:$0xff]
        %v307 = vld [vmem:[%s209 + $0x1f8] sm:$0xff]
        %v308 = vld [vmem:[%s209 + $0x200] sm:$0xff]
        %v309 = vld [vmem:[%s209 + $0x208] sm:$0xff]
        %v310 = vld [vmem:[%s209 + $0x210] sm:$0xff]
        %v311 = vld [vmem:[%s209 + $0x218] sm:$0xff]
        %v312 = vld [vmem:[%s209 + $0x220] sm:$0xff]
        %v313 = vld [vmem:[%s209 + $0x228] sm:$0xff]
        %v314 = vld [vmem:[%s209 + $0x230] sm:$0xff]
        %v315 = vld [vmem:[%s209 + $0x238] sm:$0xff]
        %v316 = vld [vmem:[%s209 + $0x240] sm:$0xff]
        %v317 = vld [vmem:[%s209 + $0x248] sm:$0xff]
        %v318 = vld [vmem:[%s209 + $0x250] sm:$0xff]
        %v319 = vld [vmem:[%s209 + $0x258] sm:$0xff]
        %v320 = vld [vmem:[%s209 + $0x260] sm:$0xff]
        %v321 = vld [vmem:[%s209 + $0x268] sm:$0xff]
        %v322 = vld [vmem:[%s209 + $0x270] sm:$0xff]
        %v323 = vld [vmem:[%s209 + $0x278] sm:$0xff]
        %v324 = vld [vmem:[%s209 + $0x280] sm:$0xff]
        %v325 = vld [vmem:[%s209 + $0x288] sm:$0xff]
        %v326 = vld [vmem:[%s209 + $0x290] sm:$0xff]
        %v327 = vld [vmem:[%s209 + $0x298] sm:$0xff]
        %v328 = vld [vmem:[%s209 + $0x2a0] sm:$0xff]
        %v329 = vld [vmem:[%s209 + $0x2a8] sm:$0xff]
        %v330 = vld [vmem:[%s209 + $0x2b0] sm:$0xff]
        %v331 = vld [vmem:[%s209 + $0x2b8] sm:$0xff]
        %v332 = vld [vmem:[%s209 + $0x2c0] sm:$0xff]
        %v333 = vld [vmem:[%s209 + $0x2c8] sm:$0xff]
        %v334 = vld [vmem:[%s209 + $0x2d0] sm:$0xff]
        %v335 = vld [vmem:[%s209 + $0x2d8] sm:$0xff]
        %v336 = vld [vmem:[%s209 + $0x2e0] sm:$0xff]
        %v337 = vld [vmem:[%s209 + $0x2e8] sm:$0xff]
        %v338 = vld [vmem:[%s209 + $0x2f0] sm:$0xff]
        %v339 = vld [vmem:[%s209 + $0x2f8] sm:$0xff]
        %v340 = vmax.f32 %v244, 1e-06
        %v341 = vmax.f32 %v245, 1e-06
        %v342 = vmax.f32 %v246, 1e-06
        %v343 = vmax.f32 %v247, 1e-06
        %v344 = vmax.f32 %v248, 1e-06
        %v345 = vmax.f32 %v249, 1e-06
        %v346 = vmax.f32 %v250, 1e-06
        %v347 = vmax.f32 %v251, 1e-06
        %v348 = vmax.f32 %v252, 1e-06
        %v349 = vmax.f32 %v253, 1e-06
        %v350 = vmax.f32 %v254, 1e-06
        %v351 = vmax.f32 %v255, 1e-06
        %v352 = vmax.f32 %v256, 1e-06
        %v353 = vmax.f32 %v257, 1e-06
        %v354 = vmax.f32 %v258, 1e-06
        %v355 = vmax.f32 %v259, 1e-06
        %v356 = vmax.f32 %v260, 1e-06
        %v357 = vmax.f32 %v261, 1e-06
        %v358 = vmax.f32 %v262, 1e-06
        %v359 = vmax.f32 %v263, 1e-06
        %v360 = vmax.f32 %v264, 1e-06
        %v361 = vmax.f32 %v265, 1e-06
        %v362 = vmax.f32 %v266, 1e-06
        %v363 = vmax.f32 %v267, 1e-06
        %v364 = vmax.f32 %v268, 1e-06
        %v365 = vmax.f32 %v269, 1e-06
        %v366 = vmax.f32 %v270, 1e-06
        %v367 = vmax.f32 %v271, 1e-06
        %v368 = vmax.f32 %v272, 1e-06
        %v369 = vmax.f32 %v273, 1e-06
        %v370 = vmax.f32 %v274, 1e-06
        %v371 = vmax.f32 %v275, 1e-06
        %v372 = vmax.f32 %v276, 1e-06
        %v373 = vmax.f32 %v277, 1e-06
        %v374 = vmax.f32 %v278, 1e-06
        %v375 = vmax.f32 %v279, 1e-06
        %v376 = vmax.f32 %v280, 1e-06
        %v377 = vmax.f32 %v281, 1e-06
        %v378 = vmax.f32 %v282, 1e-06
        %v379 = vmax.f32 %v283, 1e-06
        %v380 = vmax.f32 %v284, 1e-06
        %v381 = vmax.f32 %v285, 1e-06
        %v382 = vmax.f32 %v286, 1e-06
        %v383 = vmax.f32 %v287, 1e-06
        %v384 = vmax.f32 %v288, 1e-06
        %v385 = vmax.f32 %v289, 1e-06
        %v386 = vmax.f32 %v290, 1e-06
        %v387 = vmax.f32 %v291, 1e-06
        %v388 = vmax.f32 %v292, 1e-06
        %v389 = vmax.f32 %v293, 1e-06
        %v390 = vmax.f32 %v294, 1e-06
        %v391 = vmax.f32 %v295, 1e-06
        %v392 = vmax.f32 %v296, 1e-06
        %v393 = vmax.f32 %v297, 1e-06
        %v394 = vmax.f32 %v298, 1e-06
        %v395 = vmax.f32 %v299, 1e-06
        %v396 = vmax.f32 %v300, 1e-06
        %v397 = vmax.f32 %v301, 1e-06
        %v398 = vmax.f32 %v302, 1e-06
        %v399 = vmax.f32 %v303, 1e-06
        %v400 = vmax.f32 %v304, 1e-06
        %v401 = vmax.f32 %v305, 1e-06
        %v402 = vmax.f32 %v306, 1e-06
        %v403 = vmax.f32 %v307, 1e-06
        %v404 = vmax.f32 %v308, 1e-06
        %v405 = vmax.f32 %v309, 1e-06
        %v406 = vmax.f32 %v310, 1e-06
        %v407 = vmax.f32 %v311, 1e-06
        %v408 = vmax.f32 %v312, 1e-06
        %v409 = vmax.f32 %v313, 1e-06
        %v410 = vmax.f32 %v314, 1e-06
        %v411 = vmax.f32 %v315, 1e-06
        %v412 = vmax.f32 %v316, 1e-06
        %v413 = vmax.f32 %v317, 1e-06
        %v414 = vmax.f32 %v318, 1e-06
        %v415 = vmax.f32 %v319, 1e-06
        %v416 = vmax.f32 %v320, 1e-06
        %v417 = vmax.f32 %v321, 1e-06
        %v418 = vmax.f32 %v322, 1e-06
        %v419 = vmax.f32 %v323, 1e-06
        %v420 = vmax.f32 %v324, 1e-06
        %v421 = vmax.f32 %v325, 1e-06
        %v422 = vmax.f32 %v326, 1e-06
        %v423 = vmax.f32 %v327, 1e-06
        %v424 = vmax.f32 %v328, 1e-06
        %v425 = vmax.f32 %v329, 1e-06
        %v426 = vmax.f32 %v330, 1e-06
        %v427 = vmax.f32 %v331, 1e-06
        %v428 = vmax.f32 %v332, 1e-06
        %v429 = vmax.f32 %v333, 1e-06
        %v430 = vmax.f32 %v334, 1e-06
        %v431 = vmax.f32 %v335, 1e-06
        %v432 = vmax.f32 %v336, 1e-06
        %v433 = vmax.f32 %v337, 1e-06
        %v434 = vmax.f32 %v338, 1e-06
        %v435 = vmax.f32 %v339, 1e-06
        %v436 = vmul.f32 %v340, %v340
        %v437 = vmul.f32 %v341, %v341
        %v438 = vmul.f32 %v342, %v342
        %v439 = vmul.f32 %v343, %v343
        %v440 = vmul.f32 %v344, %v344
        %v441 = vmul.f32 %v345, %v345
        %v442 = vmul.f32 %v346, %v346
        %v443 = vmul.f32 %v347, %v347
        %v444 = vmul.f32 %v348, %v348
        %v445 = vmul.f32 %v349, %v349
        %v446 = vmul.f32 %v350, %v350
        %v447 = vmul.f32 %v351, %v351
        %v448 = vmul.f32 %v352, %v352
        %v449 = vmul.f32 %v353, %v353
        %v450 = vmul.f32 %v354, %v354
        %v451 = vmul.f32 %v355, %v355
        %v452 = vmul.f32 %v356, %v356
        %v453 = vmul.f32 %v357, %v357
        %v454 = vmul.f32 %v358, %v358
        %v455 = vmul.f32 %v359, %v359
        %v456 = vmul.f32 %v360, %v360
        %v457 = vmul.f32 %v361, %v361
        %v458 = vmul.f32 %v362, %v362
        %v459 = vmul.f32 %v363, %v363
        %v460 = vmul.f32 %v364, %v364
        %v461 = vmul.f32 %v365, %v365
        %v462 = vmul.f32 %v366, %v366
        %v463 = vmul.f32 %v367, %v367
        %v464 = vmul.f32 %v368, %v368
        %v465 = vmul.f32 %v369, %v369
        %v466 = vmul.f32 %v370, %v370
        %v467 = vmul.f32 %v371, %v371
        %v468 = vmul.f32 %v372, %v372
        %v469 = vmul.f32 %v373, %v373
        %v470 = vmul.f32 %v374, %v374
        %v471 = vmul.f32 %v375, %v375
        %v472 = vmul.f32 %v376, %v376
        %v473 = vmul.f32 %v377, %v377
        %v474 = vmul.f32 %v378, %v378
        %v475 = vmul.f32 %v379, %v379
        %v476 = vmul.f32 %v380, %v380
        %v477 = vmul.f32 %v381, %v381
        %v478 = vmul.f32 %v382, %v382
        %v479 = vmul.f32 %v383, %v383
        %v480 = vmul.f32 %v384, %v384
        %v481 = vmul.f32 %v385, %v385
        %v482 = vmul.f32 %v386, %v386
        %v483 = vmul.f32 %v387, %v387
        %v484 = vmul.f32 %v388, %v388
        %v485 = vmul.f32 %v389, %v389
        %v486 = vmul.f32 %v390, %v390
        %v487 = vmul.f32 %v391, %v391
        %v488 = vmul.f32 %v392, %v392
        %v489 = vmul.f32 %v393, %v393
        %v490 = vmul.f32 %v394, %v394
        %v491 = vmul.f32 %v395, %v395
        %v492 = vmul.f32 %v396, %v396
        %v493 = vmul.f32 %v397, %v397
        %v494 = vmul.f32 %v398, %v398
        %v495 = vmul.f32 %v399, %v399
        %v496 = vmul.f32 %v400, %v400
        %v497 = vmul.f32 %v401, %v401
        %v498 = vmul.f32 %v402, %v402
        %v499 = vmul.f32 %v403, %v403
        %v500 = vmul.f32 %v404, %v404
        %v501 = vmul.f32 %v405, %v405
        %v502 = vmul.f32 %v406, %v406
        %v503 = vmul.f32 %v407, %v407
        %v504 = vmul.f32 %v408, %v408
        %v505 = vmul.f32 %v409, %v409
        %v506 = vmul.f32 %v410, %v410
        %v507 = vmul.f32 %v411, %v411
        %v508 = vmul.f32 %v412, %v412
        %v509 = vmul.f32 %v413, %v413
        %v510 = vmul.f32 %v414, %v414
        %v511 = vmul.f32 %v415, %v415
        %v512 = vmul.f32 %v416, %v416
        %v513 = vmul.f32 %v417, %v417
        %v514 = vmul.f32 %v418, %v418
        %v515 = vmul.f32 %v419, %v419
        %v516 = vmul.f32 %v420, %v420
        %v517 = vmul.f32 %v421, %v421
        %v518 = vmul.f32 %v422, %v422
        %v519 = vmul.f32 %v423, %v423
        %v520 = vmul.f32 %v424, %v424
        %v521 = vmul.f32 %v425, %v425
        %v522 = vmul.f32 %v426, %v426
        %v523 = vmul.f32 %v427, %v427
        %v524 = vmul.f32 %v428, %v428
        %v525 = vmul.f32 %v429, %v429
        %v526 = vmul.f32 %v430, %v430
        %v527 = vmul.f32 %v431, %v431
        %v528 = vmul.f32 %v432, %v432
        %v529 = vmul.f32 %v433, %v433
        %v530 = vmul.f32 %v434, %v434
        %v531 = vmul.f32 %v435, %v435
        %v532 = vmul.f32 %v436, %v340
        %v533 = vmul.f32 %v437, %v341
        %v534 = vmul.f32 %v438, %v342
        %v535 = vmul.f32 %v439, %v343
        %v536 = vmul.f32 %v440, %v344
        %v537 = vmul.f32 %v441, %v345
        %v538 = vmul.f32 %v442, %v346
        %v539 = vmul.f32 %v443, %v347
        %v540 = vmul.f32 %v444, %v348
        %v541 = vmul.f32 %v445, %v349
        %v542 = vmul.f32 %v446, %v350
        %v543 = vmul.f32 %v447, %v351
        %v544 = vmul.f32 %v448, %v352
        %v545 = vmul.f32 %v449, %v353
        %v546 = vmul.f32 %v450, %v354
        %v547 = vmul.f32 %v451, %v355
        %v548 = vmul.f32 %v452, %v356
        %v549 = vmul.f32 %v453, %v357
        %v550 = vmul.f32 %v454, %v358
        %v551 = vmul.f32 %v455, %v359
        %v552 = vmul.f32 %v456, %v360
        %v553 = vmul.f32 %v457, %v361
        %v554 = vmul.f32 %v458, %v362
        %v555 = vmul.f32 %v459, %v363
        %v556 = vmul.f32 %v460, %v364
        %v557 = vmul.f32 %v461, %v365
        %v558 = vmul.f32 %v462, %v366
        %v559 = vmul.f32 %v463, %v367
        %v560 = vmul.f32 %v464, %v368
        %v561 = vmul.f32 %v465, %v369
        %v562 = vmul.f32 %v466, %v370
        %v563 = vmul.f32 %v467, %v371
        %v564 = vmul.f32 %v468, %v372
        %v565 = vmul.f32 %v469, %v373
        %v566 = vmul.f32 %v470, %v374
        %v567 = vmul.f32 %v471, %v375
        %v568 = vmul.f32 %v472, %v376
        %v569 = vmul.f32 %v473, %v377
        %v570 = vmul.f32 %v474, %v378
        %v571 = vmul.f32 %v475, %v379
        %v572 = vmul.f32 %v476, %v380
        %v573 = vmul.f32 %v477, %v381
        %v574 = vmul.f32 %v478, %v382
        %v575 = vmul.f32 %v479, %v383
        %v576 = vmul.f32 %v480, %v384
        %v577 = vmul.f32 %v481, %v385
        %v578 = vmul.f32 %v482, %v386
        %v579 = vmul.f32 %v483, %v387
        %v580 = vmul.f32 %v484, %v388
        %v581 = vmul.f32 %v485, %v389
        %v582 = vmul.f32 %v486, %v390
        %v583 = vmul.f32 %v487, %v391
        %v584 = vmul.f32 %v488, %v392
        %v585 = vmul.f32 %v489, %v393
        %v586 = vmul.f32 %v490, %v394
        %v587 = vmul.f32 %v491, %v395
        %v588 = vmul.f32 %v492, %v396
        %v589 = vmul.f32 %v493, %v397
        %v590 = vmul.f32 %v494, %v398
        %v591 = vmul.f32 %v495, %v399
        %v592 = vmul.f32 %v496, %v400
        %v593 = vmul.f32 %v497, %v401
        %v594 = vmul.f32 %v498, %v402
        %v595 = vmul.f32 %v499, %v403
        %v596 = vmul.f32 %v500, %v404
        %v597 = vmul.f32 %v501, %v405
        %v598 = vmul.f32 %v502, %v406
        %v599 = vmul.f32 %v503, %v407
        %v600 = vmul.f32 %v504, %v408
        %v601 = vmul.f32 %v505, %v409
        %v602 = vmul.f32 %v506, %v410
        %v603 = vmul.f32 %v507, %v411
        %v604 = vmul.f32 %v508, %v412
        %v605 = vmul.f32 %v509, %v413
        %v606 = vmul.f32 %v510, %v414
        %v607 = vmul.f32 %v511, %v415
        %v608 = vmul.f32 %v512, %v416
        %v609 = vmul.f32 %v513, %v417
        %v610 = vmul.f32 %v514, %v418
        %v611 = vmul.f32 %v515, %v419
        %v612 = vmul.f32 %v516, %v420
        %v613 = vmul.f32 %v517, %v421
        %v614 = vmul.f32 %v518, %v422
        %v615 = vmul.f32 %v519, %v423
        %v616 = vmul.f32 %v520, %v424
        %v617 = vmul.f32 %v521, %v425
        %v618 = vmul.f32 %v522, %v426
        %v619 = vmul.f32 %v523, %v427
        %v620 = vmul.f32 %v524, %v428
        %v621 = vmul.f32 %v525, %v429
        %v622 = vmul.f32 %v526, %v430
        %v623 = vmul.f32 %v527, %v431
        %v624 = vmul.f32 %v528, %v432
        %v625 = vmul.f32 %v529, %v433
        %v626 = vmul.f32 %v530, %v434
        %v627 = vmul.f32 %v531, %v435
        %v628 = vadd.f32 %v532, %v534
        %v629 = vadd.f32 %v628, %v536
        %v630 = vadd.f32 %v629, %v538
        %v631 = vadd.f32 %v630, %v540
        %v632 = vadd.f32 %v631, %v542
        %v633 = vrot.slane %v632, 4
        %v634 = vadd.f32 %v632, %v633
        %v635 = vrot.slane %v634, 2
        %v636 = vadd.f32 %v634, %v635
        %v637 = vrot.slane %v636, 1
        %v638 = vadd.f32 %v636, %v637
        %v639 = vadd.f32 %v533, %v535
        %v640 = vadd.f32 %v639, %v537
        %v641 = vadd.f32 %v640, %v539
        %v642 = vadd.f32 %v641, %v541
        %v643 = vadd.f32 %v642, %v543
        %v644 = vrot.slane %v643, 4
        %v645 = vadd.f32 %v643, %v644
        %v646 = vrot.slane %v645, 2
        %v647 = vadd.f32 %v645, %v646
        %v648 = vrot.slane %v647, 1
        %v649 = vadd.f32 %v647, %v648
        %v650 = vadd.f32 %v544, %v546
        %v651 = vadd.f32 %v650, %v548
        %v652 = vadd.f32 %v651, %v550
        %v653 = vadd.f32 %v652, %v552
        %v654 = vadd.f32 %v653, %v554
        %v655 = vrot.slane %v654, 4
        %v656 = vadd.f32 %v654, %v655
        %v657 = vrot.slane %v656, 2
        %v658 = vadd.f32 %v656, %v657
        %v659 = vrot.slane %v658, 1
        %v660 = vadd.f32 %v658, %v659
        %v661 = vadd.f32 %v545, %v547
        %v662 = vadd.f32 %v661, %v549
        %v663 = vadd.f32 %v662, %v551
        %v664 = vadd.f32 %v663, %v553
        %v665 = vadd.f32 %v664, %v555
        %v666 = vrot.slane %v665, 4
        %v667 = vadd.f32 %v665, %v666
        %v668 = vrot.slane %v667, 2
        %v669 = vadd.f32 %v667, %v668
        %v670 = vrot.slane %v669, 1
        %v671 = vadd.f32 %v669, %v670
        %v672 = vadd.f32 %v556, %v558
        %v673 = vadd.f32 %v672, %v560
        %v674 = vadd.f32 %v673, %v562
        %v675 = vadd.f32 %v674, %v564
        %v676 = vadd.f32 %v675, %v566
        %v677 = vrot.slane %v676, 4
        %v678 = vadd.f32 %v676, %v677
        %v679 = vrot.slane %v678, 2
        %v680 = vadd.f32 %v678, %v679
        %v681 = vrot.slane %v680, 1
        %v682 = vadd.f32 %v680, %v681
        %v683 = vadd.f32 %v557, %v559
        %v684 = vadd.f32 %v683, %v561
        %v685 = vadd.f32 %v684, %v563
        %v686 = vadd.f32 %v685, %v565
        %v687 = vadd.f32 %v686, %v567
        %v688 = vrot.slane %v687, 4
        %v689 = vadd.f32 %v687, %v688
        %v690 = vrot.slane %v689, 2
        %v691 = vadd.f32 %v689, %v690
        %v692 = vrot.slane %v691, 1
        %v693 = vadd.f32 %v691, %v692
        %v694 = vadd.f32 %v568, %v570
        %v695 = vadd.f32 %v694, %v572
        %v696 = vadd.f32 %v695, %v574
        %v697 = vadd.f32 %v696, %v576
        %v698 = vadd.f32 %v697, %v578
        %v699 = vrot.slane %v698, 4
        %v700 = vadd.f32 %v698, %v699
        %v701 = vrot.slane %v700, 2
        %v702 = vadd.f32 %v700, %v701
        %v703 = vrot.slane %v702, 1
        %v704 = vadd.f32 %v702, %v703
        %v705 = vadd.f32 %v569, %v571
        %v706 = vadd.f32 %v705, %v573
        %v707 = vadd.f32 %v706, %v575
        %v708 = vadd.f32 %v707, %v577
        %v709 = vadd.f32 %v708, %v579
        %v710 = vrot.slane %v709, 4
        %v711 = vadd.f32 %v709, %v710
        %v712 = vrot.slane %v711, 2
        %v713 = vadd.f32 %v711, %v712
        %v714 = vrot.slane %v713, 1
        %v715 = vadd.f32 %v713, %v714
        %v716 = vadd.f32 %v580, %v582
        %v717 = vadd.f32 %v716, %v584
        %v718 = vadd.f32 %v717, %v586
        %v719 = vadd.f32 %v718, %v588
        %v720 = vadd.f32 %v719, %v590
        %v721 = vrot.slane %v720, 4
        %v722 = vadd.f32 %v720, %v721
        %v723 = vrot.slane %v722, 2
        %v724 = vadd.f32 %v722, %v723
        %v725 = vrot.slane %v724, 1
        %v726 = vadd.f32 %v724, %v725
        %v727 = vadd.f32 %v581, %v583
        %v728 = vadd.f32 %v727, %v585
        %v729 = vadd.f32 %v728, %v587
        %v730 = vadd.f32 %v729, %v589
        %v731 = vadd.f32 %v730, %v591
        %v732 = vrot.slane %v731, 4
        %v733 = vadd.f32 %v731, %v732
        %v734 = vrot.slane %v733, 2
        %v735 = vadd.f32 %v733, %v734
        %v736 = vrot.slane %v735, 1
        %v737 = vadd.f32 %v735, %v736
        %v738 = vadd.f32 %v592, %v594
        %v739 = vadd.f32 %v738, %v596
        %v740 = vadd.f32 %v739, %v598
        %v741 = vadd.f32 %v740, %v600
        %v742 = vadd.f32 %v741, %v602
        %v743 = vrot.slane %v742, 4
        %v744 = vadd.f32 %v742, %v743
        %v745 = vrot.slane %v744, 2
        %v746 = vadd.f32 %v744, %v745
        %v747 = vrot.slane %v746, 1
        %v748 = vadd.f32 %v746, %v747
        %v749 = vadd.f32 %v593, %v595
        %v750 = vadd.f32 %v749, %v597
        %v751 = vadd.f32 %v750, %v599
        %v752 = vadd.f32 %v751, %v601
        %v753 = vadd.f32 %v752, %v603
        %v754 = vrot.slane %v753, 4
        %v755 = vadd.f32 %v753, %v754
        %v756 = vrot.slane %v755, 2
        %v757 = vadd.f32 %v755, %v756
        %v758 = vrot.slane %v757, 1
        %v759 = vadd.f32 %v757, %v758
        %v760 = vadd.f32 %v604, %v606
        %v761 = vadd.f32 %v760, %v608
        %v762 = vadd.f32 %v761, %v610
        %v763 = vadd.f32 %v762, %v612
        %v764 = vadd.f32 %v763, %v614
        %v765 = vrot.slane %v764, 4
        %v766 = vadd.f32 %v764, %v765
        %v767 = vrot.slane %v766, 2
        %v768 = vadd.f32 %v766, %v767
        %v769 = vrot.slane %v768, 1
        %v770 = vadd.f32 %v768, %v769
        %v771 = vadd.f32 %v605, %v607
        %v772 = vadd.f32 %v771, %v609
        %v773 = vadd.f32 %v772, %v611
        %v774 = vadd.f32 %v773, %v613
        %v775 = vadd.f32 %v774, %v615
        %v776 = vrot.slane %v775, 4
        %v777 = vadd.f32 %v775, %v776
        %v778 = vrot.slane %v777, 2
        %v779 = vadd.f32 %v777, %v778
        %v780 = vrot.slane %v779, 1
        %v781 = vadd.f32 %v779, %v780
        %v782 = vadd.f32 %v616, %v618
        %v783 = vadd.f32 %v782, %v620
        %v784 = vadd.f32 %v783, %v622
        %v785 = vadd.f32 %v784, %v624
        %v786 = vadd.f32 %v785, %v626
        %v787 = vrot.slane %v786, 4
        %v788 = vadd.f32 %v786, %v787
        %v789 = vrot.slane %v788, 2
        %v790 = vadd.f32 %v788, %v789
        %v791 = vrot.slane %v790, 1
        %v792 = vadd.f32 %v790, %v791
        %v793 = vadd.f32 %v617, %v619
        %v794 = vadd.f32 %v793, %v621
        %v795 = vadd.f32 %v794, %v623
        %v796 = vadd.f32 %v795, %v625
        %v797 = vadd.f32 %v796, %v627
        %v798 = vrot.slane %v797, 4
        %v799 = vadd.f32 %v797, %v798
        %v800 = vrot.slane %v799, 2
        %v801 = vadd.f32 %v799, %v800
        %v802 = vrot.slane %v801, 1
        %v803 = vadd.f32 %v801, %v802
        %v804 = vrcp.pop 48.0
        %v805 = vmul.f32 %v638, %v804
        %v806 = vmul.f32 %v649, %v804
        %v807 = vmul.f32 %v660, %v804
        %v808 = vmul.f32 %v671, %v804
        %v809 = vmul.f32 %v682, %v804
        %v810 = vmul.f32 %v693, %v804
        %v811 = vmul.f32 %v704, %v804
        %v812 = vmul.f32 %v715, %v804
        %v813 = vmul.f32 %v726, %v804
        %v814 = vmul.f32 %v737, %v804
        %v815 = vmul.f32 %v748, %v804
        %v816 = vmul.f32 %v759, %v804
        %v817 = vmul.f32 %v770, %v804
        %v818 = vmul.f32 %v781, %v804
        %v819 = vmul.f32 %v792, %v804
        %v820 = vmul.f32 %v803, %v804
        %v821 = vlog2.pop %v805
        %v822 = vmul.f32 %v821, 0.6931472
        %v823 = vlog2.pop %v806
        %v824 = vmul.f32 %v823, 0.6931472
        %v825 = vlog2.pop %v807
        %v826 = vmul.f32 %v825, 0.6931472
        %v827 = vlog2.pop %v808
        %v828 = vmul.f32 %v827, 0.6931472
        %v829 = vlog2.pop %v809
        %v830 = vmul.f32 %v829, 0.6931472
        %v831 = vlog2.pop %v810
        %v832 = vmul.f32 %v831, 0.6931472
        %v833 = vlog2.pop %v811
        %v834 = vmul.f32 %v833, 0.6931472
        %v835 = vlog2.pop %v812
        %v836 = vmul.f32 %v835, 0.6931472
        %v837 = vlog2.pop %v813
        %v838 = vmul.f32 %v837, 0.6931472
        %v839 = vlog2.pop %v814
        %v840 = vmul.f32 %v839, 0.6931472
        %v841 = vlog2.pop %v815
        %v842 = vmul.f32 %v841, 0.6931472
        %v843 = vlog2.pop %v816
        %v844 = vmul.f32 %v843, 0.6931472
        %v845 = vlog2.pop %v817
        %v846 = vmul.f32 %v845, 0.6931472
        %v847 = vlog2.pop %v818
        %v848 = vmul.f32 %v847, 0.6931472
        %v849 = vlog2.pop %v819
        %v850 = vmul.f32 %v849, 0.6931472
        %v851 = vlog2.pop %v820
        %v852 = vmul.f32 %v851, 0.6931472
        %v853 = vmul.f32 %v822, 0.33333334
        %v854 = vmul.f32 %v824, 0.33333334
        %v855 = vmul.f32 %v826, 0.33333334
        %v856 = vmul.f32 %v828, 0.33333334
        %v857 = vmul.f32 %v830, 0.33333334
        %v858 = vmul.f32 %v832, 0.33333334
        %v859 = vmul.f32 %v834, 0.33333334
        %v860 = vmul.f32 %v836, 0.33333334
        %v861 = vmul.f32 %v838, 0.33333334
        %v862 = vmul.f32 %v840, 0.33333334
        %v863 = vmul.f32 %v842, 0.33333334
        %v864 = vmul.f32 %v844, 0.33333334
        %v865 = vmul.f32 %v846, 0.33333334
        %v866 = vmul.f32 %v848, 0.33333334
        %v867 = vmul.f32 %v850, 0.33333334
        %v868 = vmul.f32 %v852, 0.33333334
        %v869 = vadd.f32 %v853, -4.999975e-06
        %v870 = vadd.f32 %v854, -4.999975e-06
        %v871 = vadd.f32 %v855, -4.999975e-06
        %v872 = vadd.f32 %v856, -4.999975e-06
        %v873 = vadd.f32 %v857, -4.999975e-06
        %v874 = vadd.f32 %v858, -4.999975e-06
        %v875 = vadd.f32 %v859, -4.999975e-06
        %v876 = vadd.f32 %v860, -4.999975e-06
        %v877 = vadd.f32 %v861, -4.999975e-06
        %v878 = vadd.f32 %v862, -4.999975e-06
        %v879 = vadd.f32 %v863, -4.999975e-06
        %v880 = vadd.f32 %v864, -4.999975e-06
        %v881 = vadd.f32 %v865, -4.999975e-06
        %v882 = vadd.f32 %v866, -4.999975e-06
        %v883 = vadd.f32 %v867, -4.999975e-06
        %v884 = vadd.f32 %v868, -4.999975e-06
        %v885 = vmul.f32 %v869, 1.442695
        %v886 = vpow.pop %v885
        %v887 = vmul.f32 %v870, 1.442695
        %v888 = vpow.pop %v887
        %v889 = vmul.f32 %v871, 1.442695
        %v890 = vpow.pop %v889
        %v891 = vmul.f32 %v872, 1.442695
        %v892 = vpow.pop %v891
        %v893 = vmul.f32 %v873, 1.442695
        %v894 = vpow.pop %v893
        %v895 = vmul.f32 %v874, 1.442695
        %v896 = vpow.pop %v895
        %v897 = vmul.f32 %v875, 1.442695
        %v898 = vpow.pop %v897
        %v899 = vmul.f32 %v876, 1.442695
        %v900 = vpow.pop %v899
        %v901 = vmul.f32 %v877, 1.442695
        %v902 = vpow.pop %v901
        %v903 = vmul.f32 %v878, 1.442695
        %v904 = vpow.pop %v903
        %v905 = vmul.f32 %v879, 1.442695
        %v906 = vpow.pop %v905
        %v907 = vmul.f32 %v880, 1.442695
        %v908 = vpow.pop %v907
        %v909 = vmul.f32 %v881, 1.442695
        %v910 = vpow.pop %v909
        %v911 = vmul.f32 %v882, 1.442695
        %v912 = vpow.pop %v911
        %v913 = vmul.f32 %v883, 1.442695
        %v914 = vpow.pop %v913
        %v915 = vmul.f32 %v884, 1.442695
        %v916 = vpow.pop %v915
        %vm933 = vcmask 1041409
        %v934 = vsel %vm933, %v890, %v886
        %vm935 = vcmask 1042434
        %v936 = vsel %vm935, %v894, %v934
        %vm937 = vcmask 1043459
        %v938 = vsel %vm937, %v898, %v936
        %vm939 = vcmask 1044484
        %v940 = vsel %vm939, %v902, %v938
        %vm941 = vcmask 1045509
        %v942 = vsel %vm941, %v906, %v940
        %vm943 = vcmask 1046534
        %v944 = vsel %vm943, %v910, %v942
        %vm945 = vcmask 1047559
        %v946 = vsel %vm945, %v914, %v944
        %v947 = vsel %vm933, %v892, %v888
        %v948 = vsel %vm935, %v896, %v947
        %v949 = vsel %vm937, %v900, %v948
        %v950 = vsel %vm939, %v904, %v949
        %v951 = vsel %vm941, %v908, %v950
        %v952 = vsel %vm943, %v912, %v951
        %v953 = vsel %vm945, %v916, %v952
        %956 = vst [vmem:[%s235] sm:$0xff] %v946
        %957 = vst [vmem:[%s235 + $0x8] sm:$0xff] %v953
        %v958 = vrot.slane %v244, 4
        %v959 = vadd.f32 %v244, %v958
        %v960 = vrot.slane %v959, 2
        %v961 = vadd.f32 %v959, %v960
        %v962 = vrot.slane %v961, 1
        %v963 = vadd.f32 %v961, %v962
        %v964 = vrot.slane %v245, 4
        %v965 = vadd.f32 %v245, %v964
        %v966 = vrot.slane %v965, 2
        %v967 = vadd.f32 %v965, %v966
        %v968 = vrot.slane %v967, 1
        %v969 = vadd.f32 %v967, %v968
        %v970 = vrot.slane %v256, 4
        %v971 = vadd.f32 %v256, %v970
        %v972 = vrot.slane %v971, 2
        %v973 = vadd.f32 %v971, %v972
        %v974 = vrot.slane %v973, 1
        %v975 = vadd.f32 %v973, %v974
        %v976 = vrot.slane %v257, 4
        %v977 = vadd.f32 %v257, %v976
        %v978 = vrot.slane %v977, 2
        %v979 = vadd.f32 %v977, %v978
        %v980 = vrot.slane %v979, 1
        %v981 = vadd.f32 %v979, %v980
        %v982 = vrot.slane %v268, 4
        %v983 = vadd.f32 %v268, %v982
        %v984 = vrot.slane %v983, 2
        %v985 = vadd.f32 %v983, %v984
        %v986 = vrot.slane %v985, 1
        %v987 = vadd.f32 %v985, %v986
        %v988 = vrot.slane %v269, 4
        %v989 = vadd.f32 %v269, %v988
        %v990 = vrot.slane %v989, 2
        %v991 = vadd.f32 %v989, %v990
        %v992 = vrot.slane %v991, 1
        %v993 = vadd.f32 %v991, %v992
        %v994 = vrot.slane %v280, 4
        %v995 = vadd.f32 %v280, %v994
        %v996 = vrot.slane %v995, 2
        %v997 = vadd.f32 %v995, %v996
        %v998 = vrot.slane %v997, 1
        %v999 = vadd.f32 %v997, %v998
        %v1000 = vrot.slane %v281, 4
        %v1001 = vadd.f32 %v281, %v1000
        %v1002 = vrot.slane %v1001, 2
        %v1003 = vadd.f32 %v1001, %v1002
        %v1004 = vrot.slane %v1003, 1
        %v1005 = vadd.f32 %v1003, %v1004
        %v1006 = vrot.slane %v292, 4
        %v1007 = vadd.f32 %v292, %v1006
        %v1008 = vrot.slane %v1007, 2
        %v1009 = vadd.f32 %v1007, %v1008
        %v1010 = vrot.slane %v1009, 1
        %v1011 = vadd.f32 %v1009, %v1010
        %v1012 = vrot.slane %v293, 4
        %v1013 = vadd.f32 %v293, %v1012
        %v1014 = vrot.slane %v1013, 2
        %v1015 = vadd.f32 %v1013, %v1014
        %v1016 = vrot.slane %v1015, 1
        %v1017 = vadd.f32 %v1015, %v1016
        %v1018 = vrot.slane %v304, 4
        %v1019 = vadd.f32 %v304, %v1018
        %v1020 = vrot.slane %v1019, 2
        %v1021 = vadd.f32 %v1019, %v1020
        %v1022 = vrot.slane %v1021, 1
        %v1023 = vadd.f32 %v1021, %v1022
        %v1024 = vrot.slane %v305, 4
        %v1025 = vadd.f32 %v305, %v1024
        %v1026 = vrot.slane %v1025, 2
        %v1027 = vadd.f32 %v1025, %v1026
        %v1028 = vrot.slane %v1027, 1
        %v1029 = vadd.f32 %v1027, %v1028
        %v1030 = vrot.slane %v316, 4
        %v1031 = vadd.f32 %v316, %v1030
        %v1032 = vrot.slane %v1031, 2
        %v1033 = vadd.f32 %v1031, %v1032
        %v1034 = vrot.slane %v1033, 1
        %v1035 = vadd.f32 %v1033, %v1034
        %v1036 = vrot.slane %v317, 4
        %v1037 = vadd.f32 %v317, %v1036
        %v1038 = vrot.slane %v1037, 2
        %v1039 = vadd.f32 %v1037, %v1038
        %v1040 = vrot.slane %v1039, 1
        %v1041 = vadd.f32 %v1039, %v1040
        %v1042 = vrot.slane %v328, 4
        %v1043 = vadd.f32 %v328, %v1042
        %v1044 = vrot.slane %v1043, 2
        %v1045 = vadd.f32 %v1043, %v1044
        %v1046 = vrot.slane %v1045, 1
        %v1047 = vadd.f32 %v1045, %v1046
        %v1048 = vrot.slane %v329, 4
        %v1049 = vadd.f32 %v329, %v1048
        %v1050 = vrot.slane %v1049, 2
        %v1051 = vadd.f32 %v1049, %v1050
        %v1052 = vrot.slane %v1051, 1
        %v1053 = vadd.f32 %v1051, %v1052
        %v1054 = vrcp.pop 8.0
        %v1055 = vmul.f32 %v963, %v1054
        %v1056 = vmul.f32 %v969, %v1054
        %v1057 = vmul.f32 %v975, %v1054
        %v1058 = vmul.f32 %v981, %v1054
        %v1059 = vmul.f32 %v987, %v1054
        %v1060 = vmul.f32 %v993, %v1054
        %v1061 = vmul.f32 %v999, %v1054
        %v1062 = vmul.f32 %v1005, %v1054
        %v1063 = vmul.f32 %v1011, %v1054
        %v1064 = vmul.f32 %v1017, %v1054
        %v1065 = vmul.f32 %v1023, %v1054
        %v1066 = vmul.f32 %v1029, %v1054
        %v1067 = vmul.f32 %v1035, %v1054
        %v1068 = vmul.f32 %v1041, %v1054
        %v1069 = vmul.f32 %v1047, %v1054
        %v1070 = vmul.f32 %v1053, %v1054
        %v1071 = vrot.slane %v246, 4
        %v1072 = vadd.f32 %v246, %v1071
        %v1073 = vrot.slane %v1072, 2
        %v1074 = vadd.f32 %v1072, %v1073
        %v1075 = vrot.slane %v1074, 1
        %v1076 = vadd.f32 %v1074, %v1075
        %v1077 = vrot.slane %v247, 4
        %v1078 = vadd.f32 %v247, %v1077
        %v1079 = vrot.slane %v1078, 2
        %v1080 = vadd.f32 %v1078, %v1079
        %v1081 = vrot.slane %v1080, 1
        %v1082 = vadd.f32 %v1080, %v1081
        %v1083 = vrot.slane %v258, 4
        %v1084 = vadd.f32 %v258, %v1083
        %v1085 = vrot.slane %v1084, 2
        %v1086 = vadd.f32 %v1084, %v1085
        %v1087 = vrot.slane %v1086, 1
        %v1088 = vadd.f32 %v1086, %v1087
        %v1089 = vrot.slane %v259, 4
        %v1090 = vadd.f32 %v259, %v1089
        %v1091 = vrot.slane %v1090, 2
        %v1092 = vadd.f32 %v1090, %v1091
        %v1093 = vrot.slane %v1092, 1
        %v1094 = vadd.f32 %v1092, %v1093
        %v1095 = vrot.slane %v270, 4
        %v1096 = vadd.f32 %v270, %v1095
        %v1097 = vrot.slane %v1096, 2
        %v1098 = vadd.f32 %v1096, %v1097
        %v1099 = vrot.slane %v1098, 1
        %v1100 = vadd.f32 %v1098, %v1099
        %v1101 = vrot.slane %v271, 4
        %v1102 = vadd.f32 %v271, %v1101
        %v1103 = vrot.slane %v1102, 2
        %v1104 = vadd.f32 %v1102, %v1103
        %v1105 = vrot.slane %v1104, 1
        %v1106 = vadd.f32 %v1104, %v1105
        %v1107 = vrot.slane %v282, 4
        %v1108 = vadd.f32 %v282, %v1107
        %v1109 = vrot.slane %v1108, 2
        %v1110 = vadd.f32 %v1108, %v1109
        %v1111 = vrot.slane %v1110, 1
        %v1112 = vadd.f32 %v1110, %v1111
        %v1113 = vrot.slane %v283, 4
        %v1114 = vadd.f32 %v283, %v1113
        %v1115 = vrot.slane %v1114, 2
        %v1116 = vadd.f32 %v1114, %v1115
        %v1117 = vrot.slane %v1116, 1
        %v1118 = vadd.f32 %v1116, %v1117
        %v1119 = vrot.slane %v294, 4
        %v1120 = vadd.f32 %v294, %v1119
        %v1121 = vrot.slane %v1120, 2
        %v1122 = vadd.f32 %v1120, %v1121
        %v1123 = vrot.slane %v1122, 1
        %v1124 = vadd.f32 %v1122, %v1123
        %v1125 = vrot.slane %v295, 4
        %v1126 = vadd.f32 %v295, %v1125
        %v1127 = vrot.slane %v1126, 2
        %v1128 = vadd.f32 %v1126, %v1127
        %v1129 = vrot.slane %v1128, 1
        %v1130 = vadd.f32 %v1128, %v1129
        %v1131 = vrot.slane %v306, 4
        %v1132 = vadd.f32 %v306, %v1131
        %v1133 = vrot.slane %v1132, 2
        %v1134 = vadd.f32 %v1132, %v1133
        %v1135 = vrot.slane %v1134, 1
        %v1136 = vadd.f32 %v1134, %v1135
        %v1137 = vrot.slane %v307, 4
        %v1138 = vadd.f32 %v307, %v1137
        %v1139 = vrot.slane %v1138, 2
        %v1140 = vadd.f32 %v1138, %v1139
        %v1141 = vrot.slane %v1140, 1
        %v1142 = vadd.f32 %v1140, %v1141
        %v1143 = vrot.slane %v318, 4
        %v1144 = vadd.f32 %v318, %v1143
        %v1145 = vrot.slane %v1144, 2
        %v1146 = vadd.f32 %v1144, %v1145
        %v1147 = vrot.slane %v1146, 1
        %v1148 = vadd.f32 %v1146, %v1147
        %v1149 = vrot.slane %v319, 4
        %v1150 = vadd.f32 %v319, %v1149
        %v1151 = vrot.slane %v1150, 2
        %v1152 = vadd.f32 %v1150, %v1151
        %v1153 = vrot.slane %v1152, 1
        %v1154 = vadd.f32 %v1152, %v1153
        %v1155 = vrot.slane %v330, 4
        %v1156 = vadd.f32 %v330, %v1155
        %v1157 = vrot.slane %v1156, 2
        %v1158 = vadd.f32 %v1156, %v1157
        %v1159 = vrot.slane %v1158, 1
        %v1160 = vadd.f32 %v1158, %v1159
        %v1161 = vrot.slane %v331, 4
        %v1162 = vadd.f32 %v331, %v1161
        %v1163 = vrot.slane %v1162, 2
        %v1164 = vadd.f32 %v1162, %v1163
        %v1165 = vrot.slane %v1164, 1
        %v1166 = vadd.f32 %v1164, %v1165
        %v1167 = vmul.f32 %v1076, %v1054
        %v1168 = vmul.f32 %v1082, %v1054
        %v1169 = vmul.f32 %v1088, %v1054
        %v1170 = vmul.f32 %v1094, %v1054
        %v1171 = vmul.f32 %v1100, %v1054
        %v1172 = vmul.f32 %v1106, %v1054
        %v1173 = vmul.f32 %v1112, %v1054
        %v1174 = vmul.f32 %v1118, %v1054
        %v1175 = vmul.f32 %v1124, %v1054
        %v1176 = vmul.f32 %v1130, %v1054
        %v1177 = vmul.f32 %v1136, %v1054
        %v1178 = vmul.f32 %v1142, %v1054
        %v1179 = vmul.f32 %v1148, %v1054
        %v1180 = vmul.f32 %v1154, %v1054
        %v1181 = vmul.f32 %v1160, %v1054
        %v1182 = vmul.f32 %v1166, %v1054
        %v1183 = vrot.slane %v248, 4
        %v1184 = vadd.f32 %v248, %v1183
        %v1185 = vrot.slane %v1184, 2
        %v1186 = vadd.f32 %v1184, %v1185
        %v1187 = vrot.slane %v1186, 1
        %v1188 = vadd.f32 %v1186, %v1187
        %v1189 = vrot.slane %v249, 4
        %v1190 = vadd.f32 %v249, %v1189
        %v1191 = vrot.slane %v1190, 2
        %v1192 = vadd.f32 %v1190, %v1191
        %v1193 = vrot.slane %v1192, 1
        %v1194 = vadd.f32 %v1192, %v1193
        %v1195 = vrot.slane %v260, 4
        %v1196 = vadd.f32 %v260, %v1195
        %v1197 = vrot.slane %v1196, 2
        %v1198 = vadd.f32 %v1196, %v1197
        %v1199 = vrot.slane %v1198, 1
        %v1200 = vadd.f32 %v1198, %v1199
        %v1201 = vrot.slane %v261, 4
        %v1202 = vadd.f32 %v261, %v1201
        %v1203 = vrot.slane %v1202, 2
        %v1204 = vadd.f32 %v1202, %v1203
        %v1205 = vrot.slane %v1204, 1
        %v1206 = vadd.f32 %v1204, %v1205
        %v1207 = vrot.slane %v272, 4
        %v1208 = vadd.f32 %v272, %v1207
        %v1209 = vrot.slane %v1208, 2
        %v1210 = vadd.f32 %v1208, %v1209
        %v1211 = vrot.slane %v1210, 1
        %v1212 = vadd.f32 %v1210, %v1211
        %v1213 = vrot.slane %v273, 4
        %v1214 = vadd.f32 %v273, %v1213
        %v1215 = vrot.slane %v1214, 2
        %v1216 = vadd.f32 %v1214, %v1215
        %v1217 = vrot.slane %v1216, 1
        %v1218 = vadd.f32 %v1216, %v1217
        %v1219 = vrot.slane %v284, 4
        %v1220 = vadd.f32 %v284, %v1219
        %v1221 = vrot.slane %v1220, 2
        %v1222 = vadd.f32 %v1220, %v1221
        %v1223 = vrot.slane %v1222, 1
        %v1224 = vadd.f32 %v1222, %v1223
        %v1225 = vrot.slane %v285, 4
        %v1226 = vadd.f32 %v285, %v1225
        %v1227 = vrot.slane %v1226, 2
        %v1228 = vadd.f32 %v1226, %v1227
        %v1229 = vrot.slane %v1228, 1
        %v1230 = vadd.f32 %v1228, %v1229
        %v1231 = vrot.slane %v296, 4
        %v1232 = vadd.f32 %v296, %v1231
        %v1233 = vrot.slane %v1232, 2
        %v1234 = vadd.f32 %v1232, %v1233
        %v1235 = vrot.slane %v1234, 1
        %v1236 = vadd.f32 %v1234, %v1235
        %v1237 = vrot.slane %v297, 4
        %v1238 = vadd.f32 %v297, %v1237
        %v1239 = vrot.slane %v1238, 2
        %v1240 = vadd.f32 %v1238, %v1239
        %v1241 = vrot.slane %v1240, 1
        %v1242 = vadd.f32 %v1240, %v1241
        %v1243 = vrot.slane %v308, 4
        %v1244 = vadd.f32 %v308, %v1243
        %v1245 = vrot.slane %v1244, 2
        %v1246 = vadd.f32 %v1244, %v1245
        %v1247 = vrot.slane %v1246, 1
        %v1248 = vadd.f32 %v1246, %v1247
        %v1249 = vrot.slane %v309, 4
        %v1250 = vadd.f32 %v309, %v1249
        %v1251 = vrot.slane %v1250, 2
        %v1252 = vadd.f32 %v1250, %v1251
        %v1253 = vrot.slane %v1252, 1
        %v1254 = vadd.f32 %v1252, %v1253
        %v1255 = vrot.slane %v320, 4
        %v1256 = vadd.f32 %v320, %v1255
        %v1257 = vrot.slane %v1256, 2
        %v1258 = vadd.f32 %v1256, %v1257
        %v1259 = vrot.slane %v1258, 1
        %v1260 = vadd.f32 %v1258, %v1259
        %v1261 = vrot.slane %v321, 4
        %v1262 = vadd.f32 %v321, %v1261
        %v1263 = vrot.slane %v1262, 2
        %v1264 = vadd.f32 %v1262, %v1263
        %v1265 = vrot.slane %v1264, 1
        %v1266 = vadd.f32 %v1264, %v1265
        %v1267 = vrot.slane %v332, 4
        %v1268 = vadd.f32 %v332, %v1267
        %v1269 = vrot.slane %v1268, 2
        %v1270 = vadd.f32 %v1268, %v1269
        %v1271 = vrot.slane %v1270, 1
        %v1272 = vadd.f32 %v1270, %v1271
        %v1273 = vrot.slane %v333, 4
        %v1274 = vadd.f32 %v333, %v1273
        %v1275 = vrot.slane %v1274, 2
        %v1276 = vadd.f32 %v1274, %v1275
        %v1277 = vrot.slane %v1276, 1
        %v1278 = vadd.f32 %v1276, %v1277
        %v1279 = vmul.f32 %v1188, %v1054
        %v1280 = vmul.f32 %v1194, %v1054
        %v1281 = vmul.f32 %v1200, %v1054
        %v1282 = vmul.f32 %v1206, %v1054
        %v1283 = vmul.f32 %v1212, %v1054
        %v1284 = vmul.f32 %v1218, %v1054
        %v1285 = vmul.f32 %v1224, %v1054
        %v1286 = vmul.f32 %v1230, %v1054
        %v1287 = vmul.f32 %v1236, %v1054
        %v1288 = vmul.f32 %v1242, %v1054
        %v1289 = vmul.f32 %v1248, %v1054
        %v1290 = vmul.f32 %v1254, %v1054
        %v1291 = vmul.f32 %v1260, %v1054
        %v1292 = vmul.f32 %v1266, %v1054
        %v1293 = vmul.f32 %v1272, %v1054
        %v1294 = vmul.f32 %v1278, %v1054
        %v1295 = vrot.slane %v250, 4
        %v1296 = vadd.f32 %v250, %v1295
        %v1297 = vrot.slane %v1296, 2
        %v1298 = vadd.f32 %v1296, %v1297
        %v1299 = vrot.slane %v1298, 1
        %v1300 = vadd.f32 %v1298, %v1299
        %v1301 = vrot.slane %v251, 4
        %v1302 = vadd.f32 %v251, %v1301
        %v1303 = vrot.slane %v1302, 2
        %v1304 = vadd.f32 %v1302, %v1303
        %v1305 = vrot.slane %v1304, 1
        %v1306 = vadd.f32 %v1304, %v1305
        %v1307 = vrot.slane %v262, 4
        %v1308 = vadd.f32 %v262, %v1307
        %v1309 = vrot.slane %v1308, 2
        %v1310 = vadd.f32 %v1308, %v1309
        %v1311 = vrot.slane %v1310, 1
        %v1312 = vadd.f32 %v1310, %v1311
        %v1313 = vrot.slane %v263, 4
        %v1314 = vadd.f32 %v263, %v1313
        %v1315 = vrot.slane %v1314, 2
        %v1316 = vadd.f32 %v1314, %v1315
        %v1317 = vrot.slane %v1316, 1
        %v1318 = vadd.f32 %v1316, %v1317
        %v1319 = vrot.slane %v274, 4
        %v1320 = vadd.f32 %v274, %v1319
        %v1321 = vrot.slane %v1320, 2
        %v1322 = vadd.f32 %v1320, %v1321
        %v1323 = vrot.slane %v1322, 1
        %v1324 = vadd.f32 %v1322, %v1323
        %v1325 = vrot.slane %v275, 4
        %v1326 = vadd.f32 %v275, %v1325
        %v1327 = vrot.slane %v1326, 2
        %v1328 = vadd.f32 %v1326, %v1327
        %v1329 = vrot.slane %v1328, 1
        %v1330 = vadd.f32 %v1328, %v1329
        %v1331 = vrot.slane %v286, 4
        %v1332 = vadd.f32 %v286, %v1331
        %v1333 = vrot.slane %v1332, 2
        %v1334 = vadd.f32 %v1332, %v1333
        %v1335 = vrot.slane %v1334, 1
        %v1336 = vadd.f32 %v1334, %v1335
        %v1337 = vrot.slane %v287, 4
        %v1338 = vadd.f32 %v287, %v1337
        %v1339 = vrot.slane %v1338, 2
        %v1340 = vadd.f32 %v1338, %v1339
        %v1341 = vrot.slane %v1340, 1
        %v1342 = vadd.f32 %v1340, %v1341
        %v1343 = vrot.slane %v298, 4
        %v1344 = vadd.f32 %v298, %v1343
        %v1345 = vrot.slane %v1344, 2
        %v1346 = vadd.f32 %v1344, %v1345
        %v1347 = vrot.slane %v1346, 1
        %v1348 = vadd.f32 %v1346, %v1347
        %v1349 = vrot.slane %v299, 4
        %v1350 = vadd.f32 %v299, %v1349
        %v1351 = vrot.slane %v1350, 2
        %v1352 = vadd.f32 %v1350, %v1351
        %v1353 = vrot.slane %v1352, 1
        %v1354 = vadd.f32 %v1352, %v1353
        %v1355 = vrot.slane %v310, 4
        %v1356 = vadd.f32 %v310, %v1355
        %v1357 = vrot.slane %v1356, 2
        %v1358 = vadd.f32 %v1356, %v1357
        %v1359 = vrot.slane %v1358, 1
        %v1360 = vadd.f32 %v1358, %v1359
        %v1361 = vrot.slane %v311, 4
        %v1362 = vadd.f32 %v311, %v1361
        %v1363 = vrot.slane %v1362, 2
        %v1364 = vadd.f32 %v1362, %v1363
        %v1365 = vrot.slane %v1364, 1
        %v1366 = vadd.f32 %v1364, %v1365
        %v1367 = vrot.slane %v322, 4
        %v1368 = vadd.f32 %v322, %v1367
        %v1369 = vrot.slane %v1368, 2
        %v1370 = vadd.f32 %v1368, %v1369
        %v1371 = vrot.slane %v1370, 1
        %v1372 = vadd.f32 %v1370, %v1371
        %v1373 = vrot.slane %v323, 4
        %v1374 = vadd.f32 %v323, %v1373
        %v1375 = vrot.slane %v1374, 2
        %v1376 = vadd.f32 %v1374, %v1375
        %v1377 = vrot.slane %v1376, 1
        %v1378 = vadd.f32 %v1376, %v1377
        %v1379 = vrot.slane %v334, 4
        %v1380 = vadd.f32 %v334, %v1379
        %v1381 = vrot.slane %v1380, 2
        %v1382 = vadd.f32 %v1380, %v1381
        %v1383 = vrot.slane %v1382, 1
        %v1384 = vadd.f32 %v1382, %v1383
        %v1385 = vrot.slane %v335, 4
        %v1386 = vadd.f32 %v335, %v1385
        %v1387 = vrot.slane %v1386, 2
        %v1388 = vadd.f32 %v1386, %v1387
        %v1389 = vrot.slane %v1388, 1
        %v1390 = vadd.f32 %v1388, %v1389
        %v1391 = vmul.f32 %v1300, %v1054
        %v1392 = vmul.f32 %v1306, %v1054
        %v1393 = vmul.f32 %v1312, %v1054
        %v1394 = vmul.f32 %v1318, %v1054
        %v1395 = vmul.f32 %v1324, %v1054
        %v1396 = vmul.f32 %v1330, %v1054
        %v1397 = vmul.f32 %v1336, %v1054
        %v1398 = vmul.f32 %v1342, %v1054
        %v1399 = vmul.f32 %v1348, %v1054
        %v1400 = vmul.f32 %v1354, %v1054
        %v1401 = vmul.f32 %v1360, %v1054
        %v1402 = vmul.f32 %v1366, %v1054
        %v1403 = vmul.f32 %v1372, %v1054
        %v1404 = vmul.f32 %v1378, %v1054
        %v1405 = vmul.f32 %v1384, %v1054
        %v1406 = vmul.f32 %v1390, %v1054
        %v1407 = vrot.slane %v252, 4
        %v1408 = vadd.f32 %v252, %v1407
        %v1409 = vrot.slane %v1408, 2
        %v1410 = vadd.f32 %v1408, %v1409
        %v1411 = vrot.slane %v1410, 1
        %v1412 = vadd.f32 %v1410, %v1411
        %v1413 = vrot.slane %v253, 4
        %v1414 = vadd.f32 %v253, %v1413
        %v1415 = vrot.slane %v1414, 2
        %v1416 = vadd.f32 %v1414, %v1415
        %v1417 = vrot.slane %v1416, 1
        %v1418 = vadd.f32 %v1416, %v1417
        %v1419 = vrot.slane %v264, 4
        %v1420 = vadd.f32 %v264, %v1419
        %v1421 = vrot.slane %v1420, 2
        %v1422 = vadd.f32 %v1420, %v1421
        %v1423 = vrot.slane %v1422, 1
        %v1424 = vadd.f32 %v1422, %v1423
        %v1425 = vrot.slane %v265, 4
        %v1426 = vadd.f32 %v265, %v1425
        %v1427 = vrot.slane %v1426, 2
        %v1428 = vadd.f32 %v1426, %v1427
        %v1429 = vrot.slane %v1428, 1
        %v1430 = vadd.f32 %v1428, %v1429
        %v1431 = vrot.slane %v276, 4
        %v1432 = vadd.f32 %v276, %v1431
        %v1433 = vrot.slane %v1432, 2
        %v1434 = vadd.f32 %v1432, %v1433
        %v1435 = vrot.slane %v1434, 1
        %v1436 = vadd.f32 %v1434, %v1435
        %v1437 = vrot.slane %v277, 4
        %v1438 = vadd.f32 %v277, %v1437
        %v1439 = vrot.slane %v1438, 2
        %v1440 = vadd.f32 %v1438, %v1439
        %v1441 = vrot.slane %v1440, 1
        %v1442 = vadd.f32 %v1440, %v1441
        %v1443 = vrot.slane %v288, 4
        %v1444 = vadd.f32 %v288, %v1443
        %v1445 = vrot.slane %v1444, 2
        %v1446 = vadd.f32 %v1444, %v1445
        %v1447 = vrot.slane %v1446, 1
        %v1448 = vadd.f32 %v1446, %v1447
        %v1449 = vrot.slane %v289, 4
        %v1450 = vadd.f32 %v289, %v1449
        %v1451 = vrot.slane %v1450, 2
        %v1452 = vadd.f32 %v1450, %v1451
        %v1453 = vrot.slane %v1452, 1
        %v1454 = vadd.f32 %v1452, %v1453
        %v1455 = vrot.slane %v300, 4
        %v1456 = vadd.f32 %v300, %v1455
        %v1457 = vrot.slane %v1456, 2
        %v1458 = vadd.f32 %v1456, %v1457
        %v1459 = vrot.slane %v1458, 1
        %v1460 = vadd.f32 %v1458, %v1459
        %v1461 = vrot.slane %v301, 4
        %v1462 = vadd.f32 %v301, %v1461
        %v1463 = vrot.slane %v1462, 2
        %v1464 = vadd.f32 %v1462, %v1463
        %v1465 = vrot.slane %v1464, 1
        %v1466 = vadd.f32 %v1464, %v1465
        %v1467 = vrot.slane %v312, 4
        %v1468 = vadd.f32 %v312, %v1467
        %v1469 = vrot.slane %v1468, 2
        %v1470 = vadd.f32 %v1468, %v1469
        %v1471 = vrot.slane %v1470, 1
        %v1472 = vadd.f32 %v1470, %v1471
        %v1473 = vrot.slane %v313, 4
        %v1474 = vadd.f32 %v313, %v1473
        %v1475 = vrot.slane %v1474, 2
        %v1476 = vadd.f32 %v1474, %v1475
        %v1477 = vrot.slane %v1476, 1
        %v1478 = vadd.f32 %v1476, %v1477
        %v1479 = vrot.slane %v324, 4
        %v1480 = vadd.f32 %v324, %v1479
        %v1481 = vrot.slane %v1480, 2
        %v1482 = vadd.f32 %v1480, %v1481
        %v1483 = vrot.slane %v1482, 1
        %v1484 = vadd.f32 %v1482, %v1483
        %v1485 = vrot.slane %v325, 4
        %v1486 = vadd.f32 %v325, %v1485
        %v1487 = vrot.slane %v1486, 2
        %v1488 = vadd.f32 %v1486, %v1487
        %v1489 = vrot.slane %v1488, 1
        %v1490 = vadd.f32 %v1488, %v1489
        %v1491 = vrot.slane %v336, 4
        %v1492 = vadd.f32 %v336, %v1491
        %v1493 = vrot.slane %v1492, 2
        %v1494 = vadd.f32 %v1492, %v1493
        %v1495 = vrot.slane %v1494, 1
        %v1496 = vadd.f32 %v1494, %v1495
        %v1497 = vrot.slane %v337, 4
        %v1498 = vadd.f32 %v337, %v1497
        %v1499 = vrot.slane %v1498, 2
        %v1500 = vadd.f32 %v1498, %v1499
        %v1501 = vrot.slane %v1500, 1
        %v1502 = vadd.f32 %v1500, %v1501
        %v1503 = vmul.f32 %v1412, %v1054
        %v1504 = vmul.f32 %v1418, %v1054
        %v1505 = vmul.f32 %v1424, %v1054
        %v1506 = vmul.f32 %v1430, %v1054
        %v1507 = vmul.f32 %v1436, %v1054
        %v1508 = vmul.f32 %v1442, %v1054
        %v1509 = vmul.f32 %v1448, %v1054
        %v1510 = vmul.f32 %v1454, %v1054
        %v1511 = vmul.f32 %v1460, %v1054
        %v1512 = vmul.f32 %v1466, %v1054
        %v1513 = vmul.f32 %v1472, %v1054
        %v1514 = vmul.f32 %v1478, %v1054
        %v1515 = vmul.f32 %v1484, %v1054
        %v1516 = vmul.f32 %v1490, %v1054
        %v1517 = vmul.f32 %v1496, %v1054
        %v1518 = vmul.f32 %v1502, %v1054
        %v1519 = vrot.slane %v254, 4
        %v1520 = vadd.f32 %v254, %v1519
        %v1521 = vrot.slane %v1520, 2
        %v1522 = vadd.f32 %v1520, %v1521
        %v1523 = vrot.slane %v1522, 1
        %v1524 = vadd.f32 %v1522, %v1523
        %v1525 = vrot.slane %v255, 4
        %v1526 = vadd.f32 %v255, %v1525
        %v1527 = vrot.slane %v1526, 2
        %v1528 = vadd.f32 %v1526, %v1527
        %v1529 = vrot.slane %v1528, 1
        %v1530 = vadd.f32 %v1528, %v1529
        %v1531 = vrot.slane %v266, 4
        %v1532 = vadd.f32 %v266, %v1531
        %v1533 = vrot.slane %v1532, 2
        %v1534 = vadd.f32 %v1532, %v1533
        %v1535 = vrot.slane %v1534, 1
        %v1536 = vadd.f32 %v1534, %v1535
        %v1537 = vrot.slane %v267, 4
        %v1538 = vadd.f32 %v267, %v1537
        %v1539 = vrot.slane %v1538, 2
        %v1540 = vadd.f32 %v1538, %v1539
        %v1541 = vrot.slane %v1540, 1
        %v1542 = vadd.f32 %v1540, %v1541
        %v1543 = vrot.slane %v278, 4
        %v1544 = vadd.f32 %v278, %v1543
        %v1545 = vrot.slane %v1544, 2
        %v1546 = vadd.f32 %v1544, %v1545
        %v1547 = vrot.slane %v1546, 1
        %v1548 = vadd.f32 %v1546, %v1547
        %v1549 = vrot.slane %v279, 4
        %v1550 = vadd.f32 %v279, %v1549
        %v1551 = vrot.slane %v1550, 2
        %v1552 = vadd.f32 %v1550, %v1551
        %v1553 = vrot.slane %v1552, 1
        %v1554 = vadd.f32 %v1552, %v1553
        %v1555 = vrot.slane %v290, 4
        %v1556 = vadd.f32 %v290, %v1555
        %v1557 = vrot.slane %v1556, 2
        %v1558 = vadd.f32 %v1556, %v1557
        %v1559 = vrot.slane %v1558, 1
        %v1560 = vadd.f32 %v1558, %v1559
        %v1561 = vrot.slane %v291, 4
        %v1562 = vadd.f32 %v291, %v1561
        %v1563 = vrot.slane %v1562, 2
        %v1564 = vadd.f32 %v1562, %v1563
        %v1565 = vrot.slane %v1564, 1
        %v1566 = vadd.f32 %v1564, %v1565
        %v1567 = vrot.slane %v302, 4
        %v1568 = vadd.f32 %v302, %v1567
        %v1569 = vrot.slane %v1568, 2
        %v1570 = vadd.f32 %v1568, %v1569
        %v1571 = vrot.slane %v1570, 1
        %v1572 = vadd.f32 %v1570, %v1571
        %v1573 = vrot.slane %v303, 4
        %v1574 = vadd.f32 %v303, %v1573
        %v1575 = vrot.slane %v1574, 2
        %v1576 = vadd.f32 %v1574, %v1575
        %v1577 = vrot.slane %v1576, 1
        %v1578 = vadd.f32 %v1576, %v1577
        %v1579 = vrot.slane %v314, 4
        %v1580 = vadd.f32 %v314, %v1579
        %v1581 = vrot.slane %v1580, 2
        %v1582 = vadd.f32 %v1580, %v1581
        %v1583 = vrot.slane %v1582, 1
        %v1584 = vadd.f32 %v1582, %v1583
        %v1585 = vrot.slane %v315, 4
        %v1586 = vadd.f32 %v315, %v1585
        %v1587 = vrot.slane %v1586, 2
        %v1588 = vadd.f32 %v1586, %v1587
        %v1589 = vrot.slane %v1588, 1
        %v1590 = vadd.f32 %v1588, %v1589
        %v1591 = vrot.slane %v326, 4
        %v1592 = vadd.f32 %v326, %v1591
        %v1593 = vrot.slane %v1592, 2
        %v1594 = vadd.f32 %v1592, %v1593
        %v1595 = vrot.slane %v1594, 1
        %v1596 = vadd.f32 %v1594, %v1595
        %v1597 = vrot.slane %v327, 4
        %v1598 = vadd.f32 %v327, %v1597
        %v1599 = vrot.slane %v1598, 2
        %v1600 = vadd.f32 %v1598, %v1599
        %v1601 = vrot.slane %v1600, 1
        %v1602 = vadd.f32 %v1600, %v1601
        %v1603 = vrot.slane %v338, 4
        %v1604 = vadd.f32 %v338, %v1603
        %v1605 = vrot.slane %v1604, 2
        %v1606 = vadd.f32 %v1604, %v1605
        %v1607 = vrot.slane %v1606, 1
        %v1608 = vadd.f32 %v1606, %v1607
        %v1609 = vrot.slane %v339, 4
        %v1610 = vadd.f32 %v339, %v1609
        %v1611 = vrot.slane %v1610, 2
        %v1612 = vadd.f32 %v1610, %v1611
        %v1613 = vrot.slane %v1612, 1
        %v1614 = vadd.f32 %v1612, %v1613
        %v1615 = vmul.f32 %v1524, %v1054
        %v1616 = vmul.f32 %v1530, %v1054
        %v1617 = vmul.f32 %v1536, %v1054
        %v1618 = vmul.f32 %v1542, %v1054
        %v1619 = vmul.f32 %v1548, %v1054
        %v1620 = vmul.f32 %v1554, %v1054
        %v1621 = vmul.f32 %v1560, %v1054
        %v1622 = vmul.f32 %v1566, %v1054
        %v1623 = vmul.f32 %v1572, %v1054
        %v1624 = vmul.f32 %v1578, %v1054
        %v1625 = vmul.f32 %v1584, %v1054
        %v1626 = vmul.f32 %v1590, %v1054
        %v1627 = vmul.f32 %v1596, %v1054
        %v1628 = vmul.f32 %v1602, %v1054
        %v1629 = vmul.f32 %v1608, %v1054
        %v1630 = vmul.f32 %v1614, %v1054
        %v1631 = vadd.f32 %v1055, %v1167
        %v1632 = vadd.f32 %v1056, %v1168
        %v1633 = vadd.f32 %v1057, %v1169
        %v1634 = vadd.f32 %v1058, %v1170
        %v1635 = vadd.f32 %v1059, %v1171
        %v1636 = vadd.f32 %v1060, %v1172
        %v1637 = vadd.f32 %v1061, %v1173
        %v1638 = vadd.f32 %v1062, %v1174
        %v1639 = vadd.f32 %v1063, %v1175
        %v1640 = vadd.f32 %v1064, %v1176
        %v1641 = vadd.f32 %v1065, %v1177
        %v1642 = vadd.f32 %v1066, %v1178
        %v1643 = vadd.f32 %v1067, %v1179
        %v1644 = vadd.f32 %v1068, %v1180
        %v1645 = vadd.f32 %v1069, %v1181
        %v1646 = vadd.f32 %v1070, %v1182
        %v1647 = vadd.f32 %v1631, %v1279
        %v1648 = vadd.f32 %v1632, %v1280
        %v1649 = vadd.f32 %v1633, %v1281
        %v1650 = vadd.f32 %v1634, %v1282
        %v1651 = vadd.f32 %v1635, %v1283
        %v1652 = vadd.f32 %v1636, %v1284
        %v1653 = vadd.f32 %v1637, %v1285
        %v1654 = vadd.f32 %v1638, %v1286
        %v1655 = vadd.f32 %v1639, %v1287
        %v1656 = vadd.f32 %v1640, %v1288
        %v1657 = vadd.f32 %v1641, %v1289
        %v1658 = vadd.f32 %v1642, %v1290
        %v1659 = vadd.f32 %v1643, %v1291
        %v1660 = vadd.f32 %v1644, %v1292
        %v1661 = vadd.f32 %v1645, %v1293
        %v1662 = vadd.f32 %v1646, %v1294
        %v1663 = vadd.f32 %v1647, %v1391
        %v1664 = vadd.f32 %v1648, %v1392
        %v1665 = vadd.f32 %v1649, %v1393
        %v1666 = vadd.f32 %v1650, %v1394
        %v1667 = vadd.f32 %v1651, %v1395
        %v1668 = vadd.f32 %v1652, %v1396
        %v1669 = vadd.f32 %v1653, %v1397
        %v1670 = vadd.f32 %v1654, %v1398
        %v1671 = vadd.f32 %v1655, %v1399
        %v1672 = vadd.f32 %v1656, %v1400
        %v1673 = vadd.f32 %v1657, %v1401
        %v1674 = vadd.f32 %v1658, %v1402
        %v1675 = vadd.f32 %v1659, %v1403
        %v1676 = vadd.f32 %v1660, %v1404
        %v1677 = vadd.f32 %v1661, %v1405
        %v1678 = vadd.f32 %v1662, %v1406
        %v1679 = vadd.f32 %v1663, %v1503
        %v1680 = vadd.f32 %v1664, %v1504
        %v1681 = vadd.f32 %v1665, %v1505
        %v1682 = vadd.f32 %v1666, %v1506
        %v1683 = vadd.f32 %v1667, %v1507
        %v1684 = vadd.f32 %v1668, %v1508
        %v1685 = vadd.f32 %v1669, %v1509
        %v1686 = vadd.f32 %v1670, %v1510
        %v1687 = vadd.f32 %v1671, %v1511
        %v1688 = vadd.f32 %v1672, %v1512
        %v1689 = vadd.f32 %v1673, %v1513
        %v1690 = vadd.f32 %v1674, %v1514
        %v1691 = vadd.f32 %v1675, %v1515
        %v1692 = vadd.f32 %v1676, %v1516
        %v1693 = vadd.f32 %v1677, %v1517
        %v1694 = vadd.f32 %v1678, %v1518
        %v1695 = vadd.f32 %v1679, %v1615
        %v1696 = vadd.f32 %v1680, %v1616
        %v1697 = vadd.f32 %v1681, %v1617
        %v1698 = vadd.f32 %v1682, %v1618
        %v1699 = vadd.f32 %v1683, %v1619
        %v1700 = vadd.f32 %v1684, %v1620
        %v1701 = vadd.f32 %v1685, %v1621
        %v1702 = vadd.f32 %v1686, %v1622
        %v1703 = vadd.f32 %v1687, %v1623
        %v1704 = vadd.f32 %v1688, %v1624
        %v1705 = vadd.f32 %v1689, %v1625
        %v1706 = vadd.f32 %v1690, %v1626
        %v1707 = vadd.f32 %v1691, %v1627
        %v1708 = vadd.f32 %v1692, %v1628
        %v1709 = vadd.f32 %v1693, %v1629
        %v1710 = vadd.f32 %v1694, %v1630
        %v1711 = vmul.f32 %v1695, 0.16666667
        %v1712 = vmul.f32 %v1696, 0.16666667
        %v1713 = vmul.f32 %v1697, 0.16666667
        %v1714 = vmul.f32 %v1698, 0.16666667
        %v1715 = vmul.f32 %v1699, 0.16666667
        %v1716 = vmul.f32 %v1700, 0.16666667
        %v1717 = vmul.f32 %v1701, 0.16666667
        %v1718 = vmul.f32 %v1702, 0.16666667
        %v1719 = vmul.f32 %v1703, 0.16666667
        %v1720 = vmul.f32 %v1704, 0.16666667
        %v1721 = vmul.f32 %v1705, 0.16666667
        %v1722 = vmul.f32 %v1706, 0.16666667
        %v1723 = vmul.f32 %v1707, 0.16666667
        %v1724 = vmul.f32 %v1708, 0.16666667
        %v1725 = vmul.f32 %v1709, 0.16666667
        %v1726 = vmul.f32 %v1710, 0.16666667
        %v1727 = vld [vmem:[%s2] sm:$0xff]
        %v1728 = vld [vmem:[%s2 + $0x8] sm:$0xff]
        %v1729 = vld [vmem:[%s2 + $0x10] sm:$0xff]
        %v1730 = vld [vmem:[%s2 + $0x18] sm:$0xff]
        %v1731 = vld [vmem:[%s2 + $0x20] sm:$0xff]
        %v1732 = vld [vmem:[%s2 + $0x28] sm:$0xff]
        %v1733 = vld [vmem:[%s2 + $0x30] sm:$0xff]
        %v1734 = vld [vmem:[%s2 + $0x38] sm:$0xff]
        %v1735 = vld [vmem:[%s2 + $0x40] sm:$0xff]
        %v1736 = vld [vmem:[%s2 + $0x48] sm:$0xff]
        %v1737 = vld [vmem:[%s2 + $0x50] sm:$0xff]
        %v1738 = vld [vmem:[%s2 + $0x58] sm:$0xff]
        %v1739 = vld [vmem:[%s2 + $0x60] sm:$0xff]
        %v1740 = vld [vmem:[%s2 + $0x68] sm:$0xff]
        %v1741 = vld [vmem:[%s2 + $0x70] sm:$0xff]
        %v1742 = vld [vmem:[%s2 + $0x78] sm:$0xff]
        %v1743 = vld [vmem:[%s2 + $0x80] sm:$0xff]
        %v1744 = vld [vmem:[%s2 + $0x88] sm:$0xff]
        %v1745 = vld [vmem:[%s2 + $0x90] sm:$0xff]
        %v1746 = vld [vmem:[%s2 + $0x98] sm:$0xff]
        %v1747 = vld [vmem:[%s2 + $0xa0] sm:$0xff]
        %v1748 = vld [vmem:[%s2 + $0xa8] sm:$0xff]
        %v1749 = vld [vmem:[%s2 + $0xb0] sm:$0xff]
        %v1750 = vld [vmem:[%s2 + $0xb8] sm:$0xff]
        %v1751 = vld [vmem:[%s2 + $0xc0] sm:$0xff]
        %v1752 = vld [vmem:[%s2 + $0xc8] sm:$0xff]
        %v1753 = vld [vmem:[%s2 + $0xd0] sm:$0xff]
        %v1754 = vld [vmem:[%s2 + $0xd8] sm:$0xff]
        %v1755 = vld [vmem:[%s2 + $0xe0] sm:$0xff]
        %v1756 = vld [vmem:[%s2 + $0xe8] sm:$0xff]
        %v1757 = vld [vmem:[%s2 + $0xf0] sm:$0xff]
        %v1758 = vld [vmem:[%s2 + $0xf8] sm:$0xff]
        %v1759 = vld [vmem:[%s2 + $0x100] sm:$0x1]
        %v1760 = vlaneseq
        %v1761 = vshrl.u32 %v1760, 7
        %v1762 = vsub.s32 0, %v1761
        %v1763 = vrot.slane %v1759, %v1762
        %v1780 = vsel %vm933, %v1713, %v1711
        %v1781 = vsel %vm935, %v1715, %v1780
        %v1782 = vsel %vm937, %v1717, %v1781
        %v1783 = vsel %vm939, %v1719, %v1782
        %v1784 = vsel %vm941, %v1721, %v1783
        %v1785 = vsel %vm943, %v1723, %v1784
        %v1786 = vsel %vm945, %v1725, %v1785
        %v1787 = vsel %vm933, %v1714, %v1712
        %v1788 = vsel %vm935, %v1716, %v1787
        %v1789 = vsel %vm937, %v1718, %v1788
        %v1790 = vsel %vm939, %v1720, %v1789
        %v1791 = vsel %vm941, %v1722, %v1790
        %v1792 = vsel %vm943, %v1724, %v1791
        %v1793 = vsel %vm945, %v1726, %v1792
        %1796 = vmatprep.subr.mxu0 0.0
        %1797 = vmatpush1.msra.mxu0 %v1742
        %1798 = vmatprep.subr.mxu0 0.0
        %1799 = vmatpush1.msra.mxu0 %v1741
        %1800 = vmatprep.subr.mxu0 0.0
        %1801 = vmatpush1.msra.mxu0 %v1740
        %1802 = vmatprep.subr.mxu0 0.0
        %1803 = vmatpush1.msra.mxu0 %v1739
        %1804 = vmatprep.subr.mxu0 0.0
        %1805 = vmatpush1.msra.mxu0 %v1738
        %1806 = vmatprep.subr.mxu0 0.0
        %1807 = vmatpush1.msra.mxu0 %v1737
        %1808 = vmatprep.subr.mxu0 0.0
        %1809 = vmatpush1.msra.mxu0 %v1736
        %1810 = vmatprep.subr.mxu0 0.0
        %1811 = vmatpush1.msra.mxu0 %v1735
        %1812 = vmatprep.subr.mxu0 0.0
        %1813 = vmatpush1.msra.mxu0 %v1734
        %1814 = vmatprep.subr.mxu0 0.0
        %1815 = vmatpush1.msra.mxu0 %v1733
        %1816 = vmatprep.subr.mxu0 0.0
        %1817 = vmatpush1.msra.mxu0 %v1732
        %1818 = vmatprep.subr.mxu0 0.0
        %1819 = vmatpush1.msra.mxu0 %v1731
        %1820 = vmatprep.subr.mxu0 0.0
        %1821 = vmatpush1.msra.mxu0 %v1730
        %1822 = vmatprep.subr.mxu0 0.0
        %1823 = vmatpush1.msra.mxu0 %v1729
        %1824 = vmatprep.subr.mxu0 0.0
        %1825 = vmatpush1.msra.mxu0 %v1728
        %1826 = vmatprep.subr.mxu0 0.0
        %1827 = vmatpush1.msra.mxu0 %v1727
        %1828 = vmatprep.subr.mxu0 0.0
        %1829 = vmatpush2.msra.mxu0 %v1758
        %1830 = vmatprep.subr.mxu0 0.0
        %1831 = vmatpush2.msra.mxu0 %v1757
        %1832 = vmatprep.subr.mxu0 0.0
        %1833 = vmatpush2.msra.mxu0 %v1756
        %1834 = vmatprep.subr.mxu0 0.0
        %1835 = vmatpush2.msra.mxu0 %v1755
        %1836 = vmatprep.subr.mxu0 0.0
        %1837 = vmatpush2.msra.mxu0 %v1754
        %1838 = vmatprep.subr.mxu0 0.0
        %1839 = vmatpush2.msra.mxu0 %v1753
        %1840 = vmatprep.subr.mxu0 0.0
        %1841 = vmatpush2.msra.mxu0 %v1752
        %1842 = vmatprep.subr.mxu0 0.0
        %1843 = vmatpush2.msra.mxu0 %v1751
        %1844 = vmatprep.subr.mxu0 0.0
        %1845 = vmatpush2.msra.mxu0 %v1750
        %1846 = vmatprep.subr.mxu0 0.0
        %1847 = vmatpush2.msra.mxu0 %v1749
        %1848 = vmatprep.subr.mxu0 0.0
        %1849 = vmatpush2.msra.mxu0 %v1748
        %1850 = vmatprep.subr.mxu0 0.0
        %1851 = vmatpush2.msra.mxu0 %v1747
        %1852 = vmatprep.subr.mxu0 0.0
        %1853 = vmatpush2.msra.mxu0 %v1746
        %1854 = vmatprep.subr.mxu0 0.0
        %1855 = vmatpush2.msra.mxu0 %v1745
        %1856 = vmatprep.subr.mxu0 0.0
        %1857 = vmatpush2.msra.mxu0 %v1744
        %1858 = vmatprep.subr.mxu0 0.0
        %1859 = vmatpush2.msra.mxu0 %v1743
        %1860 = vmatprep.mubr.f32.mxu0 %v1793
        %1861 = vmatmul.mubr.f32.gmra.mxu0 %v1786
        %v1862 = vpop.f32.mrf.mxu0
        %v1863 = vadd.f32 %v1763, %v1862
        %v1864 = vpop.f32.mrf.mxu0
        %1865 = vdwg.mxu0
        %v1866 = vld [vmem:[#allocation5] sm:$0xff]
        %v1867 = vld [vmem:[#allocation5 + $0x8] sm:$0xff]
        %v1868 = vld [vmem:[#allocation5 + $0x10] sm:$0xff]
        %v1869 = vld [vmem:[#allocation5 + $0x18] sm:$0xff]
        %v1870 = vld [vmem:[#allocation5 + $0x20] sm:$0xff]
        %v1871 = vld [vmem:[#allocation5 + $0x28] sm:$0xff]
        %v1872 = vld [vmem:[#allocation5 + $0x30] sm:$0xff]
        %v1873 = vld [vmem:[#allocation5 + $0x38] sm:$0xff]
        %v1874 = vld [vmem:[#allocation5 + $0x40] sm:$0xff]
        %v1875 = vld [vmem:[#allocation5 + $0x48] sm:$0xff]
        %v1876 = vld [vmem:[#allocation5 + $0x50] sm:$0xff]
        %v1877 = vld [vmem:[#allocation5 + $0x58] sm:$0xff]
        %v1878 = vld [vmem:[#allocation5 + $0x60] sm:$0xff]
        %v1879 = vld [vmem:[#allocation5 + $0x68] sm:$0xff]
        %v1880 = vld [vmem:[#allocation5 + $0x70] sm:$0xff]
        %v1881 = vld [vmem:[#allocation5 + $0x78] sm:$0xff]
        %v1882 = vld [vmem:[#allocation5 + $0x80] sm:$0xff]
        %v1883 = vld [vmem:[#allocation5 + $0x88] sm:$0xff]
        %v1884 = vld [vmem:[#allocation5 + $0x90] sm:$0xff]
        %v1885 = vld [vmem:[#allocation5 + $0x98] sm:$0xff]
        %v1886 = vld [vmem:[#allocation5 + $0xa0] sm:$0xff]
        %v1887 = vld [vmem:[#allocation5 + $0xa8] sm:$0xff]
        %v1888 = vld [vmem:[#allocation5 + $0xb0] sm:$0xff]
        %v1889 = vld [vmem:[#allocation5 + $0xb8] sm:$0xff]
        %v1890 = vld [vmem:[#allocation5 + $0xc0] sm:$0xff]
        %v1891 = vld [vmem:[#allocation5 + $0xc8] sm:$0xff]
        %v1892 = vld [vmem:[#allocation5 + $0xd0] sm:$0xff]
        %v1893 = vld [vmem:[#allocation5 + $0xd8] sm:$0xff]
        %v1894 = vld [vmem:[#allocation5 + $0xe0] sm:$0xff]
        %v1895 = vld [vmem:[#allocation5 + $0xe8] sm:$0xff]
        %v1896 = vld [vmem:[#allocation5 + $0xf0] sm:$0xff]
        %v1897 = vld [vmem:[#allocation5 + $0xf8] sm:$0xff]
        %v1898 = vunpack.c.l.bf16 %v1866
        %v1899 = vunpack.c.h.bf16 %v1866
        %v1900 = vunpack.c.l.bf16 %v1867
        %v1901 = vunpack.c.h.bf16 %v1867
        %v1902 = vunpack.c.l.bf16 %v1868
        %v1903 = vunpack.c.h.bf16 %v1868
        %v1904 = vunpack.c.l.bf16 %v1869
        %v1905 = vunpack.c.h.bf16 %v1869
        %v1906 = vunpack.c.l.bf16 %v1870
        %v1907 = vunpack.c.h.bf16 %v1870
        %v1908 = vunpack.c.l.bf16 %v1871
        %v1909 = vunpack.c.h.bf16 %v1871
        %v1910 = vunpack.c.l.bf16 %v1872
        %v1911 = vunpack.c.h.bf16 %v1872
        %v1912 = vunpack.c.l.bf16 %v1873
        %v1913 = vunpack.c.h.bf16 %v1873
        %v1914 = vunpack.c.l.bf16 %v1874
        %v1915 = vunpack.c.h.bf16 %v1874
        %v1916 = vunpack.c.l.bf16 %v1875
        %v1917 = vunpack.c.h.bf16 %v1875
        %v1918 = vunpack.c.l.bf16 %v1876
        %v1919 = vunpack.c.h.bf16 %v1876
        %v1920 = vunpack.c.l.bf16 %v1877
        %v1921 = vunpack.c.h.bf16 %v1877
        %v1922 = vunpack.c.l.bf16 %v1878
        %v1923 = vunpack.c.h.bf16 %v1878
        %v1924 = vunpack.c.l.bf16 %v1879
        %v1925 = vunpack.c.h.bf16 %v1879
        %v1926 = vunpack.c.l.bf16 %v1880
        %v1927 = vunpack.c.h.bf16 %v1880
        %v1928 = vunpack.c.l.bf16 %v1881
        %v1929 = vunpack.c.h.bf16 %v1881
        %v1930 = vunpack.c.l.bf16 %v1882
        %v1931 = vunpack.c.h.bf16 %v1882
        %v1932 = vunpack.c.l.bf16 %v1883
        %v1933 = vunpack.c.h.bf16 %v1883
        %v1934 = vunpack.c.l.bf16 %v1884
        %v1935 = vunpack.c.h.bf16 %v1884
        %v1936 = vunpack.c.l.bf16 %v1885
        %v1937 = vunpack.c.h.bf16 %v1885
        %v1938 = vunpack.c.l.bf16 %v1886
        %v1939 = vunpack.c.h.bf16 %v1886
        %v1940 = vunpack.c.l.bf16 %v1887
        %v1941 = vunpack.c.h.bf16 %v1887
        %v1942 = vunpack.c.l.bf16 %v1888
        %v1943 = vunpack.c.h.bf16 %v1888
        %v1944 = vunpack.c.l.bf16 %v1889
        %v1945 = vunpack.c.h.bf16 %v1889
        %v1946 = vunpack.c.l.bf16 %v1890
        %v1947 = vunpack.c.h.bf16 %v1890
        %v1948 = vunpack.c.l.bf16 %v1891
        %v1949 = vunpack.c.h.bf16 %v1891
        %v1950 = vunpack.c.l.bf16 %v1892
        %v1951 = vunpack.c.h.bf16 %v1892
        %v1952 = vunpack.c.l.bf16 %v1893
        %v1953 = vunpack.c.h.bf16 %v1893
        %v1954 = vunpack.c.l.bf16 %v1894
        %v1955 = vunpack.c.h.bf16 %v1894
        %v1956 = vunpack.c.l.bf16 %v1895
        %v1957 = vunpack.c.h.bf16 %v1895
        %v1958 = vunpack.c.l.bf16 %v1896
        %v1959 = vunpack.c.h.bf16 %v1896
        %v1960 = vunpack.c.l.bf16 %v1897
        %v1961 = vunpack.c.h.bf16 %v1897
        %v1978 = vsel %vm933, %v1057, %v1055
        %v1979 = vsel %vm935, %v1059, %v1978
        %v1980 = vsel %vm937, %v1061, %v1979
        %v1981 = vsel %vm939, %v1063, %v1980
        %v1982 = vsel %vm941, %v1065, %v1981
        %v1983 = vsel %vm943, %v1067, %v1982
        %v1984 = vsel %vm945, %v1069, %v1983
        %v1985 = vsel %vm933, %v1058, %v1056
        %v1986 = vsel %vm935, %v1060, %v1985
        %v1987 = vsel %vm937, %v1062, %v1986
        %v1988 = vsel %vm939, %v1064, %v1987
        %v1989 = vsel %vm941, %v1066, %v1988
        %v1990 = vsel %vm943, %v1068, %v1989
        %v1991 = vsel %vm945, %v1070, %v1990
        %1994 = vmatprep.subr.mxu0 %v1929
        %1995 = vmatpush1.msra.mxu0 %v1928
        %1996 = vmatprep.subr.mxu0 %v1927
        %1997 = vmatpush1.msra.mxu0 %v1926
        %1998 = vmatprep.subr.mxu0 %v1925
        %1999 = vmatpush1.msra.mxu0 %v1924
        %2000 = vmatprep.subr.mxu0 %v1923
        %2001 = vmatpush1.msra.mxu0 %v1922
        %2002 = vmatprep.subr.mxu0 %v1921
        %2003 = vmatpush1.msra.mxu0 %v1920
        %2004 = vmatprep.subr.mxu0 %v1919
        %2005 = vmatpush1.msra.mxu0 %v1918
        %2006 = vmatprep.subr.mxu0 %v1917
        %2007 = vmatpush1.msra.mxu0 %v1916
        %2008 = vmatprep.subr.mxu0 %v1915
        %2009 = vmatpush1.msra.mxu0 %v1914
        %2010 = vmatprep.subr.mxu0 %v1913
        %2011 = vmatpush1.msra.mxu0 %v1912
        %2012 = vmatprep.subr.mxu0 %v1911
        %2013 = vmatpush1.msra.mxu0 %v1910
        %2014 = vmatprep.subr.mxu0 %v1909
        %2015 = vmatpush1.msra.mxu0 %v1908
        %2016 = vmatprep.subr.mxu0 %v1907
        %2017 = vmatpush1.msra.mxu0 %v1906
        %2018 = vmatprep.subr.mxu0 %v1905
        %2019 = vmatpush1.msra.mxu0 %v1904
        %2020 = vmatprep.subr.mxu0 %v1903
        %2021 = vmatpush1.msra.mxu0 %v1902
        %2022 = vmatprep.subr.mxu0 %v1901
        %2023 = vmatpush1.msra.mxu0 %v1900
        %2024 = vmatprep.subr.mxu0 %v1899
        %2025 = vmatpush1.msra.mxu0 %v1898
        %2026 = vmatprep.subr.mxu0 %v1961
        %2027 = vmatpush2.msra.mxu0 %v1960
        %2028 = vmatprep.subr.mxu0 %v1959
        %2029 = vmatpush2.msra.mxu0 %v1958
        %2030 = vmatprep.subr.mxu0 %v1957
        %2031 = vmatpush2.msra.mxu0 %v1956
        %2032 = vmatprep.subr.mxu0 %v1955
        %2033 = vmatpush2.msra.mxu0 %v1954
        %2034 = vmatprep.subr.mxu0 %v1953
        %2035 = vmatpush2.msra.mxu0 %v1952
        %2036 = vmatprep.subr.mxu0 %v1951
        %2037 = vmatpush2.msra.mxu0 %v1950
        %2038 = vmatprep.subr.mxu0 %v1949
        %2039 = vmatpush2.msra.mxu0 %v1948
        %2040 = vmatprep.subr.mxu0 %v1947
        %2041 = vmatpush2.msra.mxu0 %v1946
        %2042 = vmatprep.subr.mxu0 %v1945
        %2043 = vmatpush2.msra.mxu0 %v1944
        %2044 = vmatprep.subr.mxu0 %v1943
        %2045 = vmatpush2.msra.mxu0 %v1942
        %2046 = vmatprep.subr.mxu0 %v1941
        %2047 = vmatpush2.msra.mxu0 %v1940
        %2048 = vmatprep.subr.mxu0 %v1939
        %2049 = vmatpush2.msra.mxu0 %v1938
        %2050 = vmatprep.subr.mxu0 %v1937
        %2051 = vmatpush2.msra.mxu0 %v1936
        %2052 = vmatprep.subr.mxu0 %v1935
        %2053 = vmatpush2.msra.mxu0 %v1934
        %2054 = vmatprep.subr.mxu0 %v1933
        %2055 = vmatpush2.msra.mxu0 %v1932
        %2056 = vmatprep.subr.mxu0 %v1931
        %2057 = vmatpush2.msra.mxu0 %v1930
        %2058 = vmatprep.mubr.f32.mxu0 %v1991
        %2059 = vmatmul.mubr.f32.gmra.mxu0 %v1984
        %v2060 = vpop.f32.mrf.mxu0
        %v2061 = vadd.f32 0.0, %v2060
        %v2062 = vpop.f32.mrf.mxu0
        %v2063 = vadd.f32 0.0, %v2062
        %2064 = vdwg.mxu0
        %2066 = vset.pattern.permute.xlu0 0
        %2067 = vperm.xlu0 %2066, %v1863
        %v2068 = vpop.permute.xlu0 %2067
        %v2070 = vmul.f32 %v2061, %v2068
        %v2071 = vmul.f32 %v2063, %v2068
        %2072 = vst [vmem:[%s242] sm:$0xff] %v2070
        %2073 = vst [vmem:[%s242 + $0x8] sm:$0xff] %v2071
        %s2074 = scalar_lea.vmem [#allocation5], 256
        %v2075 = vld [vmem:[%s2074] sm:$0xff]
        %v2076 = vld [vmem:[%s2074 + $0x8] sm:$0xff]
        %v2077 = vld [vmem:[%s2074 + $0x10] sm:$0xff]
        %v2078 = vld [vmem:[%s2074 + $0x18] sm:$0xff]
        %v2079 = vld [vmem:[%s2074 + $0x20] sm:$0xff]
        %v2080 = vld [vmem:[%s2074 + $0x28] sm:$0xff]
        %v2081 = vld [vmem:[%s2074 + $0x30] sm:$0xff]
        %v2082 = vld [vmem:[%s2074 + $0x38] sm:$0xff]
        %v2083 = vld [vmem:[%s2074 + $0x40] sm:$0xff]
        %v2084 = vld [vmem:[%s2074 + $0x48] sm:$0xff]
        %v2085 = vld [vmem:[%s2074 + $0x50] sm:$0xff]
        %v2086 = vld [vmem:[%s2074 + $0x58] sm:$0xff]
        %v2087 = vld [vmem:[%s2074 + $0x60] sm:$0xff]
        %v2088 = vld [vmem:[%s2074 + $0x68] sm:$0xff]
        %v2089 = vld [vmem:[%s2074 + $0x70] sm:$0xff]
        %v2090 = vld [vmem:[%s2074 + $0x78] sm:$0xff]
        %v2091 = vld [vmem:[%s2074 + $0x80] sm:$0xff]
        %v2092 = vld [vmem:[%s2074 + $0x88] sm:$0xff]
        %v2093 = vld [vmem:[%s2074 + $0x90] sm:$0xff]
        %v2094 = vld [vmem:[%s2074 + $0x98] sm:$0xff]
        %v2095 = vld [vmem:[%s2074 + $0xa0] sm:$0xff]
        %v2096 = vld [vmem:[%s2074 + $0xa8] sm:$0xff]
        %v2097 = vld [vmem:[%s2074 + $0xb0] sm:$0xff]
        %v2098 = vld [vmem:[%s2074 + $0xb8] sm:$0xff]
        %v2099 = vld [vmem:[%s2074 + $0xc0] sm:$0xff]
        %v2100 = vld [vmem:[%s2074 + $0xc8] sm:$0xff]
        %v2101 = vld [vmem:[%s2074 + $0xd0] sm:$0xff]
        %v2102 = vld [vmem:[%s2074 + $0xd8] sm:$0xff]
        %v2103 = vld [vmem:[%s2074 + $0xe0] sm:$0xff]
        %v2104 = vld [vmem:[%s2074 + $0xe8] sm:$0xff]
        %v2105 = vld [vmem:[%s2074 + $0xf0] sm:$0xff]
        %v2106 = vld [vmem:[%s2074 + $0xf8] sm:$0xff]
        %v2107 = vunpack.c.l.bf16 %v2075
        %v2108 = vunpack.c.h.bf16 %v2075
        %v2109 = vunpack.c.l.bf16 %v2076
        %v2110 = vunpack.c.h.bf16 %v2076
        %v2111 = vunpack.c.l.bf16 %v2077
        %v2112 = vunpack.c.h.bf16 %v2077
        %v2113 = vunpack.c.l.bf16 %v2078
        %v2114 = vunpack.c.h.bf16 %v2078
        %v2115 = vunpack.c.l.bf16 %v2079
        %v2116 = vunpack.c.h.bf16 %v2079
        %v2117 = vunpack.c.l.bf16 %v2080
        %v2118 = vunpack.c.h.bf16 %v2080
        %v2119 = vunpack.c.l.bf16 %v2081
        %v2120 = vunpack.c.h.bf16 %v2081
        %v2121 = vunpack.c.l.bf16 %v2082
        %v2122 = vunpack.c.h.bf16 %v2082
        %v2123 = vunpack.c.l.bf16 %v2083
        %v2124 = vunpack.c.h.bf16 %v2083
        %v2125 = vunpack.c.l.bf16 %v2084
        %v2126 = vunpack.c.h.bf16 %v2084
        %v2127 = vunpack.c.l.bf16 %v2085
        %v2128 = vunpack.c.h.bf16 %v2085
        %v2129 = vunpack.c.l.bf16 %v2086
        %v2130 = vunpack.c.h.bf16 %v2086
        %v2131 = vunpack.c.l.bf16 %v2087
        %v2132 = vunpack.c.h.bf16 %v2087
        %v2133 = vunpack.c.l.bf16 %v2088
        %v2134 = vunpack.c.h.bf16 %v2088
        %v2135 = vunpack.c.l.bf16 %v2089
        %v2136 = vunpack.c.h.bf16 %v2089
        %v2137 = vunpack.c.l.bf16 %v2090
        %v2138 = vunpack.c.h.bf16 %v2090
        %v2139 = vunpack.c.l.bf16 %v2091
        %v2140 = vunpack.c.h.bf16 %v2091
        %v2141 = vunpack.c.l.bf16 %v2092
        %v2142 = vunpack.c.h.bf16 %v2092
        %v2143 = vunpack.c.l.bf16 %v2093
        %v2144 = vunpack.c.h.bf16 %v2093
        %v2145 = vunpack.c.l.bf16 %v2094
        %v2146 = vunpack.c.h.bf16 %v2094
        %v2147 = vunpack.c.l.bf16 %v2095
        %v2148 = vunpack.c.h.bf16 %v2095
        %v2149 = vunpack.c.l.bf16 %v2096
        %v2150 = vunpack.c.h.bf16 %v2096
        %v2151 = vunpack.c.l.bf16 %v2097
        %v2152 = vunpack.c.h.bf16 %v2097
        %v2153 = vunpack.c.l.bf16 %v2098
        %v2154 = vunpack.c.h.bf16 %v2098
        %v2155 = vunpack.c.l.bf16 %v2099
        %v2156 = vunpack.c.h.bf16 %v2099
        %v2157 = vunpack.c.l.bf16 %v2100
        %v2158 = vunpack.c.h.bf16 %v2100
        %v2159 = vunpack.c.l.bf16 %v2101
        %v2160 = vunpack.c.h.bf16 %v2101
        %v2161 = vunpack.c.l.bf16 %v2102
        %v2162 = vunpack.c.h.bf16 %v2102
        %v2163 = vunpack.c.l.bf16 %v2103
        %v2164 = vunpack.c.h.bf16 %v2103
        %v2165 = vunpack.c.l.bf16 %v2104
        %v2166 = vunpack.c.h.bf16 %v2104
        %v2167 = vunpack.c.l.bf16 %v2105
        %v2168 = vunpack.c.h.bf16 %v2105
        %v2169 = vunpack.c.l.bf16 %v2106
        %v2170 = vunpack.c.h.bf16 %v2106
        %v2187 = vsel %vm933, %v1169, %v1167
        %v2188 = vsel %vm935, %v1171, %v2187
        %v2189 = vsel %vm937, %v1173, %v2188
        %v2190 = vsel %vm939, %v1175, %v2189
        %v2191 = vsel %vm941, %v1177, %v2190
        %v2192 = vsel %vm943, %v1179, %v2191
        %v2193 = vsel %vm945, %v1181, %v2192
        %v2194 = vsel %vm933, %v1170, %v1168
        %v2195 = vsel %vm935, %v1172, %v2194
        %v2196 = vsel %vm937, %v1174, %v2195
        %v2197 = vsel %vm939, %v1176, %v2196
        %v2198 = vsel %vm941, %v1178, %v2197
        %v2199 = vsel %vm943, %v1180, %v2198
        %v2200 = vsel %vm945, %v1182, %v2199
        %2203 = vmatprep.subr.mxu0 %v2138
        %2204 = vmatpush1.msra.mxu0 %v2137
        %2205 = vmatprep.subr.mxu0 %v2136
        %2206 = vmatpush1.msra.mxu0 %v2135
        %2207 = vmatprep.subr.mxu0 %v2134
        %2208 = vmatpush1.msra.mxu0 %v2133
        %2209 = vmatprep.subr.mxu0 %v2132
        %2210 = vmatpush1.msra.mxu0 %v2131
        %2211 = vmatprep.subr.mxu0 %v2130
        %2212 = vmatpush1.msra.mxu0 %v2129
        %2213 = vmatprep.subr.mxu0 %v2128
        %2214 = vmatpush1.msra.mxu0 %v2127
        %2215 = vmatprep.subr.mxu0 %v2126
        %2216 = vmatpush1.msra.mxu0 %v2125
        %2217 = vmatprep.subr.mxu0 %v2124
        %2218 = vmatpush1.msra.mxu0 %v2123
        %2219 = vmatprep.subr.mxu0 %v2122
        %2220 = vmatpush1.msra.mxu0 %v2121
        %2221 = vmatprep.subr.mxu0 %v2120
        %2222 = vmatpush1.msra.mxu0 %v2119
        %2223 = vmatprep.subr.mxu0 %v2118
        %2224 = vmatpush1.msra.mxu0 %v2117
        %2225 = vmatprep.subr.mxu0 %v2116
        %2226 = vmatpush1.msra.mxu0 %v2115
        %2227 = vmatprep.subr.mxu0 %v2114
        %2228 = vmatpush1.msra.mxu0 %v2113
        %2229 = vmatprep.subr.mxu0 %v2112
        %2230 = vmatpush1.msra.mxu0 %v2111
        %2231 = vmatprep.subr.mxu0 %v2110
        %2232 = vmatpush1.msra.mxu0 %v2109
        %2233 = vmatprep.subr.mxu0 %v2108
        %2234 = vmatpush1.msra.mxu0 %v2107
        %2235 = vmatprep.subr.mxu0 %v2170
        %2236 = vmatpush2.msra.mxu0 %v2169
        %2237 = vmatprep.subr.mxu0 %v2168
        %2238 = vmatpush2.msra.mxu0 %v2167
        %2239 = vmatprep.subr.mxu0 %v2166
        %2240 = vmatpush2.msra.mxu0 %v2165
        %2241 = vmatprep.subr.mxu0 %v2164
        %2242 = vmatpush2.msra.mxu0 %v2163
        %2243 = vmatprep.subr.mxu0 %v2162
        %2244 = vmatpush2.msra.mxu0 %v2161
        %2245 = vmatprep.subr.mxu0 %v2160
        %2246 = vmatpush2.msra.mxu0 %v2159
        %2247 = vmatprep.subr.mxu0 %v2158
        %2248 = vmatpush2.msra.mxu0 %v2157
        %2249 = vmatprep.subr.mxu0 %v2156
        %2250 = vmatpush2.msra.mxu0 %v2155
        %2251 = vmatprep.subr.mxu0 %v2154
        %2252 = vmatpush2.msra.mxu0 %v2153
        %2253 = vmatprep.subr.mxu0 %v2152
        %2254 = vmatpush2.msra.mxu0 %v2151
        %2255 = vmatprep.subr.mxu0 %v2150
        %2256 = vmatpush2.msra.mxu0 %v2149
        %2257 = vmatprep.subr.mxu0 %v2148
        %2258 = vmatpush2.msra.mxu0 %v2147
        %2259 = vmatprep.subr.mxu0 %v2146
        %2260 = vmatpush2.msra.mxu0 %v2145
        %2261 = vmatprep.subr.mxu0 %v2144
        %2262 = vmatpush2.msra.mxu0 %v2143
        %2263 = vmatprep.subr.mxu0 %v2142
        %2264 = vmatpush2.msra.mxu0 %v2141
        %2265 = vmatprep.subr.mxu0 %v2140
        %2266 = vmatpush2.msra.mxu0 %v2139
        %2267 = vmatprep.mubr.f32.mxu0 %v2200
        %2268 = vmatmul.mubr.f32.gmra.mxu0 %v2193
        %v2269 = vpop.f32.mrf.mxu0
        %v2270 = vadd.f32 0.0, %v2269
        %v2271 = vpop.f32.mrf.mxu0
        %v2272 = vadd.f32 0.0, %v2271
        %2273 = vdwg.mxu0
        %2274 = vset.pattern.permute.xlu0 1
        %2275 = vperm.xlu0 %2274, %v1863
        %v2276 = vpop.permute.xlu0 %2275
        %v2278 = vmul.f32 %v2270, %v2276
        %v2279 = vmul.f32 %v2272, %v2276
        %2280 = vst [vmem:[%s242 + $0x10] sm:$0xff] %v2278
        %2281 = vst [vmem:[%s242 + $0x18] sm:$0xff] %v2279
        %s2282 = scalar_lea.vmem [#allocation5], 512
        %v2283 = vld [vmem:[%s2282] sm:$0xff]
        %v2284 = vld [vmem:[%s2282 + $0x8] sm:$0xff]
        %v2285 = vld [vmem:[%s2282 + $0x10] sm:$0xff]
        %v2286 = vld [vmem:[%s2282 + $0x18] sm:$0xff]
        %v2287 = vld [vmem:[%s2282 + $0x20] sm:$0xff]
        %v2288 = vld [vmem:[%s2282 + $0x28] sm:$0xff]
        %v2289 = vld [vmem:[%s2282 + $0x30] sm:$0xff]
        %v2290 = vld [vmem:[%s2282 + $0x38] sm:$0xff]
        %v2291 = vld [vmem:[%s2282 + $0x40] sm:$0xff]
        %v2292 = vld [vmem:[%s2282 + $0x48] sm:$0xff]
        %v2293 = vld [vmem:[%s2282 + $0x50] sm:$0xff]
        %v2294 = vld [vmem:[%s2282 + $0x58] sm:$0xff]
        %v2295 = vld [vmem:[%s2282 + $0x60] sm:$0xff]
        %v2296 = vld [vmem:[%s2282 + $0x68] sm:$0xff]
        %v2297 = vld [vmem:[%s2282 + $0x70] sm:$0xff]
        %v2298 = vld [vmem:[%s2282 + $0x78] sm:$0xff]
        %v2299 = vld [vmem:[%s2282 + $0x80] sm:$0xff]
        %v2300 = vld [vmem:[%s2282 + $0x88] sm:$0xff]
        %v2301 = vld [vmem:[%s2282 + $0x90] sm:$0xff]
        %v2302 = vld [vmem:[%s2282 + $0x98] sm:$0xff]
        %v2303 = vld [vmem:[%s2282 + $0xa0] sm:$0xff]
        %v2304 = vld [vmem:[%s2282 + $0xa8] sm:$0xff]
        %v2305 = vld [vmem:[%s2282 + $0xb0] sm:$0xff]
        %v2306 = vld [vmem:[%s2282 + $0xb8] sm:$0xff]
        %v2307 = vld [vmem:[%s2282 + $0xc0] sm:$0xff]
        %v2308 = vld [vmem:[%s2282 + $0xc8] sm:$0xff]
        %v2309 = vld [vmem:[%s2282 + $0xd0] sm:$0xff]
        %v2310 = vld [vmem:[%s2282 + $0xd8] sm:$0xff]
        %v2311 = vld [vmem:[%s2282 + $0xe0] sm:$0xff]
        %v2312 = vld [vmem:[%s2282 + $0xe8] sm:$0xff]
        %v2313 = vld [vmem:[%s2282 + $0xf0] sm:$0xff]
        %v2314 = vld [vmem:[%s2282 + $0xf8] sm:$0xff]
        %v2315 = vunpack.c.l.bf16 %v2283
        %v2316 = vunpack.c.h.bf16 %v2283
        %v2317 = vunpack.c.l.bf16 %v2284
        %v2318 = vunpack.c.h.bf16 %v2284
        %v2319 = vunpack.c.l.bf16 %v2285
        %v2320 = vunpack.c.h.bf16 %v2285
        %v2321 = vunpack.c.l.bf16 %v2286
        %v2322 = vunpack.c.h.bf16 %v2286
        %v2323 = vunpack.c.l.bf16 %v2287
        %v2324 = vunpack.c.h.bf16 %v2287
        %v2325 = vunpack.c.l.bf16 %v2288
        %v2326 = vunpack.c.h.bf16 %v2288
        %v2327 = vunpack.c.l.bf16 %v2289
        %v2328 = vunpack.c.h.bf16 %v2289
        %v2329 = vunpack.c.l.bf16 %v2290
        %v2330 = vunpack.c.h.bf16 %v2290
        %v2331 = vunpack.c.l.bf16 %v2291
        %v2332 = vunpack.c.h.bf16 %v2291
        %v2333 = vunpack.c.l.bf16 %v2292
        %v2334 = vunpack.c.h.bf16 %v2292
        %v2335 = vunpack.c.l.bf16 %v2293
        %v2336 = vunpack.c.h.bf16 %v2293
        %v2337 = vunpack.c.l.bf16 %v2294
        %v2338 = vunpack.c.h.bf16 %v2294
        %v2339 = vunpack.c.l.bf16 %v2295
        %v2340 = vunpack.c.h.bf16 %v2295
        %v2341 = vunpack.c.l.bf16 %v2296
        %v2342 = vunpack.c.h.bf16 %v2296
        %v2343 = vunpack.c.l.bf16 %v2297
        %v2344 = vunpack.c.h.bf16 %v2297
        %v2345 = vunpack.c.l.bf16 %v2298
        %v2346 = vunpack.c.h.bf16 %v2298
        %v2347 = vunpack.c.l.bf16 %v2299
        %v2348 = vunpack.c.h.bf16 %v2299
        %v2349 = vunpack.c.l.bf16 %v2300
        %v2350 = vunpack.c.h.bf16 %v2300
        %v2351 = vunpack.c.l.bf16 %v2301
        %v2352 = vunpack.c.h.bf16 %v2301
        %v2353 = vunpack.c.l.bf16 %v2302
        %v2354 = vunpack.c.h.bf16 %v2302
        %v2355 = vunpack.c.l.bf16 %v2303
        %v2356 = vunpack.c.h.bf16 %v2303
        %v2357 = vunpack.c.l.bf16 %v2304
        %v2358 = vunpack.c.h.bf16 %v2304
        %v2359 = vunpack.c.l.bf16 %v2305
        %v2360 = vunpack.c.h.bf16 %v2305
        %v2361 = vunpack.c.l.bf16 %v2306
        %v2362 = vunpack.c.h.bf16 %v2306
        %v2363 = vunpack.c.l.bf16 %v2307
        %v2364 = vunpack.c.h.bf16 %v2307
        %v2365 = vunpack.c.l.bf16 %v2308
        %v2366 = vunpack.c.h.bf16 %v2308
        %v2367 = vunpack.c.l.bf16 %v2309
        %v2368 = vunpack.c.h.bf16 %v2309
        %v2369 = vunpack.c.l.bf16 %v2310
        %v2370 = vunpack.c.h.bf16 %v2310
        %v2371 = vunpack.c.l.bf16 %v2311
        %v2372 = vunpack.c.h.bf16 %v2311
        %v2373 = vunpack.c.l.bf16 %v2312
        %v2374 = vunpack.c.h.bf16 %v2312
        %v2375 = vunpack.c.l.bf16 %v2313
        %v2376 = vunpack.c.h.bf16 %v2313
        %v2377 = vunpack.c.l.bf16 %v2314
        %v2378 = vunpack.c.h.bf16 %v2314
        %v2395 = vsel %vm933, %v1281, %v1279
        %v2396 = vsel %vm935, %v1283, %v2395
        %v2397 = vsel %vm937, %v1285, %v2396
        %v2398 = vsel %vm939, %v1287, %v2397
        %v2399 = vsel %vm941, %v1289, %v2398
        %v2400 = vsel %vm943, %v1291, %v2399
        %v2401 = vsel %vm945, %v1293, %v2400
        %v2402 = vsel %vm933, %v1282, %v1280
        %v2403 = vsel %vm935, %v1284, %v2402
        %v2404 = vsel %vm937, %v1286, %v2403
        %v2405 = vsel %vm939, %v1288, %v2404
        %v2406 = vsel %vm941, %v1290, %v2405
        %v2407 = vsel %vm943, %v1292, %v2406
        %v2408 = vsel %vm945, %v1294, %v2407
        %2411 = vmatprep.subr.mxu0 %v2346
        %2412 = vmatpush1.msra.mxu0 %v2345
        %2413 = vmatprep.subr.mxu0 %v2344
        %2414 = vmatpush1.msra.mxu0 %v2343
        %2415 = vmatprep.subr.mxu0 %v2342
        %2416 = vmatpush1.msra.mxu0 %v2341
        %2417 = vmatprep.subr.mxu0 %v2340
        %2418 = vmatpush1.msra.mxu0 %v2339
        %2419 = vmatprep.subr.mxu0 %v2338
        %2420 = vmatpush1.msra.mxu0 %v2337
        %2421 = vmatprep.subr.mxu0 %v2336
        %2422 = vmatpush1.msra.mxu0 %v2335
        %2423 = vmatprep.subr.mxu0 %v2334
        %2424 = vmatpush1.msra.mxu0 %v2333
        %2425 = vmatprep.subr.mxu0 %v2332
        %2426 = vmatpush1.msra.mxu0 %v2331
        %2427 = vmatprep.subr.mxu0 %v2330
        %2428 = vmatpush1.msra.mxu0 %v2329
        %2429 = vmatprep.subr.mxu0 %v2328
        %2430 = vmatpush1.msra.mxu0 %v2327
        %2431 = vmatprep.subr.mxu0 %v2326
        %2432 = vmatpush1.msra.mxu0 %v2325
        %2433 = vmatprep.subr.mxu0 %v2324
        %2434 = vmatpush1.msra.mxu0 %v2323
        %2435 = vmatprep.subr.mxu0 %v2322
        %2436 = vmatpush1.msra.mxu0 %v2321
        %2437 = vmatprep.subr.mxu0 %v2320
        %2438 = vmatpush1.msra.mxu0 %v2319
        %2439 = vmatprep.subr.mxu0 %v2318
        %2440 = vmatpush1.msra.mxu0 %v2317
        %2441 = vmatprep.subr.mxu0 %v2316
        %2442 = vmatpush1.msra.mxu0 %v2315
        %2443 = vmatprep.subr.mxu0 %v2378
        %2444 = vmatpush2.msra.mxu0 %v2377
        %2445 = vmatprep.subr.mxu0 %v2376
        %2446 = vmatpush2.msra.mxu0 %v2375
        %2447 = vmatprep.subr.mxu0 %v2374
        %2448 = vmatpush2.msra.mxu0 %v2373
        %2449 = vmatprep.subr.mxu0 %v2372
        %2450 = vmatpush2.msra.mxu0 %v2371
        %2451 = vmatprep.subr.mxu0 %v2370
        %2452 = vmatpush2.msra.mxu0 %v2369
        %2453 = vmatprep.subr.mxu0 %v2368
        %2454 = vmatpush2.msra.mxu0 %v2367
        %2455 = vmatprep.subr.mxu0 %v2366
        %2456 = vmatpush2.msra.mxu0 %v2365
        %2457 = vmatprep.subr.mxu0 %v2364
        %2458 = vmatpush2.msra.mxu0 %v2363
        %2459 = vmatprep.subr.mxu0 %v2362
        %2460 = vmatpush2.msra.mxu0 %v2361
        %2461 = vmatprep.subr.mxu0 %v2360
        %2462 = vmatpush2.msra.mxu0 %v2359
        %2463 = vmatprep.subr.mxu0 %v2358
        %2464 = vmatpush2.msra.mxu0 %v2357
        %2465 = vmatprep.subr.mxu0 %v2356
        %2466 = vmatpush2.msra.mxu0 %v2355
        %2467 = vmatprep.subr.mxu0 %v2354
        %2468 = vmatpush2.msra.mxu0 %v2353
        %2469 = vmatprep.subr.mxu0 %v2352
        %2470 = vmatpush2.msra.mxu0 %v2351
        %2471 = vmatprep.subr.mxu0 %v2350
        %2472 = vmatpush2.msra.mxu0 %v2349
        %2473 = vmatprep.subr.mxu0 %v2348
        %2474 = vmatpush2.msra.mxu0 %v2347
        %2475 = vmatprep.mubr.f32.mxu0 %v2408
        %2476 = vmatmul.mubr.f32.gmra.mxu0 %v2401
        %v2477 = vpop.f32.mrf.mxu0
        %v2478 = vadd.f32 0.0, %v2477
        %v2479 = vpop.f32.mrf.mxu0
        %v2480 = vadd.f32 0.0, %v2479
        %2481 = vdwg.mxu0
        %2482 = vset.pattern.permute.xlu0 2
        %2483 = vperm.xlu0 %2482, %v1863
        %v2484 = vpop.permute.xlu0 %2483
        %v2486 = vmul.f32 %v2478, %v2484
        %v2487 = vmul.f32 %v2480, %v2484
        %2488 = vst [vmem:[%s242 + $0x20] sm:$0xff] %v2486
        %2489 = vst [vmem:[%s242 + $0x28] sm:$0xff] %v2487
        %s2490 = scalar_lea.vmem [#allocation5], 768
        %v2491 = vld [vmem:[%s2490] sm:$0xff]
        %v2492 = vld [vmem:[%s2490 + $0x8] sm:$0xff]
        %v2493 = vld [vmem:[%s2490 + $0x10] sm:$0xff]
        %v2494 = vld [vmem:[%s2490 + $0x18] sm:$0xff]
        %v2495 = vld [vmem:[%s2490 + $0x20] sm:$0xff]
        %v2496 = vld [vmem:[%s2490 + $0x28] sm:$0xff]
        %v2497 = vld [vmem:[%s2490 + $0x30] sm:$0xff]
        %v2498 = vld [vmem:[%s2490 + $0x38] sm:$0xff]
        %v2499 = vld [vmem:[%s2490 + $0x40] sm:$0xff]
        %v2500 = vld [vmem:[%s2490 + $0x48] sm:$0xff]
        %v2501 = vld [vmem:[%s2490 + $0x50] sm:$0xff]
        %v2502 = vld [vmem:[%s2490 + $0x58] sm:$0xff]
        %v2503 = vld [vmem:[%s2490 + $0x60] sm:$0xff]
        %v2504 = vld [vmem:[%s2490 + $0x68] sm:$0xff]
        %v2505 = vld [vmem:[%s2490 + $0x70] sm:$0xff]
        %v2506 = vld [vmem:[%s2490 + $0x78] sm:$0xff]
        %v2507 = vld [vmem:[%s2490 + $0x80] sm:$0xff]
        %v2508 = vld [vmem:[%s2490 + $0x88] sm:$0xff]
        %v2509 = vld [vmem:[%s2490 + $0x90] sm:$0xff]
        %v2510 = vld [vmem:[%s2490 + $0x98] sm:$0xff]
        %v2511 = vld [vmem:[%s2490 + $0xa0] sm:$0xff]
        %v2512 = vld [vmem:[%s2490 + $0xa8] sm:$0xff]
        %v2513 = vld [vmem:[%s2490 + $0xb0] sm:$0xff]
        %v2514 = vld [vmem:[%s2490 + $0xb8] sm:$0xff]
        %v2515 = vld [vmem:[%s2490 + $0xc0] sm:$0xff]
        %v2516 = vld [vmem:[%s2490 + $0xc8] sm:$0xff]
        %v2517 = vld [vmem:[%s2490 + $0xd0] sm:$0xff]
        %v2518 = vld [vmem:[%s2490 + $0xd8] sm:$0xff]
        %v2519 = vld [vmem:[%s2490 + $0xe0] sm:$0xff]
        %v2520 = vld [vmem:[%s2490 + $0xe8] sm:$0xff]
        %v2521 = vld [vmem:[%s2490 + $0xf0] sm:$0xff]
        %v2522 = vld [vmem:[%s2490 + $0xf8] sm:$0xff]
        %v2523 = vunpack.c.l.bf16 %v2491
        %v2524 = vunpack.c.h.bf16 %v2491
        %v2525 = vunpack.c.l.bf16 %v2492
        %v2526 = vunpack.c.h.bf16 %v2492
        %v2527 = vunpack.c.l.bf16 %v2493
        %v2528 = vunpack.c.h.bf16 %v2493
        %v2529 = vunpack.c.l.bf16 %v2494
        %v2530 = vunpack.c.h.bf16 %v2494
        %v2531 = vunpack.c.l.bf16 %v2495
        %v2532 = vunpack.c.h.bf16 %v2495
        %v2533 = vunpack.c.l.bf16 %v2496
        %v2534 = vunpack.c.h.bf16 %v2496
        %v2535 = vunpack.c.l.bf16 %v2497
        %v2536 = vunpack.c.h.bf16 %v2497
        %v2537 = vunpack.c.l.bf16 %v2498
        %v2538 = vunpack.c.h.bf16 %v2498
        %v2539 = vunpack.c.l.bf16 %v2499
        %v2540 = vunpack.c.h.bf16 %v2499
        %v2541 = vunpack.c.l.bf16 %v2500
        %v2542 = vunpack.c.h.bf16 %v2500
        %v2543 = vunpack.c.l.bf16 %v2501
        %v2544 = vunpack.c.h.bf16 %v2501
        %v2545 = vunpack.c.l.bf16 %v2502
        %v2546 = vunpack.c.h.bf16 %v2502
        %v2547 = vunpack.c.l.bf16 %v2503
        %v2548 = vunpack.c.h.bf16 %v2503
        %v2549 = vunpack.c.l.bf16 %v2504
        %v2550 = vunpack.c.h.bf16 %v2504
        %v2551 = vunpack.c.l.bf16 %v2505
        %v2552 = vunpack.c.h.bf16 %v2505
        %v2553 = vunpack.c.l.bf16 %v2506
        %v2554 = vunpack.c.h.bf16 %v2506
        %v2555 = vunpack.c.l.bf16 %v2507
        %v2556 = vunpack.c.h.bf16 %v2507
        %v2557 = vunpack.c.l.bf16 %v2508
        %v2558 = vunpack.c.h.bf16 %v2508
        %v2559 = vunpack.c.l.bf16 %v2509
        %v2560 = vunpack.c.h.bf16 %v2509
        %v2561 = vunpack.c.l.bf16 %v2510
        %v2562 = vunpack.c.h.bf16 %v2510
        %v2563 = vunpack.c.l.bf16 %v2511
        %v2564 = vunpack.c.h.bf16 %v2511
        %v2565 = vunpack.c.l.bf16 %v2512
        %v2566 = vunpack.c.h.bf16 %v2512
        %v2567 = vunpack.c.l.bf16 %v2513
        %v2568 = vunpack.c.h.bf16 %v2513
        %v2569 = vunpack.c.l.bf16 %v2514
        %v2570 = vunpack.c.h.bf16 %v2514
        %v2571 = vunpack.c.l.bf16 %v2515
        %v2572 = vunpack.c.h.bf16 %v2515
        %v2573 = vunpack.c.l.bf16 %v2516
        %v2574 = vunpack.c.h.bf16 %v2516
        %v2575 = vunpack.c.l.bf16 %v2517
        %v2576 = vunpack.c.h.bf16 %v2517
        %v2577 = vunpack.c.l.bf16 %v2518
        %v2578 = vunpack.c.h.bf16 %v2518
        %v2579 = vunpack.c.l.bf16 %v2519
        %v2580 = vunpack.c.h.bf16 %v2519
        %v2581 = vunpack.c.l.bf16 %v2520
        %v2582 = vunpack.c.h.bf16 %v2520
        %v2583 = vunpack.c.l.bf16 %v2521
        %v2584 = vunpack.c.h.bf16 %v2521
        %v2585 = vunpack.c.l.bf16 %v2522
        %v2586 = vunpack.c.h.bf16 %v2522
        %v2603 = vsel %vm933, %v1393, %v1391
        %v2604 = vsel %vm935, %v1395, %v2603
        %v2605 = vsel %vm937, %v1397, %v2604
        %v2606 = vsel %vm939, %v1399, %v2605
        %v2607 = vsel %vm941, %v1401, %v2606
        %v2608 = vsel %vm943, %v1403, %v2607
        %v2609 = vsel %vm945, %v1405, %v2608
        %v2610 = vsel %vm933, %v1394, %v1392
        %v2611 = vsel %vm935, %v1396, %v2610
        %v2612 = vsel %vm937, %v1398, %v2611
        %v2613 = vsel %vm939, %v1400, %v2612
        %v2614 = vsel %vm941, %v1402, %v2613
        %v2615 = vsel %vm943, %v1404, %v2614
        %v2616 = vsel %vm945, %v1406, %v2615
        %2619 = vmatprep.subr.mxu0 %v2554
        %2620 = vmatpush1.msra.mxu0 %v2553
        %2621 = vmatprep.subr.mxu0 %v2552
        %2622 = vmatpush1.msra.mxu0 %v2551
        %2623 = vmatprep.subr.mxu0 %v2550
        %2624 = vmatpush1.msra.mxu0 %v2549
        %2625 = vmatprep.subr.mxu0 %v2548
        %2626 = vmatpush1.msra.mxu0 %v2547
        %2627 = vmatprep.subr.mxu0 %v2546
        %2628 = vmatpush1.msra.mxu0 %v2545
        %2629 = vmatprep.subr.mxu0 %v2544
        %2630 = vmatpush1.msra.mxu0 %v2543
        %2631 = vmatprep.subr.mxu0 %v2542
        %2632 = vmatpush1.msra.mxu0 %v2541
        %2633 = vmatprep.subr.mxu0 %v2540
        %2634 = vmatpush1.msra.mxu0 %v2539
        %2635 = vmatprep.subr.mxu0 %v2538
        %2636 = vmatpush1.msra.mxu0 %v2537
        %2637 = vmatprep.subr.mxu0 %v2536
        %2638 = vmatpush1.msra.mxu0 %v2535
        %2639 = vmatprep.subr.mxu0 %v2534
        %2640 = vmatpush1.msra.mxu0 %v2533
        %2641 = vmatprep.subr.mxu0 %v2532
        %2642 = vmatpush1.msra.mxu0 %v2531
        %2643 = vmatprep.subr.mxu0 %v2530
        %2644 = vmatpush1.msra.mxu0 %v2529
        %2645 = vmatprep.subr.mxu0 %v2528
        %2646 = vmatpush1.msra.mxu0 %v2527
        %2647 = vmatprep.subr.mxu0 %v2526
        %2648 = vmatpush1.msra.mxu0 %v2525
        %2649 = vmatprep.subr.mxu0 %v2524
        %2650 = vmatpush1.msra.mxu0 %v2523
        %2651 = vmatprep.subr.mxu0 %v2586
        %2652 = vmatpush2.msra.mxu0 %v2585
        %2653 = vmatprep.subr.mxu0 %v2584
        %2654 = vmatpush2.msra.mxu0 %v2583
        %2655 = vmatprep.subr.mxu0 %v2582
        %2656 = vmatpush2.msra.mxu0 %v2581
        %2657 = vmatprep.subr.mxu0 %v2580
        %2658 = vmatpush2.msra.mxu0 %v2579
        %2659 = vmatprep.subr.mxu0 %v2578
        %2660 = vmatpush2.msra.mxu0 %v2577
        %2661 = vmatprep.subr.mxu0 %v2576
        %2662 = vmatpush2.msra.mxu0 %v2575
        %2663 = vmatprep.subr.mxu0 %v2574
        %2664 = vmatpush2.msra.mxu0 %v2573
        %2665 = vmatprep.subr.mxu0 %v2572
        %2666 = vmatpush2.msra.mxu0 %v2571
        %2667 = vmatprep.subr.mxu0 %v2570
        %2668 = vmatpush2.msra.mxu0 %v2569
        %2669 = vmatprep.subr.mxu0 %v2568
        %2670 = vmatpush2.msra.mxu0 %v2567
        %2671 = vmatprep.subr.mxu0 %v2566
        %2672 = vmatpush2.msra.mxu0 %v2565
        %2673 = vmatprep.subr.mxu0 %v2564
        %2674 = vmatpush2.msra.mxu0 %v2563
        %2675 = vmatprep.subr.mxu0 %v2562
        %2676 = vmatpush2.msra.mxu0 %v2561
        %2677 = vmatprep.subr.mxu0 %v2560
        %2678 = vmatpush2.msra.mxu0 %v2559
        %2679 = vmatprep.subr.mxu0 %v2558
        %2680 = vmatpush2.msra.mxu0 %v2557
        %2681 = vmatprep.subr.mxu0 %v2556
        %2682 = vmatpush2.msra.mxu0 %v2555
        %2683 = vmatprep.mubr.f32.mxu0 %v2616
        %2684 = vmatmul.mubr.f32.gmra.mxu0 %v2609
        %v2685 = vpop.f32.mrf.mxu0
        %v2686 = vadd.f32 0.0, %v2685
        %v2687 = vpop.f32.mrf.mxu0
        %v2688 = vadd.f32 0.0, %v2687
        %2689 = vdwg.mxu0
        %2690 = vset.pattern.permute.xlu0 3
        %2691 = vperm.xlu0 %2690, %v1863
        %v2692 = vpop.permute.xlu0 %2691
        %v2694 = vmul.f32 %v2686, %v2692
        %v2695 = vmul.f32 %v2688, %v2692
        %2696 = vst [vmem:[%s242 + $0x30] sm:$0xff] %v2694
        %2697 = vst [vmem:[%s242 + $0x38] sm:$0xff] %v2695
        %s2698 = scalar_lea.vmem [#allocation5], 1024
        %v2699 = vld [vmem:[%s2698] sm:$0xff]
        %v2700 = vld [vmem:[%s2698 + $0x8] sm:$0xff]
        %v2701 = vld [vmem:[%s2698 + $0x10] sm:$0xff]
        %v2702 = vld [vmem:[%s2698 + $0x18] sm:$0xff]
        %v2703 = vld [vmem:[%s2698 + $0x20] sm:$0xff]
        %v2704 = vld [vmem:[%s2698 + $0x28] sm:$0xff]
        %v2705 = vld [vmem:[%s2698 + $0x30] sm:$0xff]
        %v2706 = vld [vmem:[%s2698 + $0x38] sm:$0xff]
        %v2707 = vld [vmem:[%s2698 + $0x40] sm:$0xff]
        %v2708 = vld [vmem:[%s2698 + $0x48] sm:$0xff]
        %v2709 = vld [vmem:[%s2698 + $0x50] sm:$0xff]
        %v2710 = vld [vmem:[%s2698 + $0x58] sm:$0xff]
        %v2711 = vld [vmem:[%s2698 + $0x60] sm:$0xff]
        %v2712 = vld [vmem:[%s2698 + $0x68] sm:$0xff]
        %v2713 = vld [vmem:[%s2698 + $0x70] sm:$0xff]
        %v2714 = vld [vmem:[%s2698 + $0x78] sm:$0xff]
        %v2715 = vld [vmem:[%s2698 + $0x80] sm:$0xff]
        %v2716 = vld [vmem:[%s2698 + $0x88] sm:$0xff]
        %v2717 = vld [vmem:[%s2698 + $0x90] sm:$0xff]
        %v2718 = vld [vmem:[%s2698 + $0x98] sm:$0xff]
        %v2719 = vld [vmem:[%s2698 + $0xa0] sm:$0xff]
        %v2720 = vld [vmem:[%s2698 + $0xa8] sm:$0xff]
        %v2721 = vld [vmem:[%s2698 + $0xb0] sm:$0xff]
        %v2722 = vld [vmem:[%s2698 + $0xb8] sm:$0xff]
        %v2723 = vld [vmem:[%s2698 + $0xc0] sm:$0xff]
        %v2724 = vld [vmem:[%s2698 + $0xc8] sm:$0xff]
        %v2725 = vld [vmem:[%s2698 + $0xd0] sm:$0xff]
        %v2726 = vld [vmem:[%s2698 + $0xd8] sm:$0xff]
        %v2727 = vld [vmem:[%s2698 + $0xe0] sm:$0xff]
        %v2728 = vld [vmem:[%s2698 + $0xe8] sm:$0xff]
        %v2729 = vld [vmem:[%s2698 + $0xf0] sm:$0xff]
        %v2730 = vld [vmem:[%s2698 + $0xf8] sm:$0xff]
        %v2731 = vunpack.c.l.bf16 %v2699
        %v2732 = vunpack.c.h.bf16 %v2699
        %v2733 = vunpack.c.l.bf16 %v2700
        %v2734 = vunpack.c.h.bf16 %v2700
        %v2735 = vunpack.c.l.bf16 %v2701
        %v2736 = vunpack.c.h.bf16 %v2701
        %v2737 = vunpack.c.l.bf16 %v2702
        %v2738 = vunpack.c.h.bf16 %v2702
        %v2739 = vunpack.c.l.bf16 %v2703
        %v2740 = vunpack.c.h.bf16 %v2703
        %v2741 = vunpack.c.l.bf16 %v2704
        %v2742 = vunpack.c.h.bf16 %v2704
        %v2743 = vunpack.c.l.bf16 %v2705
        %v2744 = vunpack.c.h.bf16 %v2705
        %v2745 = vunpack.c.l.bf16 %v2706
        %v2746 = vunpack.c.h.bf16 %v2706
        %v2747 = vunpack.c.l.bf16 %v2707
        %v2748 = vunpack.c.h.bf16 %v2707
        %v2749 = vunpack.c.l.bf16 %v2708
        %v2750 = vunpack.c.h.bf16 %v2708
        %v2751 = vunpack.c.l.bf16 %v2709
        %v2752 = vunpack.c.h.bf16 %v2709
        %v2753 = vunpack.c.l.bf16 %v2710
        %v2754 = vunpack.c.h.bf16 %v2710
        %v2755 = vunpack.c.l.bf16 %v2711
        %v2756 = vunpack.c.h.bf16 %v2711
        %v2757 = vunpack.c.l.bf16 %v2712
        %v2758 = vunpack.c.h.bf16 %v2712
        %v2759 = vunpack.c.l.bf16 %v2713
        %v2760 = vunpack.c.h.bf16 %v2713
        %v2761 = vunpack.c.l.bf16 %v2714
        %v2762 = vunpack.c.h.bf16 %v2714
        %v2763 = vunpack.c.l.bf16 %v2715
        %v2764 = vunpack.c.h.bf16 %v2715
        %v2765 = vunpack.c.l.bf16 %v2716
        %v2766 = vunpack.c.h.bf16 %v2716
        %v2767 = vunpack.c.l.bf16 %v2717
        %v2768 = vunpack.c.h.bf16 %v2717
        %v2769 = vunpack.c.l.bf16 %v2718
        %v2770 = vunpack.c.h.bf16 %v2718
        %v2771 = vunpack.c.l.bf16 %v2719
        %v2772 = vunpack.c.h.bf16 %v2719
        %v2773 = vunpack.c.l.bf16 %v2720
        %v2774 = vunpack.c.h.bf16 %v2720
        %v2775 = vunpack.c.l.bf16 %v2721
        %v2776 = vunpack.c.h.bf16 %v2721
        %v2777 = vunpack.c.l.bf16 %v2722
        %v2778 = vunpack.c.h.bf16 %v2722
        %v2779 = vunpack.c.l.bf16 %v2723
        %v2780 = vunpack.c.h.bf16 %v2723
        %v2781 = vunpack.c.l.bf16 %v2724
        %v2782 = vunpack.c.h.bf16 %v2724
        %v2783 = vunpack.c.l.bf16 %v2725
        %v2784 = vunpack.c.h.bf16 %v2725
        %v2785 = vunpack.c.l.bf16 %v2726
        %v2786 = vunpack.c.h.bf16 %v2726
        %v2787 = vunpack.c.l.bf16 %v2727
        %v2788 = vunpack.c.h.bf16 %v2727
        %v2789 = vunpack.c.l.bf16 %v2728
        %v2790 = vunpack.c.h.bf16 %v2728
        %v2791 = vunpack.c.l.bf16 %v2729
        %v2792 = vunpack.c.h.bf16 %v2729
        %v2793 = vunpack.c.l.bf16 %v2730
        %v2794 = vunpack.c.h.bf16 %v2730
        %v2811 = vsel %vm933, %v1505, %v1503
        %v2812 = vsel %vm935, %v1507, %v2811
        %v2813 = vsel %vm937, %v1509, %v2812
        %v2814 = vsel %vm939, %v1511, %v2813
        %v2815 = vsel %vm941, %v1513, %v2814
        %v2816 = vsel %vm943, %v1515, %v2815
        %v2817 = vsel %vm945, %v1517, %v2816
        %v2818 = vsel %vm933, %v1506, %v1504
        %v2819 = vsel %vm935, %v1508, %v2818
        %v2820 = vsel %vm937, %v1510, %v2819
        %v2821 = vsel %vm939, %v1512, %v2820
        %v2822 = vsel %vm941, %v1514, %v2821
        %v2823 = vsel %vm943, %v1516, %v2822
        %v2824 = vsel %vm945, %v1518, %v2823
        %2827 = vmatprep.subr.mxu0 %v2762
        %2828 = vmatpush1.msra.mxu0 %v2761
        %2829 = vmatprep.subr.mxu0 %v2760
        %2830 = vmatpush1.msra.mxu0 %v2759
        %2831 = vmatprep.subr.mxu0 %v2758
        %2832 = vmatpush1.msra.mxu0 %v2757
        %2833 = vmatprep.subr.mxu0 %v2756
        %2834 = vmatpush1.msra.mxu0 %v2755
        %2835 = vmatprep.subr.mxu0 %v2754
        %2836 = vmatpush1.msra.mxu0 %v2753
        %2837 = vmatprep.subr.mxu0 %v2752
        %2838 = vmatpush1.msra.mxu0 %v2751
        %2839 = vmatprep.subr.mxu0 %v2750
        %2840 = vmatpush1.msra.mxu0 %v2749
        %2841 = vmatprep.subr.mxu0 %v2748
        %2842 = vmatpush1.msra.mxu0 %v2747
        %2843 = vmatprep.subr.mxu0 %v2746
        %2844 = vmatpush1.msra.mxu0 %v2745
        %2845 = vmatprep.subr.mxu0 %v2744
        %2846 = vmatpush1.msra.mxu0 %v2743
        %2847 = vmatprep.subr.mxu0 %v2742
        %2848 = vmatpush1.msra.mxu0 %v2741
        %2849 = vmatprep.subr.mxu0 %v2740
        %2850 = vmatpush1.msra.mxu0 %v2739
        %2851 = vmatprep.subr.mxu0 %v2738
        %2852 = vmatpush1.msra.mxu0 %v2737
        %2853 = vmatprep.subr.mxu0 %v2736
        %2854 = vmatpush1.msra.mxu0 %v2735
        %2855 = vmatprep.subr.mxu0 %v2734
        %2856 = vmatpush1.msra.mxu0 %v2733
        %2857 = vmatprep.subr.mxu0 %v2732
        %2858 = vmatpush1.msra.mxu0 %v2731
        %2859 = vmatprep.subr.mxu0 %v2794
        %2860 = vmatpush2.msra.mxu0 %v2793
        %2861 = vmatprep.subr.mxu0 %v2792
        %2862 = vmatpush2.msra.mxu0 %v2791
        %2863 = vmatprep.subr.mxu0 %v2790
        %2864 = vmatpush2.msra.mxu0 %v2789
        %2865 = vmatprep.subr.mxu0 %v2788
        %2866 = vmatpush2.msra.mxu0 %v2787
        %2867 = vmatprep.subr.mxu0 %v2786
        %2868 = vmatpush2.msra.mxu0 %v2785
        %2869 = vmatprep.subr.mxu0 %v2784
        %2870 = vmatpush2.msra.mxu0 %v2783
        %2871 = vmatprep.subr.mxu0 %v2782
        %2872 = vmatpush2.msra.mxu0 %v2781
        %2873 = vmatprep.subr.mxu0 %v2780
        %2874 = vmatpush2.msra.mxu0 %v2779
        %2875 = vmatprep.subr.mxu0 %v2778
        %2876 = vmatpush2.msra.mxu0 %v2777
        %2877 = vmatprep.subr.mxu0 %v2776
        %2878 = vmatpush2.msra.mxu0 %v2775
        %2879 = vmatprep.subr.mxu0 %v2774
        %2880 = vmatpush2.msra.mxu0 %v2773
        %2881 = vmatprep.subr.mxu0 %v2772
        %2882 = vmatpush2.msra.mxu0 %v2771
        %2883 = vmatprep.subr.mxu0 %v2770
        %2884 = vmatpush2.msra.mxu0 %v2769
        %2885 = vmatprep.subr.mxu0 %v2768
        %2886 = vmatpush2.msra.mxu0 %v2767
        %2887 = vmatprep.subr.mxu0 %v2766
        %2888 = vmatpush2.msra.mxu0 %v2765
        %2889 = vmatprep.subr.mxu0 %v2764
        %2890 = vmatpush2.msra.mxu0 %v2763
        %2891 = vmatprep.mubr.f32.mxu0 %v2824
        %2892 = vmatmul.mubr.f32.gmra.mxu0 %v2817
        %v2893 = vpop.f32.mrf.mxu0
        %v2894 = vadd.f32 0.0, %v2893
        %v2895 = vpop.f32.mrf.mxu0
        %v2896 = vadd.f32 0.0, %v2895
        %2897 = vdwg.mxu0
        %2898 = vset.pattern.permute.xlu0 4
        %2899 = vperm.xlu0 %2898, %v1863
        %v2900 = vpop.permute.xlu0 %2899
        %v2902 = vmul.f32 %v2894, %v2900
        %v2903 = vmul.f32 %v2896, %v2900
        %2904 = vst [vmem:[%s242 + $0x40] sm:$0xff] %v2902
        %2905 = vst [vmem:[%s242 + $0x48] sm:$0xff] %v2903
        %s2906 = scalar_lea.vmem [#allocation5], 1280
        %v2907 = vld [vmem:[%s2906] sm:$0xff]
        %v2908 = vld [vmem:[%s2906 + $0x8] sm:$0xff]
        %v2909 = vld [vmem:[%s2906 + $0x10] sm:$0xff]
        %v2910 = vld [vmem:[%s2906 + $0x18] sm:$0xff]
        %v2911 = vld [vmem:[%s2906 + $0x20] sm:$0xff]
        %v2912 = vld [vmem:[%s2906 + $0x28] sm:$0xff]
        %v2913 = vld [vmem:[%s2906 + $0x30] sm:$0xff]
        %v2914 = vld [vmem:[%s2906 + $0x38] sm:$0xff]
        %v2915 = vld [vmem:[%s2906 + $0x40] sm:$0xff]
        %v2916 = vld [vmem:[%s2906 + $0x48] sm:$0xff]
        %v2917 = vld [vmem:[%s2906 + $0x50] sm:$0xff]
        %v2918 = vld [vmem:[%s2906 + $0x58] sm:$0xff]
        %v2919 = vld [vmem:[%s2906 + $0x60] sm:$0xff]
        %v2920 = vld [vmem:[%s2906 + $0x68] sm:$0xff]
        %v2921 = vld [vmem:[%s2906 + $0x70] sm:$0xff]
        %v2922 = vld [vmem:[%s2906 + $0x78] sm:$0xff]
        %v2923 = vld [vmem:[%s2906 + $0x80] sm:$0xff]
        %v2924 = vld [vmem:[%s2906 + $0x88] sm:$0xff]
        %v2925 = vld [vmem:[%s2906 + $0x90] sm:$0xff]
        %v2926 = vld [vmem:[%s2906 + $0x98] sm:$0xff]
        %v2927 = vld [vmem:[%s2906 + $0xa0] sm:$0xff]
        %v2928 = vld [vmem:[%s2906 + $0xa8] sm:$0xff]
        %v2929 = vld [vmem:[%s2906 + $0xb0] sm:$0xff]
        %v2930 = vld [vmem:[%s2906 + $0xb8] sm:$0xff]
        %v2931 = vld [vmem:[%s2906 + $0xc0] sm:$0xff]
        %v2932 = vld [vmem:[%s2906 + $0xc8] sm:$0xff]
        %v2933 = vld [vmem:[%s2906 + $0xd0] sm:$0xff]
        %v2934 = vld [vmem:[%s2906 + $0xd8] sm:$0xff]
        %v2935 = vld [vmem:[%s2906 + $0xe0] sm:$0xff]
        %v2936 = vld [vmem:[%s2906 + $0xe8] sm:$0xff]
        %v2937 = vld [vmem:[%s2906 + $0xf0] sm:$0xff]
        %v2938 = vld [vmem:[%s2906 + $0xf8] sm:$0xff]
        %v2939 = vunpack.c.l.bf16 %v2907
        %v2940 = vunpack.c.h.bf16 %v2907
        %v2941 = vunpack.c.l.bf16 %v2908
        %v2942 = vunpack.c.h.bf16 %v2908
        %v2943 = vunpack.c.l.bf16 %v2909
        %v2944 = vunpack.c.h.bf16 %v2909
        %v2945 = vunpack.c.l.bf16 %v2910
        %v2946 = vunpack.c.h.bf16 %v2910
        %v2947 = vunpack.c.l.bf16 %v2911
        %v2948 = vunpack.c.h.bf16 %v2911
        %v2949 = vunpack.c.l.bf16 %v2912
        %v2950 = vunpack.c.h.bf16 %v2912
        %v2951 = vunpack.c.l.bf16 %v2913
        %v2952 = vunpack.c.h.bf16 %v2913
        %v2953 = vunpack.c.l.bf16 %v2914
        %v2954 = vunpack.c.h.bf16 %v2914
        %v2955 = vunpack.c.l.bf16 %v2915
        %v2956 = vunpack.c.h.bf16 %v2915
        %v2957 = vunpack.c.l.bf16 %v2916
        %v2958 = vunpack.c.h.bf16 %v2916
        %v2959 = vunpack.c.l.bf16 %v2917
        %v2960 = vunpack.c.h.bf16 %v2917
        %v2961 = vunpack.c.l.bf16 %v2918
        %v2962 = vunpack.c.h.bf16 %v2918
        %v2963 = vunpack.c.l.bf16 %v2919
        %v2964 = vunpack.c.h.bf16 %v2919
        %v2965 = vunpack.c.l.bf16 %v2920
        %v2966 = vunpack.c.h.bf16 %v2920
        %v2967 = vunpack.c.l.bf16 %v2921
        %v2968 = vunpack.c.h.bf16 %v2921
        %v2969 = vunpack.c.l.bf16 %v2922
        %v2970 = vunpack.c.h.bf16 %v2922
        %v2971 = vunpack.c.l.bf16 %v2923
        %v2972 = vunpack.c.h.bf16 %v2923
        %v2973 = vunpack.c.l.bf16 %v2924
        %v2974 = vunpack.c.h.bf16 %v2924
        %v2975 = vunpack.c.l.bf16 %v2925
        %v2976 = vunpack.c.h.bf16 %v2925
        %v2977 = vunpack.c.l.bf16 %v2926
        %v2978 = vunpack.c.h.bf16 %v2926
        %v2979 = vunpack.c.l.bf16 %v2927
        %v2980 = vunpack.c.h.bf16 %v2927
        %v2981 = vunpack.c.l.bf16 %v2928
        %v2982 = vunpack.c.h.bf16 %v2928
        %v2983 = vunpack.c.l.bf16 %v2929
        %v2984 = vunpack.c.h.bf16 %v2929
        %v2985 = vunpack.c.l.bf16 %v2930
        %v2986 = vunpack.c.h.bf16 %v2930
        %v2987 = vunpack.c.l.bf16 %v2931
        %v2988 = vunpack.c.h.bf16 %v2931
        %v2989 = vunpack.c.l.bf16 %v2932
        %v2990 = vunpack.c.h.bf16 %v2932
        %v2991 = vunpack.c.l.bf16 %v2933
        %v2992 = vunpack.c.h.bf16 %v2933
        %v2993 = vunpack.c.l.bf16 %v2934
        %v2994 = vunpack.c.h.bf16 %v2934
        %v2995 = vunpack.c.l.bf16 %v2935
        %v2996 = vunpack.c.h.bf16 %v2935
        %v2997 = vunpack.c.l.bf16 %v2936
        %v2998 = vunpack.c.h.bf16 %v2936
        %v2999 = vunpack.c.l.bf16 %v2937
        %v3000 = vunpack.c.h.bf16 %v2937
        %v3001 = vunpack.c.l.bf16 %v2938
        %v3002 = vunpack.c.h.bf16 %v2938
        %v3019 = vsel %vm933, %v1617, %v1615
        %v3020 = vsel %vm935, %v1619, %v3019
        %v3021 = vsel %vm937, %v1621, %v3020
        %v3022 = vsel %vm939, %v1623, %v3021
        %v3023 = vsel %vm941, %v1625, %v3022
        %v3024 = vsel %vm943, %v1627, %v3023
        %v3025 = vsel %vm945, %v1629, %v3024
        %v3026 = vsel %vm933, %v1618, %v1616
        %v3027 = vsel %vm935, %v1620, %v3026
        %v3028 = vsel %vm937, %v1622, %v3027
        %v3029 = vsel %vm939, %v1624, %v3028
        %v3030 = vsel %vm941, %v1626, %v3029
        %v3031 = vsel %vm943, %v1628, %v3030
        %v3032 = vsel %vm945, %v1630, %v3031
        %3035 = vmatprep.subr.mxu0 %v2970
        %3036 = vmatpush1.msra.mxu0 %v2969
        %3037 = vmatprep.subr.mxu0 %v2968
        %3038 = vmatpush1.msra.mxu0 %v2967
        %3039 = vmatprep.subr.mxu0 %v2966
        %3040 = vmatpush1.msra.mxu0 %v2965
        %3041 = vmatprep.subr.mxu0 %v2964
        %3042 = vmatpush1.msra.mxu0 %v2963
        %3043 = vmatprep.subr.mxu0 %v2962
        %3044 = vmatpush1.msra.mxu0 %v2961
        %3045 = vmatprep.subr.mxu0 %v2960
        %3046 = vmatpush1.msra.mxu0 %v2959
        %3047 = vmatprep.subr.mxu0 %v2958
        %3048 = vmatpush1.msra.mxu0 %v2957
        %3049 = vmatprep.subr.mxu0 %v2956
        %3050 = vmatpush1.msra.mxu0 %v2955
        %3051 = vmatprep.subr.mxu0 %v2954
        %3052 = vmatpush1.msra.mxu0 %v2953
        %3053 = vmatprep.subr.mxu0 %v2952
        %3054 = vmatpush1.msra.mxu0 %v2951
        %3055 = vmatprep.subr.mxu0 %v2950
        %3056 = vmatpush1.msra.mxu0 %v2949
        %3057 = vmatprep.subr.mxu0 %v2948
        %3058 = vmatpush1.msra.mxu0 %v2947
        %3059 = vmatprep.subr.mxu0 %v2946
        %3060 = vmatpush1.msra.mxu0 %v2945
        %3061 = vmatprep.subr.mxu0 %v2944
        %3062 = vmatpush1.msra.mxu0 %v2943
        %3063 = vmatprep.subr.mxu0 %v2942
        %3064 = vmatpush1.msra.mxu0 %v2941
        %3065 = vmatprep.subr.mxu0 %v2940
        %3066 = vmatpush1.msra.mxu0 %v2939
        %3067 = vmatprep.subr.mxu0 %v3002
        %3068 = vmatpush2.msra.mxu0 %v3001
        %3069 = vmatprep.subr.mxu0 %v3000
        %3070 = vmatpush2.msra.mxu0 %v2999
        %3071 = vmatprep.subr.mxu0 %v2998
        %3072 = vmatpush2.msra.mxu0 %v2997
        %3073 = vmatprep.subr.mxu0 %v2996
        %3074 = vmatpush2.msra.mxu0 %v2995
        %3075 = vmatprep.subr.mxu0 %v2994
        %3076 = vmatpush2.msra.mxu0 %v2993
        %3077 = vmatprep.subr.mxu0 %v2992
        %3078 = vmatpush2.msra.mxu0 %v2991
        %3079 = vmatprep.subr.mxu0 %v2990
        %3080 = vmatpush2.msra.mxu0 %v2989
        %3081 = vmatprep.subr.mxu0 %v2988
        %3082 = vmatpush2.msra.mxu0 %v2987
        %3083 = vmatprep.subr.mxu0 %v2986
        %3084 = vmatpush2.msra.mxu0 %v2985
        %3085 = vmatprep.subr.mxu0 %v2984
        %3086 = vmatpush2.msra.mxu0 %v2983
        %3087 = vmatprep.subr.mxu0 %v2982
        %3088 = vmatpush2.msra.mxu0 %v2981
        %3089 = vmatprep.subr.mxu0 %v2980
        %3090 = vmatpush2.msra.mxu0 %v2979
        %3091 = vmatprep.subr.mxu0 %v2978
        %3092 = vmatpush2.msra.mxu0 %v2977
        %3093 = vmatprep.subr.mxu0 %v2976
        %3094 = vmatpush2.msra.mxu0 %v2975
        %3095 = vmatprep.subr.mxu0 %v2974
        %3096 = vmatpush2.msra.mxu0 %v2973
        %3097 = vmatprep.subr.mxu0 %v2972
        %3098 = vmatpush2.msra.mxu0 %v2971
        %3099 = vmatprep.mubr.f32.mxu0 %v3032
        %3100 = vmatmul.mubr.f32.gmra.mxu0 %v3025
        %v3101 = vpop.f32.mrf.mxu0
        %v3102 = vadd.f32 0.0, %v3101
        %v3103 = vpop.f32.mrf.mxu0
        %v3104 = vadd.f32 0.0, %v3103
        %3105 = vdwg.mxu0
        %3106 = vset.pattern.permute.xlu0 5
        %3107 = vperm.xlu0 %3106, %v1863
        %v3108 = vpop.permute.xlu0 %3107
        %v3110 = vmul.f32 %v3102, %v3108
        %v3111 = vmul.f32 %v3104, %v3108
        %3112 = vst [vmem:[%s242 + $0x50] sm:$0xff] %v3110
        %3113 = vst [vmem:[%s242 + $0x58] sm:$0xff] %v3111
        %s3114 = sand.u32 %s102, 1
        %s3115 = scalar_lea.sflag [#allocation4], %s3114
        %s3116 = sand.u32 %s102, 1
        %s3117 = smul.addr %s3116, 16
        %s3118 = scalar_lea.vmem [#allocation7], %s3117
        %s3119 = sand.u32 %s128, 1
        %s3120 = scalar_lea.sflag [#allocation9], %s3119
        %s3121 = sand.u32 %s128, 1
        %s3122 = smul.addr %s3121, 96
        %s3123 = scalar_lea.vmem [#allocation8], %s3122
        // Predicated region
        $region41: #{tpu_custom_call.1} parent=31 // pred_check
          %p3124 = pneg %p112
        $region42: #{tpu_custom_call.1} parent=31 // pred_check_branch
          %3126 = sbr.rel (%p3124) target = $region44
        $region43: #{tpu_custom_call.1} parent=31 // pred_region
          %s3128 = ssub.s32 256, 256
          %3129 = vsyncadd %s3115, %s3128
          %s3130 = smul.addr %s26, 2
          %s3131 = smul.addr %s3130, 128
          %s3132 = scalar_lea.hbm %s3, %s3131
          %s3134 = sshll.u32 %s3118, 4
          %s3135 = int_to_ptr.vmem [resolvable:$true] %s3134
          %3137 = dma.vmem_to_hbm [thread:$0]  %s3135, 256, %s3132, %s3115
        $region44: #{tpu_custom_call.1} parent=31 // pred_fallthru
          _
        // Predicated region
        $region45: #{tpu_custom_call.1} parent=31 // pred_check
          %p3138 = pneg %p138
        $region46: #{tpu_custom_call.1} parent=31 // pred_check_branch
          %3140 = sbr.rel (%p3138) target = $region48
        $region47: #{tpu_custom_call.1} parent=31 // pred_region
          %s3142 = ssub.s32 1536, 1536
          %3143 = vsyncadd %s3120, %s3142
          %s3144 = smul.addr %s26, 12
          %s3145 = smul.addr %s3144, 128
          %s3146 = scalar_lea.hbm %s4, %s3145
          %s3148 = sshll.u32 %s3123, 4
          %s3149 = int_to_ptr.vmem [resolvable:$true] %s3148
          %3151 = dma.vmem_to_hbm [thread:$0]  %s3149, 1536, %s3146, %s3120
        $region48: #{tpu_custom_call.1} parent=31 // pred_fallthru
          _
      $region32: #{tpu_custom_call.1} parent=5 // pred_fallthru
        _
      %p3152 = scmp.le.s32.totalorder 2, %s21
      // Predicated region
      $region49: #{tpu_custom_call.1} parent=5 // pred_check
        %p3153 = pneg %p3152
      $region50: #{tpu_custom_call.1} parent=5 // pred_check_branch
        %3155 = sbr.rel (%p3153) target = $region52
      $region51: #{tpu_custom_call.1} parent=5 // pred_region
        %s3156 = ssub.s32 %s21, 2
        // Predicated region
        $region53: #{tpu_custom_call.1} parent=51 // pred_check
          %p3157 = pneg %p118
        $region54: #{tpu_custom_call.1} parent=51 // pred_check_branch
          %3159 = sbr.rel (%p3157) target = $region56
        $region55: #{tpu_custom_call.1} parent=51 // pred_region
          %s3160 = sand.u32 %s103, 1
          %s3161 = scalar_lea.sflag [#allocation4], %s3160
          %s3162 = sand.u32 %s103, 1
          %s3163 = smul.addr %s3162, 16
          %s3164 = scalar_lea.vmem [#allocation7], %s3163
          %3165 = dma.done %s3161, 256
        $region56: #{tpu_custom_call.1} parent=51 // pred_fallthru
          _
        // Predicated region
        $region57: #{tpu_custom_call.1} parent=51 // pred_check
          %p3166 = pneg %p144
        $region58: #{tpu_custom_call.1} parent=51 // pred_check_branch
          %3168 = sbr.rel (%p3166) target = $region60
        $region59: #{tpu_custom_call.1} parent=51 // pred_region
          %s3169 = sand.u32 %s129, 1
          %s3170 = scalar_lea.sflag [#allocation9], %s3169
          %s3171 = sand.u32 %s129, 1
          %s3172 = smul.addr %s3171, 96
          %s3173 = scalar_lea.vmem [#allocation8], %s3172
          %3174 = dma.done %s3170, 1536
        $region60: #{tpu_custom_call.1} parent=51 // pred_fallthru
          _
      $region52: #{tpu_custom_call.1} parent=5 // pred_fallthru
        _
    $region6: #{tpu_custom_call.1} parent=1 // loop_footer
      %s25 = sadd.s32 1, %s21
    $region7: #{tpu_custom_call.1} parent=1 // loop_footer_branch
      %20 = sbr.rel target = $region3
    $region8: #{tpu_custom_call.1} parent=1 // loop_exit
      _
    %3175 = vsyncpa [#allocation3], 1
    %s3176 = scalar_lea.sflag [#allocation3], 1
    %3177 = vsyncpa %s3176, 1
    %3178 = vsyncpa [#allocation6], 1
    %3179 = vsyncpa [#allocation4], 1
    %s3180 = scalar_lea.sflag [#allocation4], 1
    %3181 = vsyncpa %s3180, 1
    %3182 = vsyncpa [#allocation9], 1
    %s3183 = scalar_lea.sflag [#allocation9], 1
    %3184 = vsyncpa %s3183, 1

</llo_original>
